<compile_context>
chip_gen: v7x
topology: tpu7x:2x2x1
jax: 0.10.0
libtpu: 0.0.40
codegen_flags: <defaults>
</compile_context>

<pallas_src>
import functools

import jax
import jax.numpy as jnp
from jax.experimental import pallas as pl
from jax.experimental.pallas import tpu as pltpu


def _layernorm(x, eps=1e-6):
    # LayerNorm over last dim, no affine (nn.LayerNorm(elementwise_affine=False))
    mu = jnp.mean(x, axis=-1, keepdims=True)
    xc = x - mu
    var = jnp.mean(xc * xc, axis=-1, keepdims=True)
    return xc * jax.lax.rsqrt(var + eps)


def _gelu_tanh(x):
    # GELU(approximate='tanh')
    c = 0.7978845608028654  # sqrt(2/pi)
    return 0.5 * x * (1.0 + jnp.tanh(c * (x + 0.044715 * x * x * x)))


def _dit_block_kernel(x_ref, xfull_ref, mods_ref,
                      w_q_ref, b_q_ref, w_k_ref, b_k_ref, w_v_ref, b_v_ref,
                      w_o_ref, b_o_ref,
                      w_fc1_ref, b_fc1_ref, w_fc2_ref, b_fc2_ref,
                      out_ref,
                      k_heads, v_heads, q_heads, ctx_scr,
                      *, num_heads):
    qi = pl.program_id(1)
    cdt = w_q_ref.dtype                      # MXU feed dtype (bf16)
    H = num_heads
    Tq, D = x_ref.shape
    Dh = D // H

    mods = mods_ref[...].astype(jnp.float32)                  # (6, D)
    shift_msa, scale_msa, gate_msa = mods[0:1], mods[1:2], mods[2:3]
    shift_mlp, scale_mlp, gate_mlp = mods[3:4], mods[4:5], mods[5:6]

    # ---- K / V for the whole batch row: computed once, at the first q-tile ----
    @pl.when(qi == 0)
    def _():
        xf = xfull_ref[...].astype(jnp.float32)               # (N, D)
        xfm = (_layernorm(xf) * (1.0 + scale_msa) + shift_msa).astype(cdt)
        k = (jnp.dot(xfm, w_k_ref[...], preferred_element_type=jnp.float32)
             + b_k_ref[...]).astype(cdt)
        v = (jnp.dot(xfm, w_v_ref[...], preferred_element_type=jnp.float32)
             + b_v_ref[...]).astype(cdt)
        for h in range(H):                                    # static unroll
            sl = slice(h * Dh, (h + 1) * Dh)
            k_heads[h] = k[:, sl]
            v_heads[h] = v[:, sl]

    # ---- attention branch for this query tile ----
    x = x_ref[...].astype(jnp.float32)                        # (Tq, D) residual, f32
    xm = (_layernorm(x) * (1.0 + scale_msa) + shift_msa).astype(cdt)

    # Full-lane-width Q projection; 1/sqrt(Dh) already folded into W_q / b_q.
    q = (jnp.dot(xm, w_q_ref[...], preferred_element_type=jnp.float32)
         + b_q_ref[...]).astype(cdt)
    for h in range(H):                                        # head-major split
        q_heads[h] = q[:, h * Dh:(h + 1) * Dh]

    logits = jnp.einsum('hqd,hkd->hqk', q_heads[...], k_heads[...],
                        preferred_element_type=jnp.float32)   # (H, Tq, N) f32
    logits = logits - jnp.max(logits, axis=-1, keepdims=True)
    p = jnp.exp(logits)
    p = p * pl.reciprocal(jnp.sum(p, axis=-1, keepdims=True), approx=True)
    ctx = jnp.einsum('hqk,hkd->hqd', p.astype(cdt), v_heads[...],
                     preferred_element_type=jnp.float32)      # (H, Tq, Dh)
    ctxb = ctx.astype(cdt)
    for h in range(H):                                        # reassemble lane-dense
        ctx_scr[:, h * Dh:(h + 1) * Dh] = ctxb[h]

    # Single full-width output projection.
    attn = (jnp.dot(ctx_scr[...], w_o_ref[...],
                    preferred_element_type=jnp.float32) + b_o_ref[...])
    x = x + gate_msa * attn

    # ---- MLP branch, chunked over the hidden dimension M ----
    xm2 = (_layernorm(x) * (1.0 + scale_mlp) + shift_mlp).astype(cdt)
    n_chunks = w_fc1_ref.shape[0]
    mlp = jnp.zeros((Tq, D), jnp.float32)
    for j in range(n_chunks):                                 # static unroll
        h1 = (jnp.dot(xm2, w_fc1_ref[j], preferred_element_type=jnp.float32)
              + b_fc1_ref[j])
        h1 = _gelu_tanh(h1).astype(cdt)
        mlp = mlp + jnp.dot(h1, w_fc2_ref[j], preferred_element_type=jnp.float32)
    mlp = mlp + b_fc2_ref[...]

    # Fuse gate-multiply + residual add directly into the output store.
    out_ref[...] = (x + gate_mlp * mlp).astype(out_ref.dtype)


def _vmem_limit_bytes():
    # Generation-aware scoped VMEM limit: ~85% of physical, capped at 112 MiB.
    try:
        cap = int(pltpu.get_tpu_info().vmem_capacity_bytes)
    except Exception:
        cap = 64 * 1024 * 1024            # conservative (v7x-sized) fallback
    return min(int(cap * 0.85), 112 * 1024 * 1024)


def _dit_block_impl(x, c, params, num_heads, *, q_tile, mlp_chunk,
                    single_buffer_weights):
    B, N, D = x.shape
    H = num_heads
    Dh = D // H
    (w_ada, b_ada, w_q, b_q, w_k, b_k, w_v, b_v,
     w_o, b_o, w_fc1, b_fc1, w_fc2, b_fc2) = params
    M = w_fc1.shape[-1]

    # --- adaLN modulation hoisted out of the kernel (tiny 1-row matmuls) ---
    c32 = c.astype(jnp.float32)
    silu_c = c32 * jax.nn.sigmoid(c32)
    mods = silu_c @ w_ada.astype(jnp.float32) + b_ada.astype(jnp.float32)
    mods = mods.reshape(B, 6, D)                              # (B, 6, D) f32

    # --- fold the 1/sqrt(Dh) attention scale into the Q projection ---
    scale = Dh ** -0.5
    w_q_s = (w_q.astype(jnp.float32) * scale).astype(w_q.dtype)
    b_q_s = (b_q * scale).astype(b_q.dtype)

    # --- pre-split the MLP weights into M-chunks (trace time, no kernel slicing) ---
    n_chunks = max(1, M // mlp_chunk)
    if M % n_chunks:
        n_chunks = 1
    Mc = M // n_chunks
    w_fc1_c = w_fc1.reshape(D, n_chunks, Mc).transpose(1, 0, 2)    # (KC, D, Mc)
    b_fc1_c = b_fc1.reshape(1, n_chunks, Mc).transpose(1, 0, 2)    # (KC, 1, Mc)
    w_fc2_c = w_fc2.reshape(n_chunks, Mc, D)                       # (KC, Mc, D)

    # --- sequence tiling ---
    Tq = q_tile if (N >= q_tile and N % q_tile == 0) else N
    NT = N // Tq

    def weight_spec(arr):
        kwargs = {}
        if single_buffer_weights:
            # weights never change across the grid -> single buffer halves VMEM
            kwargs["pipeline_mode"] = pl.Buffered(1)
        return pl.BlockSpec(arr.shape, lambda *_, n=arr.ndim: (0,) * n, **kwargs)

    weights = (w_q_s, b_q_s, w_k, b_k, w_v, b_v, w_o, b_o,
               w_fc1_c, b_fc1_c, w_fc2_c, b_fc2)

    in_specs = [
        # per-(batch, q-tile) activation tile: double-buffered by the pipeline
        pl.BlockSpec((None, Tq, D), lambda b, t: (b, t, 0)),
        # full batch row (K/V source): only re-fetched when the batch index changes
        pl.BlockSpec((None, N, D), lambda b, t: (b, 0, 0)),
        # adaLN modulation rows for this batch element
        pl.BlockSpec((None, 6, D), lambda b, t: (b, 0, 0)),
    ] + [weight_spec(w) for w in weights]
    out_spec = pl.BlockSpec((None, Tq, D), lambda b, t: (b, t, 0))

    scratch_shapes = [
        pltpu.VMEM((H, N, Dh), w_q.dtype),     # K, head-major, persists per row
        pltpu.VMEM((H, N, Dh), w_q.dtype),     # V, head-major, persists per row
        pltpu.VMEM((H, Tq, Dh), w_q.dtype),    # Q, head-major, per tile
        pltpu.VMEM((Tq, D), w_q.dtype),        # ctx, lane-dense, feeds out-proj
    ]

    flops = int(B * N * (3 * 2 * D * D          # QKV projections
                         + 4 * N * D            # logits + PV
                         + 2 * D * D            # output projection
                         + 4 * D * M))          # fc1 + fc2
    transcendentals = int(B * (H * N * N + N * M))
    weight_bytes = sum(int(a.size) * a.dtype.itemsize for a in weights)
    bytes_accessed = int(3 * x.size * x.dtype.itemsize + mods.size * 4 + weight_bytes)

    kernel = functools.partial(_dit_block_kernel, num_heads=H)
    return pl.pallas_call(
        kernel,
        out_shape=jax.ShapeDtypeStruct(x.shape, x.dtype),
        grid=(B, NT),
        in_specs=in_specs,
        out_specs=out_spec,
        scratch_shapes=scratch_shapes,
        compiler_params=pltpu.CompilerParams(
            dimension_semantics=("parallel", "arbitrary"),
            vmem_limit_bytes=_vmem_limit_bytes()),
        cost_estimate=pl.CostEstimate(
            flops=flops, transcendentals=transcendentals,
            bytes_accessed=bytes_accessed),
    )(x, x, mods, *weights)


def dit_block(x, c, params, num_heads, *, q_tile=128, mlp_chunk=1024):
    """x: (B, N, D), c: (B, D), params: 14 arrays (see init_params)."""
    try:
        return _dit_block_impl(x, c, params, num_heads, q_tile=q_tile,
                               mlp_chunk=mlp_chunk, single_buffer_weights=True)
    except Exception:
        # Fallback if this JAX build rejects pl.Buffered(1) single-buffering;
        # identical kernel with default double-buffered weight blocks.
        return _dit_block_impl(x, c, params, num_heads, q_tile=q_tile,
                               mlp_chunk=mlp_chunk, single_buffer_weights=False)


def init_params(key, hidden_size, mlp_hidden, num_heads):
    """Deterministic synthetic init.  Weights bf16 (MXU feed), biases f32.

    Weights stored pre-transposed (in, out):
      w_ada: (D, 6D)  b_ada: (6D,)            (applied in the wrapper)
      w_q/k/v/o: (D, D), b_*: (1, D)
      w_fc1: (D, M), b_fc1: (1, M), w_fc2: (M, D), b_fc2: (1, D)
    """
    del num_heads  # layout is head-agnostic (full-width weights)
    D, M = hidden_size, mlp_hidden
    ks = jax.random.split(key, 16)

    def w(k, shp, dtype=jnp.bfloat16, s=0.02):
        return (jax.random.normal(k, shp, jnp.float32) * s).astype(dtype)

    w_ada = w(ks[0], (D, 6 * D));  b_ada = w(ks[1], (6 * D,), jnp.float32)
    w_q = w(ks[2], (D, D));        b_q = w(ks[3], (1, D), jnp.float32)
    w_k = w(ks[4], (D, D));        b_k = w(ks[5], (1, D), jnp.float32)
    w_v = w(ks[6], (D, D));        b_v = w(ks[7], (1, D), jnp.float32)
    w_o = w(ks[8], (D, D));        b_o = w(ks[9], (1, D), jnp.float32)
    w_fc1 = w(ks[10], (D, M));     b_fc1 = w(ks[11], (1, M), jnp.float32)
    w_fc2 = w(ks[12], (M, D));     b_fc2 = w(ks[13], (1, D), jnp.float32)
    return (w_ada, b_ada, w_q, b_q, w_k, b_k, w_v, b_v,
            w_o, b_o, w_fc1, b_fc1, w_fc2, b_fc2)


def ref_dit_block(x, c, params, num_heads):
    """Pure-JAX f32 reference mirroring the PyTorch DiTBlock forward."""
    (w_ada, b_ada, w_q, b_q, w_k, b_k, w_v, b_v,
     w_o, b_o, w_fc1, b_fc1, w_fc2, b_fc2) = [
        p.astype(jnp.float32) for p in params]
    x = x.astype(jnp.float32)
    c = c.astype(jnp.float32)
    B, N, D = x.shape
    H = num_heads
    Dh = D // H

    def ln(v):
        mu = v.mean(-1, keepdims=True)
        var = ((v - mu) ** 2).mean(-1, keepdims=True)
        return (v - mu) * jax.lax.rsqrt(var + 1e-6)

    def mod(v, sh, sc):
        return v * (1.0 + sc[:, None, :]) + sh[:, None, :]

    silu = c * jax.nn.sigmoid(c)
    mods = silu @ w_ada + b_ada
    sh_msa, sc_msa, g_msa, sh_mlp, sc_mlp, g_mlp = jnp.split(mods, 6, axis=-1)

    xm = mod(ln(x), sh_msa, sc_msa)
    q = (xm @ w_q + b_q[0]).reshape(B, N, H, Dh).transpose(0, 2, 1, 3) * (Dh ** -0.5)
    k = (xm @ w_k + b_k[0]).reshape(B, N, H, Dh).transpose(0, 2, 1, 3)
    v = (xm @ w_v + b_v[0]).reshape(B, N, H, Dh).transpose(0, 2, 1, 3)
    att = jax.nn.softmax(q @ k.transpose(0, 1, 3, 2), axis=-1)
    ctx = (att @ v).transpose(0, 2, 1, 3).reshape(B, N, D)
    x = x + g_msa[:, None, :] * (ctx @ w_o + b_o[0])

    xm2 = mod(ln(x), sh_mlp, sc_mlp)
    h1 = xm2 @ w_fc1 + b_fc1[0]
    h1 = 0.5 * h1 * (1.0 + jnp.tanh(0.7978845608028654 * (h1 + 0.044715 * h1 ** 3)))
    x = x + g_mlp[:, None, :] * (h1 @ w_fc2 + b_fc2[0])
    return x


if __name__ == "__main__":
    B, N, D = 2, 8, 32          # batch, sequence, hidden
    num_heads = 4
    mlp_ratio = 4.0
    mlp_hidden = int(D * mlp_ratio)

    key = jax.random.PRNGKey(0)
    kx, kc, kp = jax.random.split(key, 3)
    x = jax.random.normal(kx, (B, N, D), jnp.float32).astype(jnp.bfloat16)
    c = jax.random.normal(kc, (B, D), jnp.float32).astype(jnp.bfloat16)
    params = init_params(kp, D, mlp_hidden, num_heads)

    out = jax.block_until_ready(dit_block(x, c, params, num_heads))
    assert out.shape == (B, N, D) and out.dtype == jnp.bfloat16

    ref = ref_dit_block(x, c, params, num_heads)
    err = float(jnp.max(jnp.abs(out.astype(jnp.float32) - ref)))
    assert err < 5e-2, f"max |kernel - reference| too large: {err}"
    print("KERNEL_OK")
</pallas_src>

<mosaic_0001>
module attributes {stable_mosaic.version = 11 : i64} {
  func.func @_dit_block_kernel(%arg0: i32, %arg1: i32, %arg2: memref<1x8x32xbf16, #tpu.memory_space<vmem>>, %arg3: memref<1x8x32xbf16, #tpu.memory_space<vmem>>, %arg4: memref<1x6x32xf32, #tpu.memory_space<vmem>>, %arg5: memref<32x32xbf16, #tpu.memory_space<vmem>>, %arg6: memref<1x32xf32, #tpu.memory_space<vmem>>, %arg7: memref<32x32xbf16, #tpu.memory_space<vmem>>, %arg8: memref<1x32xf32, #tpu.memory_space<vmem>>, %arg9: memref<32x32xbf16, #tpu.memory_space<vmem>>, %arg10: memref<1x32xf32, #tpu.memory_space<vmem>>, %arg11: memref<32x32xbf16, #tpu.memory_space<vmem>>, %arg12: memref<1x32xf32, #tpu.memory_space<vmem>>, %arg13: memref<1x32x128xbf16, #tpu.memory_space<vmem>>, %arg14: memref<1x1x128xf32, #tpu.memory_space<vmem>>, %arg15: memref<1x128x32xbf16, #tpu.memory_space<vmem>>, %arg16: memref<1x32xf32, #tpu.memory_space<vmem>>, %arg17: memref<1x8x32xbf16, #tpu.memory_space<vmem>>, %arg18: memref<4x8x8xbf16, #tpu.memory_space<vmem>>, %arg19: memref<4x8x8xbf16, #tpu.memory_space<vmem>>, %arg20: memref<4x8x8xbf16, #tpu.memory_space<vmem>>, %arg21: memref<8x32xbf16, #tpu.memory_space<vmem>>) attributes {dimension_semantics = [#tpu.dimension_semantics<parallel>, #tpu.dimension_semantics<arbitrary>], iteration_bounds = array<i64: 2, 1>, scalar_prefetch = 0 : i64, scratch_operands = 4 : i64, tpu.core_type = #tpu.core_type<tc>, window_params = [{transform_indices = @transform_0, window_bounds = array<i64: 1, 8, 32>}, {transform_indices = @transform_1, window_bounds = array<i64: 1, 8, 32>}, {transform_indices = @transform_2, window_bounds = array<i64: 1, 6, 32>}, {pipeline_mode = #tpu.pipeline_mode<synchronous>, transform_indices = @transform_3, window_bounds = array<i64: 32, 32>}, {pipeline_mode = #tpu.pipeline_mode<synchronous>, transform_indices = @transform_4, window_bounds = array<i64: 1, 32>}, {pipeline_mode = #tpu.pipeline_mode<synchronous>, transform_indices = @transform_5, window_bounds = array<i64: 32, 32>}, {pipeline_mode = #tpu.pipeline_mode<synchronous>, transform_indices = @transform_6, window_bounds = array<i64: 1, 32>}, {pipeline_mode = #tpu.pipeline_mode<synchronous>, transform_indices = @transform_7, window_bounds = array<i64: 32, 32>}, {pipeline_mode = #tpu.pipeline_mode<synchronous>, transform_indices = @transform_8, window_bounds = array<i64: 1, 32>}, {pipeline_mode = #tpu.pipeline_mode<synchronous>, transform_indices = @transform_9, window_bounds = array<i64: 32, 32>}, {pipeline_mode = #tpu.pipeline_mode<synchronous>, transform_indices = @transform_10, window_bounds = array<i64: 1, 32>}, {pipeline_mode = #tpu.pipeline_mode<synchronous>, transform_indices = @transform_11, window_bounds = array<i64: 1, 32, 128>}, {pipeline_mode = #tpu.pipeline_mode<synchronous>, transform_indices = @transform_12, window_bounds = array<i64: 1, 1, 128>}, {pipeline_mode = #tpu.pipeline_mode<synchronous>, transform_indices = @transform_13, window_bounds = array<i64: 1, 128, 32>}, {pipeline_mode = #tpu.pipeline_mode<synchronous>, transform_indices = @transform_14, window_bounds = array<i64: 1, 32>}, {transform_indices = @transform_15, window_bounds = array<i64: 1, 8, 32>}]} {
    %c0 = arith.constant 0 : index
    %c0_0 = arith.constant 0 : index
    %c0_1 = arith.constant 0 : index
    %0 = vector.load %arg4[%c0, %c0_0, %c0_1] : memref<1x6x32xf32, #tpu.memory_space<vmem>>, vector<1x6x32xf32>
    %1 = vector.shape_cast %0 : vector<1x6x32xf32> to vector<6x32xf32>
    %2 = vector.extract_strided_slice %1 {offsets = [0, 0], sizes = [1, 32], strides = [1, 1]} : vector<6x32xf32> to vector<1x32xf32>
    %3 = vector.extract_strided_slice %1 {offsets = [1, 0], sizes = [1, 32], strides = [1, 1]} : vector<6x32xf32> to vector<1x32xf32>
    %4 = vector.extract_strided_slice %1 {offsets = [2, 0], sizes = [1, 32], strides = [1, 1]} : vector<6x32xf32> to vector<1x32xf32>
    %5 = vector.extract_strided_slice %1 {offsets = [3, 0], sizes = [1, 32], strides = [1, 1]} : vector<6x32xf32> to vector<1x32xf32>
    %6 = vector.extract_strided_slice %1 {offsets = [4, 0], sizes = [1, 32], strides = [1, 1]} : vector<6x32xf32> to vector<1x32xf32>
    %7 = vector.extract_strided_slice %1 {offsets = [5, 0], sizes = [1, 32], strides = [1, 1]} : vector<6x32xf32> to vector<1x32xf32>
    %c0_i32 = arith.constant 0 : i32
    %8 = arith.cmpi eq, %arg1, %c0_i32 : i32
    %9 = arith.extui %8 : i1 to i32
    %c0_i32_2 = arith.constant 0 : i32
    %10 = arith.cmpi ne, %9, %c0_i32_2 : i32
    scf.if %10 {
      %c0_77 = arith.constant 0 : index
      %c0_78 = arith.constant 0 : index
      %c0_79 = arith.constant 0 : index
      %156 = vector.load %arg3[%c0_77, %c0_78, %c0_79] : memref<1x8x32xbf16, #tpu.memory_space<vmem>>, vector<1x8x32xbf16>
      %157 = vector.shape_cast %156 : vector<1x8x32xbf16> to vector<8x32xbf16>
      %158 = arith.extf %157 : vector<8x32xbf16> to vector<8x32xf32>
      %cst_80 = arith.constant dense<0.000000e+00> : vector<8xf32>
      %159 = vector.multi_reduction <add>, %158, %cst_80 [1] : vector<8x32xf32> to vector<8xf32>
      %160 = vector.shape_cast %159 : vector<8xf32> to vector<8x1xf32>
      %cst_81 = arith.constant 3.200000e+01 : f32
      %161 = vector.broadcast %cst_81 : f32 to vector<8x1xf32>
      %162 = arith.divf %160, %161 : vector<8x1xf32>
      %163 = vector.broadcast %162 : vector<8x1xf32> to vector<8x32xf32>
      %164 = arith.subf %158, %163 : vector<8x32xf32>
      %165 = arith.mulf %164, %164 : vector<8x32xf32>
      %cst_82 = arith.constant dense<0.000000e+00> : vector<8xf32>
      %166 = vector.multi_reduction <add>, %165, %cst_82 [1] : vector<8x32xf32> to vector<8xf32>
      %167 = vector.shape_cast %166 : vector<8xf32> to vector<8x1xf32>
      %cst_83 = arith.constant 3.200000e+01 : f32
      %168 = vector.broadcast %cst_83 : f32 to vector<8x1xf32>
      %169 = arith.divf %167, %168 : vector<8x1xf32>
      %cst_84 = arith.constant 9.99999997E-7 : f32
      %170 = vector.broadcast %cst_84 : f32 to vector<8x1xf32>
      %171 = arith.addf %169, %170 : vector<8x1xf32>
      %172 = math.rsqrt %171 : vector<8x1xf32>
      %173 = vector.broadcast %172 : vector<8x1xf32> to vector<8x32xf32>
      %174 = arith.mulf %164, %173 : vector<8x32xf32>
      %cst_85 = arith.constant 1.000000e+00 : f32
      %175 = vector.broadcast %cst_85 : f32 to vector<1x32xf32>
      %176 = arith.addf %175, %3 : vector<1x32xf32>
      %177 = vector.broadcast %176 : vector<1x32xf32> to vector<8x32xf32>
      %178 = arith.mulf %174, %177 : vector<8x32xf32>
      %179 = vector.broadcast %2 : vector<1x32xf32> to vector<8x32xf32>
      %180 = arith.addf %178, %179 : vector<8x32xf32>
      %181 = arith.truncf %180 : vector<8x32xf32> to vector<8x32xbf16>
      %c0_86 = arith.constant 0 : index
      %c0_87 = arith.constant 0 : index
      %182 = vector.load %arg7[%c0_86, %c0_87] : memref<32x32xbf16, #tpu.memory_space<vmem>>, vector<32x32xbf16>
      %cst_88 = arith.constant dense<0.000000e+00> : vector<8x32xf32>
      %183 = tpu.matmul %181, %182, %cst_88 {dimension_numbers = #tpu.dot_dimension_numbers<[1], [0], [0], [1], [0, 0, 1, 1], [], []>} : vector<8x32xbf16>, vector<32x32xbf16>, vector<8x32xf32> -> vector<8x32xf32>
      %c0_89 = arith.constant 0 : index
      %c0_90 = arith.constant 0 : index
      %184 = vector.load %arg8[%c0_89, %c0_90] : memref<1x32xf32, #tpu.memory_space<vmem>>, vector<1x32xf32>
      %185 = vector.broadcast %184 : vector<1x32xf32> to vector<8x32xf32>
      %186 = arith.addf %183, %185 : vector<8x32xf32>
      %187 = arith.truncf %186 : vector<8x32xf32> to vector<8x32xbf16>
      %c0_91 = arith.constant 0 : index
      %c0_92 = arith.constant 0 : index
      %188 = vector.load %arg9[%c0_91, %c0_92] : memref<32x32xbf16, #tpu.memory_space<vmem>>, vector<32x32xbf16>
      %cst_93 = arith.constant dense<0.000000e+00> : vector<8x32xf32>
      %189 = tpu.matmul %181, %188, %cst_93 {dimension_numbers = #tpu.dot_dimension_numbers<[1], [0], [0], [1], [0, 0, 1, 1], [], []>} : vector<8x32xbf16>, vector<32x32xbf16>, vector<8x32xf32> -> vector<8x32xf32>
      %c0_94 = arith.constant 0 : index
      %c0_95 = arith.constant 0 : index
      %190 = vector.load %arg10[%c0_94, %c0_95] : memref<1x32xf32, #tpu.memory_space<vmem>>, vector<1x32xf32>
      %191 = vector.broadcast %190 : vector<1x32xf32> to vector<8x32xf32>
      %192 = arith.addf %189, %191 : vector<8x32xf32>
      %193 = arith.truncf %192 : vector<8x32xf32> to vector<8x32xbf16>
      %194 = vector.extract_strided_slice %187 {offsets = [0, 0], sizes = [8, 8], strides = [1, 1]} : vector<8x32xbf16> to vector<8x8xbf16>
      %c0_96 = arith.constant 0 : index
      %c0_97 = arith.constant 0 : index
      %c0_98 = arith.constant 0 : index
      %195 = vector.load %arg18[%c0_96, %c0_97, %c0_98] : memref<4x8x8xbf16, #tpu.memory_space<vmem>>, vector<1x8x8xbf16>
      %196 = vector.shape_cast %195 : vector<1x8x8xbf16> to vector<8x8xbf16>
      %197 = vector.shape_cast %194 : vector<8x8xbf16> to vector<1x8x8xbf16>
      tpu.vector_store %arg18[%c0_96, %c0_97, %c0_98], %197 {strides = array<i32>} : memref<4x8x8xbf16, #tpu.memory_space<vmem>>, vector<1x8x8xbf16>,
      %198 = vector.extract_strided_slice %193 {offsets = [0, 0], sizes = [8, 8], strides = [1, 1]} : vector<8x32xbf16> to vector<8x8xbf16>
      %c0_99 = arith.constant 0 : index
      %c0_100 = arith.constant 0 : index
      %c0_101 = arith.constant 0 : index
      %199 = vector.load %arg19[%c0_99, %c0_100, %c0_101] : memref<4x8x8xbf16, #tpu.memory_space<vmem>>, vector<1x8x8xbf16>
      %200 = vector.shape_cast %199 : vector<1x8x8xbf16> to vector<8x8xbf16>
      %201 = vector.shape_cast %198 : vector<8x8xbf16> to vector<1x8x8xbf16>
      tpu.vector_store %arg19[%c0_99, %c0_100, %c0_101], %201 {strides = array<i32>} : memref<4x8x8xbf16, #tpu.memory_space<vmem>>, vector<1x8x8xbf16>,
      %202 = vector.extract_strided_slice %187 {offsets = [0, 8], sizes = [8, 8], strides = [1, 1]} : vector<8x32xbf16> to vector<8x8xbf16>
      %c1_102 = arith.constant 1 : index
      %c0_103 = arith.constant 0 : index
      %c0_104 = arith.constant 0 : index
      %203 = vector.load %arg18[%c1_102, %c0_103, %c0_104] : memref<4x8x8xbf16, #tpu.memory_space<vmem>>, vector<1x8x8xbf16>
      %204 = vector.shape_cast %203 : vector<1x8x8xbf16> to vector<8x8xbf16>
      %205 = vector.shape_cast %202 : vector<8x8xbf16> to vector<1x8x8xbf16>
      tpu.vector_store %arg18[%c1_102, %c0_103, %c0_104], %205 {strides = array<i32>} : memref<4x8x8xbf16, #tpu.memory_space<vmem>>, vector<1x8x8xbf16>,
      %206 = vector.extract_strided_slice %193 {offsets = [0, 8], sizes = [8, 8], strides = [1, 1]} : vector<8x32xbf16> to vector<8x8xbf16>
      %c1_105 = arith.constant 1 : index
      %c0_106 = arith.constant 0 : index
      %c0_107 = arith.constant 0 : index
      %207 = vector.load %arg19[%c1_105, %c0_106, %c0_107] : memref<4x8x8xbf16, #tpu.memory_space<vmem>>, vector<1x8x8xbf16>
      %208 = vector.shape_cast %207 : vector<1x8x8xbf16> to vector<8x8xbf16>
      %209 = vector.shape_cast %206 : vector<8x8xbf16> to vector<1x8x8xbf16>
      tpu.vector_store %arg19[%c1_105, %c0_106, %c0_107], %209 {strides = array<i32>} : memref<4x8x8xbf16, #tpu.memory_space<vmem>>, vector<1x8x8xbf16>,
      %210 = vector.extract_strided_slice %187 {offsets = [0, 16], sizes = [8, 8], strides = [1, 1]} : vector<8x32xbf16> to vector<8x8xbf16>
      %c2_108 = arith.constant 2 : index
      %c0_109 = arith.constant 0 : index
      %c0_110 = arith.constant 0 : index
      %211 = vector.load %arg18[%c2_108, %c0_109, %c0_110] : memref<4x8x8xbf16, #tpu.memory_space<vmem>>, vector<1x8x8xbf16>
      %212 = vector.shape_cast %211 : vector<1x8x8xbf16> to vector<8x8xbf16>
      %213 = vector.shape_cast %210 : vector<8x8xbf16> to vector<1x8x8xbf16>
      tpu.vector_store %arg18[%c2_108, %c0_109, %c0_110], %213 {strides = array<i32>} : memref<4x8x8xbf16, #tpu.memory_space<vmem>>, vector<1x8x8xbf16>,
      %214 = vector.extract_strided_slice %193 {offsets = [0, 16], sizes = [8, 8], strides = [1, 1]} : vector<8x32xbf16> to vector<8x8xbf16>
      %c2_111 = arith.constant 2 : index
      %c0_112 = arith.constant 0 : index
      %c0_113 = arith.constant 0 : index
      %215 = vector.load %arg19[%c2_111, %c0_112, %c0_113] : memref<4x8x8xbf16, #tpu.memory_space<vmem>>, vector<1x8x8xbf16>
      %216 = vector.shape_cast %215 : vector<1x8x8xbf16> to vector<8x8xbf16>
      %217 = vector.shape_cast %214 : vector<8x8xbf16> to vector<1x8x8xbf16>
      tpu.vector_store %arg19[%c2_111, %c0_112, %c0_113], %217 {strides = array<i32>} : memref<4x8x8xbf16, #tpu.memory_space<vmem>>, vector<1x8x8xbf16>,
      %218 = vector.extract_strided_slice %187 {offsets = [0, 24], sizes = [8, 8], strides = [1, 1]} : vector<8x32xbf16> to vector<8x8xbf16>
      %c3_114 = arith.constant 3 : index
      %c0_115 = arith.constant 0 : index
      %c0_116 = arith.constant 0 : index
      %219 = vector.load %arg18[%c3_114, %c0_115, %c0_116] : memref<4x8x8xbf16, #tpu.memory_space<vmem>>, vector<1x8x8xbf16>
      %220 = vector.shape_cast %219 : vector<1x8x8xbf16> to vector<8x8xbf16>
      %221 = vector.shape_cast %218 : vector<8x8xbf16> to vector<1x8x8xbf16>
      tpu.vector_store %arg18[%c3_114, %c0_115, %c0_116], %221 {strides = array<i32>} : memref<4x8x8xbf16, #tpu.memory_space<vmem>>, vector<1x8x8xbf16>,
      %222 = vector.extract_strided_slice %193 {offsets = [0, 24], sizes = [8, 8], strides = [1, 1]} : vector<8x32xbf16> to vector<8x8xbf16>
      %c3_117 = arith.constant 3 : index
      %c0_118 = arith.constant 0 : index
      %c0_119 = arith.constant 0 : index
      %223 = vector.load %arg19[%c3_117, %c0_118, %c0_119] : memref<4x8x8xbf16, #tpu.memory_space<vmem>>, vector<1x8x8xbf16>
      %224 = vector.shape_cast %223 : vector<1x8x8xbf16> to vector<8x8xbf16>
      %225 = vector.shape_cast %222 : vector<8x8xbf16> to vector<1x8x8xbf16>
      tpu.vector_store %arg19[%c3_117, %c0_118, %c0_119], %225 {strides = array<i32>} : memref<4x8x8xbf16, #tpu.memory_space<vmem>>, vector<1x8x8xbf16>,
    } else {
    }
    %c0_3 = arith.constant 0 : index
    %c0_4 = arith.constant 0 : index
    %c0_5 = arith.constant 0 : index
    %11 = vector.load %arg2[%c0_3, %c0_4, %c0_5] : memref<1x8x32xbf16, #tpu.memory_space<vmem>>, vector<1x8x32xbf16>
    %12 = vector.shape_cast %11 : vector<1x8x32xbf16> to vector<8x32xbf16>
    %13 = arith.extf %12 : vector<8x32xbf16> to vector<8x32xf32>
    %cst = arith.constant dense<0.000000e+00> : vector<8xf32>
    %14 = vector.multi_reduction <add>, %13, %cst [1] : vector<8x32xf32> to vector<8xf32>
    %15 = vector.shape_cast %14 : vector<8xf32> to vector<8x1xf32>
    %cst_6 = arith.constant 3.200000e+01 : f32
    %16 = vector.broadcast %cst_6 : f32 to vector<8x1xf32>
    %17 = arith.divf %15, %16 : vector<8x1xf32>
    %18 = vector.broadcast %17 : vector<8x1xf32> to vector<8x32xf32>
    %19 = arith.subf %13, %18 : vector<8x32xf32>
    %20 = arith.mulf %19, %19 : vector<8x32xf32>
    %cst_7 = arith.constant dense<0.000000e+00> : vector<8xf32>
    %21 = vector.multi_reduction <add>, %20, %cst_7 [1] : vector<8x32xf32> to vector<8xf32>
    %22 = vector.shape_cast %21 : vector<8xf32> to vector<8x1xf32>
    %cst_8 = arith.constant 3.200000e+01 : f32
    %23 = vector.broadcast %cst_8 : f32 to vector<8x1xf32>
    %24 = arith.divf %22, %23 : vector<8x1xf32>
    %cst_9 = arith.constant 9.99999997E-7 : f32
    %25 = vector.broadcast %cst_9 : f32 to vector<8x1xf32>
    %26 = arith.addf %24, %25 : vector<8x1xf32>
    %27 = math.rsqrt %26 : vector<8x1xf32>
    %28 = vector.broadcast %27 : vector<8x1xf32> to vector<8x32xf32>
    %29 = arith.mulf %19, %28 : vector<8x32xf32>
    %cst_10 = arith.constant 1.000000e+00 : f32
    %30 = vector.broadcast %cst_10 : f32 to vector<1x32xf32>
    %31 = arith.addf %30, %3 : vector<1x32xf32>
    %32 = vector.broadcast %31 : vector<1x32xf32> to vector<8x32xf32>
    %33 = arith.mulf %29, %32 : vector<8x32xf32>
    %34 = vector.broadcast %2 : vector<1x32xf32> to vector<8x32xf32>
    %35 = arith.addf %33, %34 : vector<8x32xf32>
    %36 = arith.truncf %35 : vector<8x32xf32> to vector<8x32xbf16>
    %c0_11 = arith.constant 0 : index
    %c0_12 = arith.constant 0 : index
    %37 = vector.load %arg5[%c0_11, %c0_12] : memref<32x32xbf16, #tpu.memory_space<vmem>>, vector<32x32xbf16>
    %cst_13 = arith.constant dense<0.000000e+00> : vector<8x32xf32>
    %38 = tpu.matmul %36, %37, %cst_13 {dimension_numbers = #tpu.dot_dimension_numbers<[1], [0], [0], [1], [0, 0, 1, 1], [], []>} : vector<8x32xbf16>, vector<32x32xbf16>, vector<8x32xf32> -> vector<8x32xf32>
    %c0_14 = arith.constant 0 : index
    %c0_15 = arith.constant 0 : index
    %39 = vector.load %arg6[%c0_14, %c0_15] : memref<1x32xf32, #tpu.memory_space<vmem>>, vector<1x32xf32>
    %40 = vector.broadcast %39 : vector<1x32xf32> to vector<8x32xf32>
    %41 = arith.addf %38, %40 : vector<8x32xf32>
    %42 = arith.truncf %41 : vector<8x32xf32> to vector<8x32xbf16>
    %43 = vector.extract_strided_slice %42 {offsets = [0, 0], sizes = [8, 8], strides = [1, 1]} : vector<8x32xbf16> to vector<8x8xbf16>
    %c0_16 = arith.constant 0 : index
    %c0_17 = arith.constant 0 : index
    %c0_18 = arith.constant 0 : index
    %44 = vector.load %arg20[%c0_16, %c0_17, %c0_18] : memref<4x8x8xbf16, #tpu.memory_space<vmem>>, vector<1x8x8xbf16>
    %45 = vector.shape_cast %44 : vector<1x8x8xbf16> to vector<8x8xbf16>
    %46 = vector.shape_cast %43 : vector<8x8xbf16> to vector<1x8x8xbf16>
    tpu.vector_store %arg20[%c0_16, %c0_17, %c0_18], %46 {strides = array<i32>} : memref<4x8x8xbf16, #tpu.memory_space<vmem>>, vector<1x8x8xbf16>,
    %47 = vector.extract_strided_slice %42 {offsets = [0, 8], sizes = [8, 8], strides = [1, 1]} : vector<8x32xbf16> to vector<8x8xbf16>
    %c1 = arith.constant 1 : index
    %c0_19 = arith.constant 0 : index
    %c0_20 = arith.constant 0 : index
    %48 = vector.load %arg20[%c1, %c0_19, %c0_20] : memref<4x8x8xbf16, #tpu.memory_space<vmem>>, vector<1x8x8xbf16>
    %49 = vector.shape_cast %48 : vector<1x8x8xbf16> to vector<8x8xbf16>
    %50 = vector.shape_cast %47 : vector<8x8xbf16> to vector<1x8x8xbf16>
    tpu.vector_store %arg20[%c1, %c0_19, %c0_20], %50 {strides = array<i32>} : memref<4x8x8xbf16, #tpu.memory_space<vmem>>, vector<1x8x8xbf16>,
    %51 = vector.extract_strided_slice %42 {offsets = [0, 16], sizes = [8, 8], strides = [1, 1]} : vector<8x32xbf16> to vector<8x8xbf16>
    %c2 = arith.constant 2 : index
    %c0_21 = arith.constant 0 : index
    %c0_22 = arith.constant 0 : index
    %52 = vector.load %arg20[%c2, %c0_21, %c0_22] : memref<4x8x8xbf16, #tpu.memory_space<vmem>>, vector<1x8x8xbf16>
    %53 = vector.shape_cast %52 : vector<1x8x8xbf16> to vector<8x8xbf16>
    %54 = vector.shape_cast %51 : vector<8x8xbf16> to vector<1x8x8xbf16>
    tpu.vector_store %arg20[%c2, %c0_21, %c0_22], %54 {strides = array<i32>} : memref<4x8x8xbf16, #tpu.memory_space<vmem>>, vector<1x8x8xbf16>,
    %55 = vector.extract_strided_slice %42 {offsets = [0, 24], sizes = [8, 8], strides = [1, 1]} : vector<8x32xbf16> to vector<8x8xbf16>
    %c3 = arith.constant 3 : index
    %c0_23 = arith.constant 0 : index
    %c0_24 = arith.constant 0 : index
    %56 = vector.load %arg20[%c3, %c0_23, %c0_24] : memref<4x8x8xbf16, #tpu.memory_space<vmem>>, vector<1x8x8xbf16>
    %57 = vector.shape_cast %56 : vector<1x8x8xbf16> to vector<8x8xbf16>
    %58 = vector.shape_cast %55 : vector<8x8xbf16> to vector<1x8x8xbf16>
    tpu.vector_store %arg20[%c3, %c0_23, %c0_24], %58 {strides = array<i32>} : memref<4x8x8xbf16, #tpu.memory_space<vmem>>, vector<1x8x8xbf16>,
    %c0_25 = arith.constant 0 : index
    %c0_26 = arith.constant 0 : index
    %c0_27 = arith.constant 0 : index
    %59 = vector.load %arg20[%c0_25, %c0_26, %c0_27] : memref<4x8x8xbf16, #tpu.memory_space<vmem>>, vector<4x8x8xbf16>
    %c0_28 = arith.constant 0 : index
    %c0_29 = arith.constant 0 : index
    %c0_30 = arith.constant 0 : index
    %60 = vector.load %arg18[%c0_28, %c0_29, %c0_30] : memref<4x8x8xbf16, #tpu.memory_space<vmem>>, vector<4x8x8xbf16>
    "tpu.trace_start"() <{level = 10 : i32, message = "hqd,hkd->hqk"}> : () -> ()
    %cst_31 = arith.constant dense<0.000000e+00> : vector<4x8x8xf32>
    %61 = tpu.matmul %59, %60, %cst_31 {dimension_numbers = #tpu.dot_dimension_numbers<[2], [2], [1], [1], [0, 0, 0, 1, 1, 1], [0], [0]>} : vector<4x8x8xbf16>, vector<4x8x8xbf16>, vector<4x8x8xf32> -> vector<4x8x8xf32>
    "tpu.trace_stop"() : () -> ()
    %cst_32 = arith.constant dense<0xFF800000> : vector<4x8xf32>
    %62 = vector.multi_reduction <maximumf>, %61, %cst_32 [2] : vector<4x8x8xf32> to vector<4x8xf32>
    %63 = vector.shape_cast %62 : vector<4x8xf32> to vector<4x8x1xf32>
    %64 = vector.broadcast %63 : vector<4x8x1xf32> to vector<4x8x8xf32>
    %65 = arith.subf %61, %64 : vector<4x8x8xf32>
    %66 = math.exp %65 : vector<4x8x8xf32>
    %cst_33 = arith.constant dense<0.000000e+00> : vector<4x8xf32>
    %67 = vector.multi_reduction <add>, %66, %cst_33 [2] : vector<4x8x8xf32> to vector<4x8xf32>
    %68 = vector.shape_cast %67 : vector<4x8xf32> to vector<4x8x1xf32>
    %69 = tpu.reciprocal %68 {approx = true} : vector<4x8x1xf32> -> vector<4x8x1xf32>
    %70 = vector.broadcast %69 : vector<4x8x1xf32> to vector<4x8x8xf32>
    %71 = arith.mulf %66, %70 : vector<4x8x8xf32>
    %72 = arith.truncf %71 : vector<4x8x8xf32> to vector<4x8x8xbf16>
    %c0_34 = arith.constant 0 : index
    %c0_35 = arith.constant 0 : index
    %c0_36 = arith.constant 0 : index
    %73 = vector.load %arg19[%c0_34, %c0_35, %c0_36] : memref<4x8x8xbf16, #tpu.memory_space<vmem>>, vector<4x8x8xbf16>
    "tpu.trace_start"() <{level = 10 : i32, message = "hqk,hkd->hqd"}> : () -> ()
    %cst_37 = arith.constant dense<0.000000e+00> : vector<4x8x8xf32>
    %74 = tpu.matmul %72, %73, %cst_37 {dimension_numbers = #tpu.dot_dimension_numbers<[2], [1], [1], [2], [0, 0, 0, 1, 1, 2], [0], [0]>} : vector<4x8x8xbf16>, vector<4x8x8xbf16>, vector<4x8x8xf32> -> vector<4x8x8xf32>
    "tpu.trace_stop"() : () -> ()
    %75 = arith.truncf %74 : vector<4x8x8xf32> to vector<4x8x8xbf16>
    %76 = vector.extract_strided_slice %75 {offsets = [0, 0, 0], sizes = [1, 8, 8], strides = [1, 1, 1]} : vector<4x8x8xbf16> to vector<1x8x8xbf16>
    %77 = vector.shape_cast %76 : vector<1x8x8xbf16> to vector<8x8xbf16>
    %c0_38 = arith.constant 0 : index
    %c0_39 = arith.constant 0 : index
    %78 = vector.load %arg21[%c0_38, %c0_39] : memref<8x32xbf16, #tpu.memory_space<vmem>>, vector<8x8xbf16>
    tpu.vector_store %arg21[%c0_38, %c0_39], %77 {strides = array<i32>} : memref<8x32xbf16, #tpu.memory_space<vmem>>, vector<8x8xbf16>,
    %79 = vector.extract_strided_slice %75 {offsets = [1, 0, 0], sizes = [1, 8, 8], strides = [1, 1, 1]} : vector<4x8x8xbf16> to vector<1x8x8xbf16>
    %80 = vector.shape_cast %79 : vector<1x8x8xbf16> to vector<8x8xbf16>
    %c0_40 = arith.constant 0 : index
    %c8 = arith.constant 8 : index
    %81 = vector.load %arg21[%c0_40, %c8] : memref<8x32xbf16, #tpu.memory_space<vmem>>, vector<8x8xbf16>
    tpu.vector_store %arg21[%c0_40, %c8], %80 {strides = array<i32>} : memref<8x32xbf16, #tpu.memory_space<vmem>>, vector<8x8xbf16>,
    %82 = vector.extract_strided_slice %75 {offsets = [2, 0, 0], sizes = [1, 8, 8], strides = [1, 1, 1]} : vector<4x8x8xbf16> to vector<1x8x8xbf16>
    %83 = vector.shape_cast %82 : vector<1x8x8xbf16> to vector<8x8xbf16>
    %c0_41 = arith.constant 0 : index
    %c16 = arith.constant 16 : index
    %84 = vector.load %arg21[%c0_41, %c16] : memref<8x32xbf16, #tpu.memory_space<vmem>>, vector<8x8xbf16>
    tpu.vector_store %arg21[%c0_41, %c16], %83 {strides = array<i32>} : memref<8x32xbf16, #tpu.memory_space<vmem>>, vector<8x8xbf16>,
    %85 = vector.extract_strided_slice %75 {offsets = [3, 0, 0], sizes = [1, 8, 8], strides = [1, 1, 1]} : vector<4x8x8xbf16> to vector<1x8x8xbf16>
    %86 = vector.shape_cast %85 : vector<1x8x8xbf16> to vector<8x8xbf16>
    %c0_42 = arith.constant 0 : index
    %c24 = arith.constant 24 : index
    %87 = vector.load %arg21[%c0_42, %c24] : memref<8x32xbf16, #tpu.memory_space<vmem>>, vector<8x8xbf16>
    tpu.vector_store %arg21[%c0_42, %c24], %86 {strides = array<i32>} : memref<8x32xbf16, #tpu.memory_space<vmem>>, vector<8x8xbf16>,
    %c0_43 = arith.constant 0 : index
    %c0_44 = arith.constant 0 : index
    %88 = vector.load %arg21[%c0_43, %c0_44] : memref<8x32xbf16, #tpu.memory_space<vmem>>, vector<8x32xbf16>
    %c0_45 = arith.constant 0 : index
    %c0_46 = arith.constant 0 : index
    %89 = vector.load %arg11[%c0_45, %c0_46] : memref<32x32xbf16, #tpu.memory_space<vmem>>, vector<32x32xbf16>
    %cst_47 = arith.constant dense<0.000000e+00> : vector<8x32xf32>
    %90 = tpu.matmul %88, %89, %cst_47 {dimension_numbers = #tpu.dot_dimension_numbers<[1], [0], [0], [1], [0, 0, 1, 1], [], []>} : vector<8x32xbf16>, vector<32x32xbf16>, vector<8x32xf32> -> vector<8x32xf32>
    %c0_48 = arith.constant 0 : index
    %c0_49 = arith.constant 0 : index
    %91 = vector.load %arg12[%c0_48, %c0_49] : memref<1x32xf32, #tpu.memory_space<vmem>>, vector<1x32xf32>
    %92 = vector.broadcast %91 : vector<1x32xf32> to vector<8x32xf32>
    %93 = arith.addf %90, %92 : vector<8x32xf32>
    %94 = vector.broadcast %4 : vector<1x32xf32> to vector<8x32xf32>
    %95 = arith.mulf %94, %93 : vector<8x32xf32>
    %96 = arith.addf %13, %95 : vector<8x32xf32>
    %cst_50 = arith.constant dense<0.000000e+00> : vector<8xf32>
    %97 = vector.multi_reduction <add>, %96, %cst_50 [1] : vector<8x32xf32> to vector<8xf32>
    %98 = vector.shape_cast %97 : vector<8xf32> to vector<8x1xf32>
    %cst_51 = arith.constant 3.200000e+01 : f32
    %99 = vector.broadcast %cst_51 : f32 to vector<8x1xf32>
    %100 = arith.divf %98, %99 : vector<8x1xf32>
    %101 = vector.broadcast %100 : vector<8x1xf32> to vector<8x32xf32>
    %102 = arith.subf %96, %101 : vector<8x32xf32>
    %103 = arith.mulf %102, %102 : vector<8x32xf32>
    %cst_52 = arith.constant dense<0.000000e+00> : vector<8xf32>
    %104 = vector.multi_reduction <add>, %103, %cst_52 [1] : vector<8x32xf32> to vector<8xf32>
    %105 = vector.shape_cast %104 : vector<8xf32> to vector<8x1xf32>
    %cst_53 = arith.constant 3.200000e+01 : f32
    %106 = vector.broadcast %cst_53 : f32 to vector<8x1xf32>
    %107 = arith.divf %105, %106 : vector<8x1xf32>
    %cst_54 = arith.constant 9.99999997E-7 : f32
    %108 = vector.broadcast %cst_54 : f32 to vector<8x1xf32>
    %109 = arith.addf %107, %108 : vector<8x1xf32>
    %110 = math.rsqrt %109 : vector<8x1xf32>
    %111 = vector.broadcast %110 : vector<8x1xf32> to vector<8x32xf32>
    %112 = arith.mulf %102, %111 : vector<8x32xf32>
    %cst_55 = arith.constant 1.000000e+00 : f32
    %113 = vector.broadcast %cst_55 : f32 to vector<1x32xf32>
    %114 = arith.addf %113, %6 : vector<1x32xf32>
    %115 = vector.broadcast %114 : vector<1x32xf32> to vector<8x32xf32>
    %116 = arith.mulf %112, %115 : vector<8x32xf32>
    %117 = vector.broadcast %5 : vector<1x32xf32> to vector<8x32xf32>
    %118 = arith.addf %116, %117 : vector<8x32xf32>
    %119 = arith.truncf %118 : vector<8x32xf32> to vector<8x32xbf16>
    %cst_56 = arith.constant 0.000000e+00 : f32
    %120 = vector.broadcast %cst_56 : f32 to vector<8x32xf32>
    %c0_57 = arith.constant 0 : index
    %c0_58 = arith.constant 0 : index
    %c0_59 = arith.constant 0 : index
    %121 = vector.load %arg13[%c0_57, %c0_58, %c0_59] : memref<1x32x128xbf16, #tpu.memory_space<vmem>>, vector<1x32x128xbf16>
    %122 = vector.shape_cast %121 : vector<1x32x128xbf16> to vector<32x128xbf16>
    %cst_60 = arith.constant dense<0.000000e+00> : vector<8x128xf32>
    %123 = tpu.matmul %119, %122, %cst_60 {dimension_numbers = #tpu.dot_dimension_numbers<[1], [0], [0], [1], [0, 0, 1, 1], [], []>} : vector<8x32xbf16>, vector<32x128xbf16>, vector<8x128xf32> -> vector<8x128xf32>
    %c0_61 = arith.constant 0 : index
    %c0_62 = arith.constant 0 : index
    %c0_63 = arith.constant 0 : index
    %124 = vector.load %arg14[%c0_61, %c0_62, %c0_63] : memref<1x1x128xf32, #tpu.memory_space<vmem>>, vector<1x1x128xf32>
    %125 = vector.shape_cast %124 : vector<1x1x128xf32> to vector<1x128xf32>
    %126 = vector.broadcast %125 : vector<1x128xf32> to vector<8x128xf32>
    %127 = arith.addf %123, %126 : vector<8x128xf32>
    %cst_64 = arith.constant 5.000000e-01 : f32
    %128 = vector.broadcast %cst_64 : f32 to vector<8x128xf32>
    %129 = arith.mulf %128, %127 : vector<8x128xf32>
    %cst_65 = arith.constant 4.471500e-02 : f32
    %130 = vector.broadcast %cst_65 : f32 to vector<8x128xf32>
    %131 = arith.mulf %130, %127 : vector<8x128xf32>
    %132 = arith.mulf %131, %127 : vector<8x128xf32>
    %133 = arith.mulf %132, %127 : vector<8x128xf32>
    %134 = arith.addf %127, %133 : vector<8x128xf32>
    %cst_66 = arith.constant 0.797884583 : f32
    %135 = vector.broadcast %cst_66 : f32 to vector<8x128xf32>
    %136 = arith.mulf %135, %134 : vector<8x128xf32>
    %137 = math.tanh %136 : vector<8x128xf32>
    %cst_67 = arith.constant 1.000000e+00 : f32
    %138 = vector.broadcast %cst_67 : f32 to vector<8x128xf32>
    %139 = arith.addf %138, %137 : vector<8x128xf32>
    %140 = arith.mulf %129, %139 : vector<8x128xf32>
    %141 = arith.truncf %140 : vector<8x128xf32> to vector<8x128xbf16>
    %c0_68 = arith.constant 0 : index
    %c0_69 = arith.constant 0 : index
    %c0_70 = arith.constant 0 : index
    %142 = vector.load %arg15[%c0_68, %c0_69, %c0_70] : memref<1x128x32xbf16, #tpu.memory_space<vmem>>, vector<1x128x32xbf16>
    %143 = vector.shape_cast %142 : vector<1x128x32xbf16> to vector<128x32xbf16>
    %cst_71 = arith.constant dense<0.000000e+00> : vector<8x32xf32>
    %144 = tpu.matmul %141, %143, %cst_71 {dimension_numbers = #tpu.dot_dimension_numbers<[1], [0], [0], [1], [0, 0, 1, 1], [], []>} : vector<8x128xbf16>, vector<128x32xbf16>, vector<8x32xf32> -> vector<8x32xf32>
    %145 = arith.addf %120, %144 : vector<8x32xf32>
    %c0_72 = arith.constant 0 : index
    %c0_73 = arith.constant 0 : index
    %146 = vector.load %arg16[%c0_72, %c0_73] : memref<1x32xf32, #tpu.memory_space<vmem>>, vector<1x32xf32>
    %147 = vector.broadcast %146 : vector<1x32xf32> to vector<8x32xf32>
    %148 = arith.addf %145, %147 : vector<8x32xf32>
    %149 = vector.broadcast %7 : vector<1x32xf32> to vector<8x32xf32>
    %150 = arith.mulf %149, %148 : vector<8x32xf32>
    %151 = arith.addf %96, %150 : vector<8x32xf32>
    %152 = arith.truncf %151 : vector<8x32xf32> to vector<8x32xbf16>
    %c0_74 = arith.constant 0 : index
    %c0_75 = arith.constant 0 : index
    %c0_76 = arith.constant 0 : index
    %153 = vector.load %arg17[%c0_74, %c0_75, %c0_76] : memref<1x8x32xbf16, #tpu.memory_space<vmem>>, vector<1x8x32xbf16>
    %154 = vector.shape_cast %153 : vector<1x8x32xbf16> to vector<8x32xbf16>
    %155 = vector.shape_cast %152 : vector<8x32xbf16> to vector<1x8x32xbf16>
    tpu.vector_store %arg17[%c0_74, %c0_75, %c0_76], %155 {strides = array<i32>} : memref<1x8x32xbf16, #tpu.memory_space<vmem>>, vector<1x8x32xbf16>,
    return
  }
  func.func @transform_0(%arg0: i32, %arg1: i32) -> (i32, i32, i32) {
    %c0_i32 = arith.constant 0 : i32
    %c0_i32_0 = arith.constant 0 : i32
    return %arg0, %arg1, %c0_i32 : i32, i32, i32
  }
  func.func @transform_1(%arg0: i32, %arg1: i32) -> (i32, i32, i32) {
    %c0_i32 = arith.constant 0 : i32
    %c0_i32_0 = arith.constant 0 : i32
    %c0_i32_1 = arith.constant 0 : i32
    return %arg0, %c0_i32, %c0_i32_0 : i32, i32, i32
  }
  func.func @transform_2(%arg0: i32, %arg1: i32) -> (i32, i32, i32) {
    %c0_i32 = arith.constant 0 : i32
    %c0_i32_0 = arith.constant 0 : i32
    %c0_i32_1 = arith.constant 0 : i32
    return %arg0, %c0_i32, %c0_i32_0 : i32, i32, i32
  }
  func.func @transform_3(%arg0: i32, %arg1: i32) -> (i32, i32) {
    %c0_i32 = arith.constant 0 : i32
    %c0_i32_0 = arith.constant 0 : i32
    %c0_i32_1 = arith.constant 0 : i32
    return %c0_i32, %c0_i32_0 : i32, i32
  }
  func.func @transform_4(%arg0: i32, %arg1: i32) -> (i32, i32) {
    %c0_i32 = arith.constant 0 : i32
    %c0_i32_0 = arith.constant 0 : i32
    %c0_i32_1 = arith.constant 0 : i32
    return %c0_i32, %c0_i32_0 : i32, i32
  }
  func.func @transform_5(%arg0: i32, %arg1: i32) -> (i32, i32) {
    %c0_i32 = arith.constant 0 : i32
    %c0_i32_0 = arith.constant 0 : i32
    %c0_i32_1 = arith.constant 0 : i32
    return %c0_i32, %c0_i32_0 : i32, i32
  }
  func.func @transform_6(%arg0: i32, %arg1: i32) -> (i32, i32) {
    %c0_i32 = arith.constant 0 : i32
    %c0_i32_0 = arith.constant 0 : i32
    %c0_i32_1 = arith.constant 0 : i32
    return %c0_i32, %c0_i32_0 : i32, i32
  }
  func.func @transform_7(%arg0: i32, %arg1: i32) -> (i32, i32) {
    %c0_i32 = arith.constant 0 : i32
    %c0_i32_0 = arith.constant 0 : i32
    %c0_i32_1 = arith.constant 0 : i32
    return %c0_i32, %c0_i32_0 : i32, i32
  }
  func.func @transform_8(%arg0: i32, %arg1: i32) -> (i32, i32) {
    %c0_i32 = arith.constant 0 : i32
    %c0_i32_0 = arith.constant 0 : i32
    %c0_i32_1 = arith.constant 0 : i32
    return %c0_i32, %c0_i32_0 : i32, i32
  }
  func.func @transform_9(%arg0: i32, %arg1: i32) -> (i32, i32) {
    %c0_i32 = arith.constant 0 : i32
    %c0_i32_0 = arith.constant 0 : i32
    %c0_i32_1 = arith.constant 0 : i32
    return %c0_i32, %c0_i32_0 : i32, i32
  }
  func.func @transform_10(%arg0: i32, %arg1: i32) -> (i32, i32) {
    %c0_i32 = arith.constant 0 : i32
    %c0_i32_0 = arith.constant 0 : i32
    %c0_i32_1 = arith.constant 0 : i32
    return %c0_i32, %c0_i32_0 : i32, i32
  }
  func.func @transform_11(%arg0: i32, %arg1: i32) -> (i32, i32, i32) {
    %c0_i32 = arith.constant 0 : i32
    %c0_i32_0 = arith.constant 0 : i32
    %c0_i32_1 = arith.constant 0 : i32
    %c0_i32_2 = arith.constant 0 : i32
    return %c0_i32, %c0_i32_0, %c0_i32_1 : i32, i32, i32
  }
  func.func @transform_12(%arg0: i32, %arg1: i32) -> (i32, i32, i32) {
    %c0_i32 = arith.constant 0 : i32
    %c0_i32_0 = arith.constant 0 : i32
    %c0_i32_1 = arith.constant 0 : i32
    %c0_i32_2 = arith.constant 0 : i32
    return %c0_i32, %c0_i32_0, %c0_i32_1 : i32, i32, i32
  }
  func.func @transform_13(%arg0: i32, %arg1: i32) -> (i32, i32, i32) {
    %c0_i32 = arith.constant 0 : i32
    %c0_i32_0 = arith.constant 0 : i32
    %c0_i32_1 = arith.constant 0 : i32
    %c0_i32_2 = arith.constant 0 : i32
    return %c0_i32, %c0_i32_0, %c0_i32_1 : i32, i32, i32
  }
  func.func @transform_14(%arg0: i32, %arg1: i32) -> (i32, i32) {
    %c0_i32 = arith.constant 0 : i32
    %c0_i32_0 = arith.constant 0 : i32
    %c0_i32_1 = arith.constant 0 : i32
    return %c0_i32, %c0_i32_0 : i32, i32
  }
  func.func @transform_15(%arg0: i32, %arg1: i32) -> (i32, i32, i32) {
    %c0_i32 = arith.constant 0 : i32
    %c0_i32_0 = arith.constant 0 : i32
    return %arg0, %arg1, %c0_i32 : i32, i32, i32
  }
}

module attributes {stable_mosaic.version = 11 : i64} {
  func.func @_dit_block_kernel(%arg0: i32, %arg1: i32, %arg2: memref<1x8x32xbf16, #tpu.memory_space<vmem>>, %arg3: memref<1x8x32xbf16, #tpu.memory_space<vmem>>, %arg4: memref<1x6x32xf32, #tpu.memory_space<vmem>>, %arg5: memref<32x32xbf16, #tpu.memory_space<vmem>>, %arg6: memref<1x32xf32, #tpu.memory_space<vmem>>, %arg7: memref<32x32xbf16, #tpu.memory_space<vmem>>, %arg8: memref<1x32xf32, #tpu.memory_space<vmem>>, %arg9: memref<32x32xbf16, #tpu.memory_space<vmem>>, %arg10: memref<1x32xf32, #tpu.memory_space<vmem>>, %arg11: memref<32x32xbf16, #tpu.memory_space<vmem>>, %arg12: memref<1x32xf32, #tpu.memory_space<vmem>>, %arg13: memref<1x32x128xbf16, #tpu.memory_space<vmem>>, %arg14: memref<1x1x128xf32, #tpu.memory_space<vmem>>, %arg15: memref<1x128x32xbf16, #tpu.memory_space<vmem>>, %arg16: memref<1x32xf32, #tpu.memory_space<vmem>>, %arg17: memref<1x8x32xbf16, #tpu.memory_space<vmem>>, %arg18: memref<4x8x8xbf16, #tpu.memory_space<vmem>>, %arg19: memref<4x8x8xbf16, #tpu.memory_space<vmem>>, %arg20: memref<4x8x8xbf16, #tpu.memory_space<vmem>>, %arg21: memref<8x32xbf16, #tpu.memory_space<vmem>>) attributes {dimension_semantics = [#tpu.dimension_semantics<parallel>, #tpu.dimension_semantics<arbitrary>], iteration_bounds = array<i64: 2, 1>, scalar_prefetch = 0 : i64, scratch_operands = 4 : i64, tpu.core_type = #tpu.core_type<tc>, window_params = [{transform_indices = @transform_0, window_bounds = array<i64: 1, 8, 32>}, {transform_indices = @transform_1, window_bounds = array<i64: 1, 8, 32>}, {transform_indices = @transform_2, window_bounds = array<i64: 1, 6, 32>}, {pipeline_mode = #tpu.pipeline_mode<synchronous>, transform_indices = @transform_3, window_bounds = array<i64: 32, 32>}, {pipeline_mode = #tpu.pipeline_mode<synchronous>, transform_indices = @transform_4, window_bounds = array<i64: 1, 32>}, {pipeline_mode = #tpu.pipeline_mode<synchronous>, transform_indices = @transform_5, window_bounds = array<i64: 32, 32>}, {pipeline_mode = #tpu.pipeline_mode<synchronous>, transform_indices = @transform_6, window_bounds = array<i64: 1, 32>}, {pipeline_mode = #tpu.pipeline_mode<synchronous>, transform_indices = @transform_7, window_bounds = array<i64: 32, 32>}, {pipeline_mode = #tpu.pipeline_mode<synchronous>, transform_indices = @transform_8, window_bounds = array<i64: 1, 32>}, {pipeline_mode = #tpu.pipeline_mode<synchronous>, transform_indices = @transform_9, window_bounds = array<i64: 32, 32>}, {pipeline_mode = #tpu.pipeline_mode<synchronous>, transform_indices = @transform_10, window_bounds = array<i64: 1, 32>}, {pipeline_mode = #tpu.pipeline_mode<synchronous>, transform_indices = @transform_11, window_bounds = array<i64: 1, 32, 128>}, {pipeline_mode = #tpu.pipeline_mode<synchronous>, transform_indices = @transform_12, window_bounds = array<i64: 1, 1, 128>}, {pipeline_mode = #tpu.pipeline_mode<synchronous>, transform_indices = @transform_13, window_bounds = array<i64: 1, 128, 32>}, {pipeline_mode = #tpu.pipeline_mode<synchronous>, transform_indices = @transform_14, window_bounds = array<i64: 1, 32>}, {transform_indices = @transform_15, window_bounds = array<i64: 1, 8, 32>}]} {
    %c0 = arith.constant 0 : index
    %c0_0 = arith.constant 0 : index
    %c0_1 = arith.constant 0 : index
    %0 = vector.load %arg4[%c0, %c0_0, %c0_1] : memref<1x6x32xf32, #tpu.memory_space<vmem>>, vector<1x6x32xf32>
    %1 = vector.shape_cast %0 : vector<1x6x32xf32> to vector<6x32xf32>
    %2 = vector.extract_strided_slice %1 {offsets = [0, 0], sizes = [1, 32], strides = [1, 1]} : vector<6x32xf32> to vector<1x32xf32>
    %3 = vector.extract_strided_slice %1 {offsets = [1, 0], sizes = [1, 32], strides = [1, 1]} : vector<6x32xf32> to vector<1x32xf32>
    %4 = vector.extract_strided_slice %1 {offsets = [2, 0], sizes = [1, 32], strides = [1, 1]} : vector<6x32xf32> to vector<1x32xf32>
    %5 = vector.extract_strided_slice %1 {offsets = [3, 0], sizes = [1, 32], strides = [1, 1]} : vector<6x32xf32> to vector<1x32xf32>
    %6 = vector.extract_strided_slice %1 {offsets = [4, 0], sizes = [1, 32], strides = [1, 1]} : vector<6x32xf32> to vector<1x32xf32>
    %7 = vector.extract_strided_slice %1 {offsets = [5, 0], sizes = [1, 32], strides = [1, 1]} : vector<6x32xf32> to vector<1x32xf32>
    %c0_i32 = arith.constant 0 : i32
    %8 = arith.cmpi eq, %arg1, %c0_i32 : i32
    %9 = arith.extui %8 : i1 to i32
    %c0_i32_2 = arith.constant 0 : i32
    %10 = arith.cmpi ne, %9, %c0_i32_2 : i32
    scf.if %10 {
      %c0_77 = arith.constant 0 : index
      %c0_78 = arith.constant 0 : index
      %c0_79 = arith.constant 0 : index
      %156 = vector.load %arg3[%c0_77, %c0_78, %c0_79] : memref<1x8x32xbf16, #tpu.memory_space<vmem>>, vector<1x8x32xbf16>
      %157 = vector.shape_cast %156 : vector<1x8x32xbf16> to vector<8x32xbf16>
      %158 = arith.extf %157 : vector<8x32xbf16> to vector<8x32xf32>
      %cst_80 = arith.constant dense<0.000000e+00> : vector<8xf32>
      %159 = vector.multi_reduction <add>, %158, %cst_80 [1] : vector<8x32xf32> to vector<8xf32>
      %160 = vector.shape_cast %159 : vector<8xf32> to vector<8x1xf32>
      %cst_81 = arith.constant 3.200000e+01 : f32
      %161 = vector.broadcast %cst_81 : f32 to vector<8x1xf32>
      %162 = arith.divf %160, %161 : vector<8x1xf32>
      %163 = vector.broadcast %162 : vector<8x1xf32> to vector<8x32xf32>
      %164 = arith.subf %158, %163 : vector<8x32xf32>
      %165 = arith.mulf %164, %164 : vector<8x32xf32>
      %cst_82 = arith.constant dense<0.000000e+00> : vector<8xf32>
      %166 = vector.multi_reduction <add>, %165, %cst_82 [1] : vector<8x32xf32> to vector<8xf32>
      %167 = vector.shape_cast %166 : vector<8xf32> to vector<8x1xf32>
      %cst_83 = arith.constant 3.200000e+01 : f32
      %168 = vector.broadcast %cst_83 : f32 to vector<8x1xf32>
      %169 = arith.divf %167, %168 : vector<8x1xf32>
      %cst_84 = arith.constant 9.99999997E-7 : f32
      %170 = vector.broadcast %cst_84 : f32 to vector<8x1xf32>
      %171 = arith.addf %169, %170 : vector<8x1xf32>
      %172 = math.rsqrt %171 : vector<8x1xf32>
      %173 = vector.broadcast %172 : vector<8x1xf32> to vector<8x32xf32>
      %174 = arith.mulf %164, %173 : vector<8x32xf32>
      %cst_85 = arith.constant 1.000000e+00 : f32
      %175 = vector.broadcast %cst_85 : f32 to vector<1x32xf32>
      %176 = arith.addf %175, %3 : vector<1x32xf32>
      %177 = vector.broadcast %176 : vector<1x32xf32> to vector<8x32xf32>
      %178 = arith.mulf %174, %177 : vector<8x32xf32>
      %179 = vector.broadcast %2 : vector<1x32xf32> to vector<8x32xf32>
      %180 = arith.addf %178, %179 : vector<8x32xf32>
      %181 = arith.truncf %180 : vector<8x32xf32> to vector<8x32xbf16>
      %c0_86 = arith.constant 0 : index
      %c0_87 = arith.constant 0 : index
      %182 = vector.load %arg7[%c0_86, %c0_87] : memref<32x32xbf16, #tpu.memory_space<vmem>>, vector<32x32xbf16>
      %cst_88 = arith.constant dense<0.000000e+00> : vector<8x32xf32>
      %183 = tpu.matmul %181, %182, %cst_88 {dimension_numbers = #tpu.dot_dimension_numbers<[1], [0], [0], [1], [0, 0, 1, 1], [], []>} : vector<8x32xbf16>, vector<32x32xbf16>, vector<8x32xf32> -> vector<8x32xf32>
      %c0_89 = arith.constant 0 : index
      %c0_90 = arith.constant 0 : index
      %184 = vector.load %arg8[%c0_89, %c0_90] : memref<1x32xf32, #tpu.memory_space<vmem>>, vector<1x32xf32>
      %185 = vector.broadcast %184 : vector<1x32xf32> to vector<8x32xf32>
      %186 = arith.addf %183, %185 : vector<8x32xf32>
      %187 = arith.truncf %186 : vector<8x32xf32> to vector<8x32xbf16>
      %c0_91 = arith.constant 0 : index
      %c0_92 = arith.constant 0 : index
      %188 = vector.load %arg9[%c0_91, %c0_92] : memref<32x32xbf16, #tpu.memory_space<vmem>>, vector<32x32xbf16>
      %cst_93 = arith.constant dense<0.000000e+00> : vector<8x32xf32>
      %189 = tpu.matmul %181, %188, %cst_93 {dimension_numbers = #tpu.dot_dimension_numbers<[1], [0], [0], [1], [0, 0, 1, 1], [], []>} : vector<8x32xbf16>, vector<32x32xbf16>, vector<8x32xf32> -> vector<8x32xf32>
      %c0_94 = arith.constant 0 : index
      %c0_95 = arith.constant 0 : index
      %190 = vector.load %arg10[%c0_94, %c0_95] : memref<1x32xf32, #tpu.memory_space<vmem>>, vector<1x32xf32>
      %191 = vector.broadcast %190 : vector<1x32xf32> to vector<8x32xf32>
      %192 = arith.addf %189, %191 : vector<8x32xf32>
      %193 = arith.truncf %192 : vector<8x32xf32> to vector<8x32xbf16>
      %194 = vector.extract_strided_slice %187 {offsets = [0, 0], sizes = [8, 8], strides = [1, 1]} : vector<8x32xbf16> to vector<8x8xbf16>
      %c0_96 = arith.constant 0 : index
      %c0_97 = arith.constant 0 : index
      %c0_98 = arith.constant 0 : index
      %195 = vector.load %arg18[%c0_96, %c0_97, %c0_98] : memref<4x8x8xbf16, #tpu.memory_space<vmem>>, vector<1x8x8xbf16>
      %196 = vector.shape_cast %195 : vector<1x8x8xbf16> to vector<8x8xbf16>
      %197 = vector.shape_cast %194 : vector<8x8xbf16> to vector<1x8x8xbf16>
      tpu.vector_store %arg18[%c0_96, %c0_97, %c0_98], %197 {strides = array<i32>} : memref<4x8x8xbf16, #tpu.memory_space<vmem>>, vector<1x8x8xbf16>,
      %198 = vector.extract_strided_slice %193 {offsets = [0, 0], sizes = [8, 8], strides = [1, 1]} : vector<8x32xbf16> to vector<8x8xbf16>
      %c0_99 = arith.constant 0 : index
      %c0_100 = arith.constant 0 : index
      %c0_101 = arith.constant 0 : index
      %199 = vector.load %arg19[%c0_99, %c0_100, %c0_101] : memref<4x8x8xbf16, #tpu.memory_space<vmem>>, vector<1x8x8xbf16>
      %200 = vector.shape_cast %199 : vector<1x8x8xbf16> to vector<8x8xbf16>
      %201 = vector.shape_cast %198 : vector<8x8xbf16> to vector<1x8x8xbf16>
      tpu.vector_store %arg19[%c0_99, %c0_100, %c0_101], %201 {strides = array<i32>} : memref<4x8x8xbf16, #tpu.memory_space<vmem>>, vector<1x8x8xbf16>,
      %202 = vector.extract_strided_slice %187 {offsets = [0, 8], sizes = [8, 8], strides = [1, 1]} : vector<8x32xbf16> to vector<8x8xbf16>
      %c1_102 = arith.constant 1 : index
      %c0_103 = arith.constant 0 : index
      %c0_104 = arith.constant 0 : index
      %203 = vector.load %arg18[%c1_102, %c0_103, %c0_104] : memref<4x8x8xbf16, #tpu.memory_space<vmem>>, vector<1x8x8xbf16>
      %204 = vector.shape_cast %203 : vector<1x8x8xbf16> to vector<8x8xbf16>
      %205 = vector.shape_cast %202 : vector<8x8xbf16> to vector<1x8x8xbf16>
      tpu.vector_store %arg18[%c1_102, %c0_103, %c0_104], %205 {strides = array<i32>} : memref<4x8x8xbf16, #tpu.memory_space<vmem>>, vector<1x8x8xbf16>,
      %206 = vector.extract_strided_slice %193 {offsets = [0, 8], sizes = [8, 8], strides = [1, 1]} : vector<8x32xbf16> to vector<8x8xbf16>
      %c1_105 = arith.constant 1 : index
      %c0_106 = arith.constant 0 : index
      %c0_107 = arith.constant 0 : index
      %207 = vector.load %arg19[%c1_105, %c0_106, %c0_107] : memref<4x8x8xbf16, #tpu.memory_space<vmem>>, vector<1x8x8xbf16>
      %208 = vector.shape_cast %207 : vector<1x8x8xbf16> to vector<8x8xbf16>
      %209 = vector.shape_cast %206 : vector<8x8xbf16> to vector<1x8x8xbf16>
      tpu.vector_store %arg19[%c1_105, %c0_106, %c0_107], %209 {strides = array<i32>} : memref<4x8x8xbf16, #tpu.memory_space<vmem>>, vector<1x8x8xbf16>,
      %210 = vector.extract_strided_slice %187 {offsets = [0, 16], sizes = [8, 8], strides = [1, 1]} : vector<8x32xbf16> to vector<8x8xbf16>
      %c2_108 = arith.constant 2 : index
      %c0_109 = arith.constant 0 : index
      %c0_110 = arith.constant 0 : index
      %211 = vector.load %arg18[%c2_108, %c0_109, %c0_110] : memref<4x8x8xbf16, #tpu.memory_space<vmem>>, vector<1x8x8xbf16>
      %212 = vector.shape_cast %211 : vector<1x8x8xbf16> to vector<8x8xbf16>
      %213 = vector.shape_cast %210 : vector<8x8xbf16> to vector<1x8x8xbf16>
      tpu.vector_store %arg18[%c2_108, %c0_109, %c0_110], %213 {strides = array<i32>} : memref<4x8x8xbf16, #tpu.memory_space<vmem>>, vector<1x8x8xbf16>,
      %214 = vector.extract_strided_slice %193 {offsets = [0, 16], sizes = [8, 8], strides = [1, 1]} : vector<8x32xbf16> to vector<8x8xbf16>
      %c2_111 = arith.constant 2 : index
      %c0_112 = arith.constant 0 : index
      %c0_113 = arith.constant 0 : index
      %215 = vector.load %arg19[%c2_111, %c0_112, %c0_113] : memref<4x8x8xbf16, #tpu.memory_space<vmem>>, vector<1x8x8xbf16>
      %216 = vector.shape_cast %215 : vector<1x8x8xbf16> to vector<8x8xbf16>
      %217 = vector.shape_cast %214 : vector<8x8xbf16> to vector<1x8x8xbf16>
      tpu.vector_store %arg19[%c2_111, %c0_112, %c0_113], %217 {strides = array<i32>} : memref<4x8x8xbf16, #tpu.memory_space<vmem>>, vector<1x8x8xbf16>,
      %218 = vector.extract_strided_slice %187 {offsets = [0, 24], sizes = [8, 8], strides = [1, 1]} : vector<8x32xbf16> to vector<8x8xbf16>
      %c3_114 = arith.constant 3 : index
      %c0_115 = arith.constant 0 : index
      %c0_116 = arith.constant 0 : index
      %219 = vector.load %arg18[%c3_114, %c0_115, %c0_116] : memref<4x8x8xbf16, #tpu.memory_space<vmem>>, vector<1x8x8xbf16>
      %220 = vector.shape_cast %219 : vector<1x8x8xbf16> to vector<8x8xbf16>
      %221 = vector.shape_cast %218 : vector<8x8xbf16> to vector<1x8x8xbf16>
      tpu.vector_store %arg18[%c3_114, %c0_115, %c0_116], %221 {strides = array<i32>} : memref<4x8x8xbf16, #tpu.memory_space<vmem>>, vector<1x8x8xbf16>,
      %222 = vector.extract_strided_slice %193 {offsets = [0, 24], sizes = [8, 8], strides = [1, 1]} : vector<8x32xbf16> to vector<8x8xbf16>
      %c3_117 = arith.constant 3 : index
      %c0_118 = arith.constant 0 : index
      %c0_119 = arith.constant 0 : index
      %223 = vector.load %arg19[%c3_117, %c0_118, %c0_119] : memref<4x8x8xbf16, #tpu.memory_space<vmem>>, vector<1x8x8xbf16>
      %224 = vector.shape_cast %223 : vector<1x8x8xbf16> to vector<8x8xbf16>
      %225 = vector.shape_cast %222 : vector<8x8xbf16> to vector<1x8x8xbf16>
      tpu.vector_store %arg19[%c3_117, %c0_118, %c0_119], %225 {strides = array<i32>} : memref<4x8x8xbf16, #tpu.memory_space<vmem>>, vector<1x8x8xbf16>,
    } else {
    }
    %c0_3 = arith.constant 0 : index
    %c0_4 = arith.constant 0 : index
    %c0_5 = arith.constant 0 : index
    %11 = vector.load %arg2[%c0_3, %c0_4, %c0_5] : memref<1x8x32xbf16, #tpu.memory_space<vmem>>, vector<1x8x32xbf16>
    %12 = vector.shape_cast %11 : vector<1x8x32xbf16> to vector<8x32xbf16>
    %13 = arith.extf %12 : vector<8x32xbf16> to vector<8x32xf32>
    %cst = arith.constant dense<0.000000e+00> : vector<8xf32>
    %14 = vector.multi_reduction <add>, %13, %cst [1] : vector<8x32xf32> to vector<8xf32>
    %15 = vector.shape_cast %14 : vector<8xf32> to vector<8x1xf32>
    %cst_6 = arith.constant 3.200000e+01 : f32
    %16 = vector.broadcast %cst_6 : f32 to vector<8x1xf32>
    %17 = arith.divf %15, %16 : vector<8x1xf32>
    %18 = vector.broadcast %17 : vector<8x1xf32> to vector<8x32xf32>
    %19 = arith.subf %13, %18 : vector<8x32xf32>
    %20 = arith.mulf %19, %19 : vector<8x32xf32>
    %cst_7 = arith.constant dense<0.000000e+00> : vector<8xf32>
    %21 = vector.multi_reduction <add>, %20, %cst_7 [1] : vector<8x32xf32> to vector<8xf32>
    %22 = vector.shape_cast %21 : vector<8xf32> to vector<8x1xf32>
    %cst_8 = arith.constant 3.200000e+01 : f32
    %23 = vector.broadcast %cst_8 : f32 to vector<8x1xf32>
    %24 = arith.divf %22, %23 : vector<8x1xf32>
    %cst_9 = arith.constant 9.99999997E-7 : f32
    %25 = vector.broadcast %cst_9 : f32 to vector<8x1xf32>
    %26 = arith.addf %24, %25 : vector<8x1xf32>
    %27 = math.rsqrt %26 : vector<8x1xf32>
    %28 = vector.broadcast %27 : vector<8x1xf32> to vector<8x32xf32>
    %29 = arith.mulf %19, %28 : vector<8x32xf32>
    %cst_10 = arith.constant 1.000000e+00 : f32
    %30 = vector.broadcast %cst_10 : f32 to vector<1x32xf32>
    %31 = arith.addf %30, %3 : vector<1x32xf32>
    %32 = vector.broadcast %31 : vector<1x32xf32> to vector<8x32xf32>
    %33 = arith.mulf %29, %32 : vector<8x32xf32>
    %34 = vector.broadcast %2 : vector<1x32xf32> to vector<8x32xf32>
    %35 = arith.addf %33, %34 : vector<8x32xf32>
    %36 = arith.truncf %35 : vector<8x32xf32> to vector<8x32xbf16>
    %c0_11 = arith.constant 0 : index
    %c0_12 = arith.constant 0 : index
    %37 = vector.load %arg5[%c0_11, %c0_12] : memref<32x32xbf16, #tpu.memory_space<vmem>>, vector<32x32xbf16>
    %cst_13 = arith.constant dense<0.000000e+00> : vector<8x32xf32>
    %38 = tpu.matmul %36, %37, %cst_13 {dimension_numbers = #tpu.dot_dimension_numbers<[1], [0], [0], [1], [0, 0, 1, 1], [], []>} : vector<8x32xbf16>, vector<32x32xbf16>, vector<8x32xf32> -> vector<8x32xf32>
    %c0_14 = arith.constant 0 : index
    %c0_15 = arith.constant 0 : index
    %39 = vector.load %arg6[%c0_14, %c0_15] : memref<1x32xf32, #tpu.memory_space<vmem>>, vector<1x32xf32>
    %40 = vector.broadcast %39 : vector<1x32xf32> to vector<8x32xf32>
    %41 = arith.addf %38, %40 : vector<8x32xf32>
    %42 = arith.truncf %41 : vector<8x32xf32> to vector<8x32xbf16>
    %43 = vector.extract_strided_slice %42 {offsets = [0, 0], sizes = [8, 8], strides = [1, 1]} : vector<8x32xbf16> to vector<8x8xbf16>
    %c0_16 = arith.constant 0 : index
    %c0_17 = arith.constant 0 : index
    %c0_18 = arith.constant 0 : index
    %44 = vector.load %arg20[%c0_16, %c0_17, %c0_18] : memref<4x8x8xbf16, #tpu.memory_space<vmem>>, vector<1x8x8xbf16>
    %45 = vector.shape_cast %44 : vector<1x8x8xbf16> to vector<8x8xbf16>
    %46 = vector.shape_cast %43 : vector<8x8xbf16> to vector<1x8x8xbf16>
    tpu.vector_store %arg20[%c0_16, %c0_17, %c0_18], %46 {strides = array<i32>} : memref<4x8x8xbf16, #tpu.memory_space<vmem>>, vector<1x8x8xbf16>,
    %47 = vector.extract_strided_slice %42 {offsets = [0, 8], sizes = [8, 8], strides = [1, 1]} : vector<8x32xbf16> to vector<8x8xbf16>
    %c1 = arith.constant 1 : index
    %c0_19 = arith.constant 0 : index
    %c0_20 = arith.constant 0 : index
    %48 = vector.load %arg20[%c1, %c0_19, %c0_20] : memref<4x8x8xbf16, #tpu.memory_space<vmem>>, vector<1x8x8xbf16>
    %49 = vector.shape_cast %48 : vector<1x8x8xbf16> to vector<8x8xbf16>
    %50 = vector.shape_cast %47 : vector<8x8xbf16> to vector<1x8x8xbf16>
    tpu.vector_store %arg20[%c1, %c0_19, %c0_20], %50 {strides = array<i32>} : memref<4x8x8xbf16, #tpu.memory_space<vmem>>, vector<1x8x8xbf16>,
    %51 = vector.extract_strided_slice %42 {offsets = [0, 16], sizes = [8, 8], strides = [1, 1]} : vector<8x32xbf16> to vector<8x8xbf16>
    %c2 = arith.constant 2 : index
    %c0_21 = arith.constant 0 : index
    %c0_22 = arith.constant 0 : index
    %52 = vector.load %arg20[%c2, %c0_21, %c0_22] : memref<4x8x8xbf16, #tpu.memory_space<vmem>>, vector<1x8x8xbf16>
    %53 = vector.shape_cast %52 : vector<1x8x8xbf16> to vector<8x8xbf16>
    %54 = vector.shape_cast %51 : vector<8x8xbf16> to vector<1x8x8xbf16>
    tpu.vector_store %arg20[%c2, %c0_21, %c0_22], %54 {strides = array<i32>} : memref<4x8x8xbf16, #tpu.memory_space<vmem>>, vector<1x8x8xbf16>,
    %55 = vector.extract_strided_slice %42 {offsets = [0, 24], sizes = [8, 8], strides = [1, 1]} : vector<8x32xbf16> to vector<8x8xbf16>
    %c3 = arith.constant 3 : index
    %c0_23 = arith.constant 0 : index
    %c0_24 = arith.constant 0 : index
    %56 = vector.load %arg20[%c3, %c0_23, %c0_24] : memref<4x8x8xbf16, #tpu.memory_space<vmem>>, vector<1x8x8xbf16>
    %57 = vector.shape_cast %56 : vector<1x8x8xbf16> to vector<8x8xbf16>
    %58 = vector.shape_cast %55 : vector<8x8xbf16> to vector<1x8x8xbf16>
    tpu.vector_store %arg20[%c3, %c0_23, %c0_24], %58 {strides = array<i32>} : memref<4x8x8xbf16, #tpu.memory_space<vmem>>, vector<1x8x8xbf16>,
    %c0_25 = arith.constant 0 : index
    %c0_26 = arith.constant 0 : index
    %c0_27 = arith.constant 0 : index
    %59 = vector.load %arg20[%c0_25, %c0_26, %c0_27] : memref<4x8x8xbf16, #tpu.memory_space<vmem>>, vector<4x8x8xbf16>
    %c0_28 = arith.constant 0 : index
    %c0_29 = arith.constant 0 : index
    %c0_30 = arith.constant 0 : index
    %60 = vector.load %arg18[%c0_28, %c0_29, %c0_30] : memref<4x8x8xbf16, #tpu.memory_space<vmem>>, vector<4x8x8xbf16>
    "tpu.trace_start"() <{level = 10 : i32, message = "hqd,hkd->hqk"}> : () -> ()
    %cst_31 = arith.constant dense<0.000000e+00> : vector<4x8x8xf32>
    %61 = tpu.matmul %59, %60, %cst_31 {dimension_numbers = #tpu.dot_dimension_numbers<[2], [2], [1], [1], [0, 0, 0, 1, 1, 1], [0], [0]>} : vector<4x8x8xbf16>, vector<4x8x8xbf16>, vector<4x8x8xf32> -> vector<4x8x8xf32>
    "tpu.trace_stop"() : () -> ()
    %cst_32 = arith.constant dense<0xFF800000> : vector<4x8xf32>
    %62 = vector.multi_reduction <maximumf>, %61, %cst_32 [2] : vector<4x8x8xf32> to vector<4x8xf32>
    %63 = vector.shape_cast %62 : vector<4x8xf32> to vector<4x8x1xf32>
    %64 = vector.broadcast %63 : vector<4x8x1xf32> to vector<4x8x8xf32>
    %65 = arith.subf %61, %64 : vector<4x8x8xf32>
    %66 = math.exp %65 : vector<4x8x8xf32>
    %cst_33 = arith.constant dense<0.000000e+00> : vector<4x8xf32>
    %67 = vector.multi_reduction <add>, %66, %cst_33 [2] : vector<4x8x8xf32> to vector<4x8xf32>
    %68 = vector.shape_cast %67 : vector<4x8xf32> to vector<4x8x1xf32>
    %69 = tpu.reciprocal %68 {approx = true} : vector<4x8x1xf32> -> vector<4x8x1xf32>
    %70 = vector.broadcast %69 : vector<4x8x1xf32> to vector<4x8x8xf32>
    %71 = arith.mulf %66, %70 : vector<4x8x8xf32>
    %72 = arith.truncf %71 : vector<4x8x8xf32> to vector<4x8x8xbf16>
    %c0_34 = arith.constant 0 : index
    %c0_35 = arith.constant 0 : index
    %c0_36 = arith.constant 0 : index
    %73 = vector.load %arg19[%c0_34, %c0_35, %c0_36] : memref<4x8x8xbf16, #tpu.memory_space<vmem>>, vector<4x8x8xbf16>
    "tpu.trace_start"() <{level = 10 : i32, message = "hqk,hkd->hqd"}> : () -> ()
    %cst_37 = arith.constant dense<0.000000e+00> : vector<4x8x8xf32>
    %74 = tpu.matmul %72, %73, %cst_37 {dimension_numbers = #tpu.dot_dimension_numbers<[2], [1], [1], [2], [0, 0, 0, 1, 1, 2], [0], [0]>} : vector<4x8x8xbf16>, vector<4x8x8xbf16>, vector<4x8x8xf32> -> vector<4x8x8xf32>
    "tpu.trace_stop"() : () -> ()
    %75 = arith.truncf %74 : vector<4x8x8xf32> to vector<4x8x8xbf16>
    %76 = vector.extract_strided_slice %75 {offsets = [0, 0, 0], sizes = [1, 8, 8], strides = [1, 1, 1]} : vector<4x8x8xbf16> to vector<1x8x8xbf16>
    %77 = vector.shape_cast %76 : vector<1x8x8xbf16> to vector<8x8xbf16>
    %c0_38 = arith.constant 0 : index
    %c0_39 = arith.constant 0 : index
    %78 = vector.load %arg21[%c0_38, %c0_39] : memref<8x32xbf16, #tpu.memory_space<vmem>>, vector<8x8xbf16>
    tpu.vector_store %arg21[%c0_38, %c0_39], %77 {strides = array<i32>} : memref<8x32xbf16, #tpu.memory_space<vmem>>, vector<8x8xbf16>,
    %79 = vector.extract_strided_slice %75 {offsets = [1, 0, 0], sizes = [1, 8, 8], strides = [1, 1, 1]} : vector<4x8x8xbf16> to vector<1x8x8xbf16>
    %80 = vector.shape_cast %79 : vector<1x8x8xbf16> to vector<8x8xbf16>
    %c0_40 = arith.constant 0 : index
    %c8 = arith.constant 8 : index
    %81 = vector.load %arg21[%c0_40, %c8] : memref<8x32xbf16, #tpu.memory_space<vmem>>, vector<8x8xbf16>
    tpu.vector_store %arg21[%c0_40, %c8], %80 {strides = array<i32>} : memref<8x32xbf16, #tpu.memory_space<vmem>>, vector<8x8xbf16>,
    %82 = vector.extract_strided_slice %75 {offsets = [2, 0, 0], sizes = [1, 8, 8], strides = [1, 1, 1]} : vector<4x8x8xbf16> to vector<1x8x8xbf16>
    %83 = vector.shape_cast %82 : vector<1x8x8xbf16> to vector<8x8xbf16>
    %c0_41 = arith.constant 0 : index
    %c16 = arith.constant 16 : index
    %84 = vector.load %arg21[%c0_41, %c16] : memref<8x32xbf16, #tpu.memory_space<vmem>>, vector<8x8xbf16>
    tpu.vector_store %arg21[%c0_41, %c16], %83 {strides = array<i32>} : memref<8x32xbf16, #tpu.memory_space<vmem>>, vector<8x8xbf16>,
    %85 = vector.extract_strided_slice %75 {offsets = [3, 0, 0], sizes = [1, 8, 8], strides = [1, 1, 1]} : vector<4x8x8xbf16> to vector<1x8x8xbf16>
    %86 = vector.shape_cast %85 : vector<1x8x8xbf16> to vector<8x8xbf16>
    %c0_42 = arith.constant 0 : index
    %c24 = arith.constant 24 : index
    %87 = vector.load %arg21[%c0_42, %c24] : memref<8x32xbf16, #tpu.memory_space<vmem>>, vector<8x8xbf16>
    tpu.vector_store %arg21[%c0_42, %c24], %86 {strides = array<i32>} : memref<8x32xbf16, #tpu.memory_space<vmem>>, vector<8x8xbf16>,
    %c0_43 = arith.constant 0 : index
    %c0_44 = arith.constant 0 : index
    %88 = vector.load %arg21[%c0_43, %c0_44] : memref<8x32xbf16, #tpu.memory_space<vmem>>, vector<8x32xbf16>
    %c0_45 = arith.constant 0 : index
    %c0_46 = arith.constant 0 : index
    %89 = vector.load %arg11[%c0_45, %c0_46] : memref<32x32xbf16, #tpu.memory_space<vmem>>, vector<32x32xbf16>
    %cst_47 = arith.constant dense<0.000000e+00> : vector<8x32xf32>
    %90 = tpu.matmul %88, %89, %cst_47 {dimension_numbers = #tpu.dot_dimension_numbers<[1], [0], [0], [1], [0, 0, 1, 1], [], []>} : vector<8x32xbf16>, vector<32x32xbf16>, vector<8x32xf32> -> vector<8x32xf32>
    %c0_48 = arith.constant 0 : index
    %c0_49 = arith.constant 0 : index
    %91 = vector.load %arg12[%c0_48, %c0_49] : memref<1x32xf32, #tpu.memory_space<vmem>>, vector<1x32xf32>
    %92 = vector.broadcast %91 : vector<1x32xf32> to vector<8x32xf32>
    %93 = arith.addf %90, %92 : vector<8x32xf32>
    %94 = vector.broadcast %4 : vector<1x32xf32> to vector<8x32xf32>
    %95 = arith.mulf %94, %93 : vector<8x32xf32>
    %96 = arith.addf %13, %95 : vector<8x32xf32>
    %cst_50 = arith.constant dense<0.000000e+00> : vector<8xf32>
    %97 = vector.multi_reduction <add>, %96, %cst_50 [1] : vector<8x32xf32> to vector<8xf32>
    %98 = vector.shape_cast %97 : vector<8xf32> to vector<8x1xf32>
    %cst_51 = arith.constant 3.200000e+01 : f32
    %99 = vector.broadcast %cst_51 : f32 to vector<8x1xf32>
    %100 = arith.divf %98, %99 : vector<8x1xf32>
    %101 = vector.broadcast %100 : vector<8x1xf32> to vector<8x32xf32>
    %102 = arith.subf %96, %101 : vector<8x32xf32>
    %103 = arith.mulf %102, %102 : vector<8x32xf32>
    %cst_52 = arith.constant dense<0.000000e+00> : vector<8xf32>
    %104 = vector.multi_reduction <add>, %103, %cst_52 [1] : vector<8x32xf32> to vector<8xf32>
    %105 = vector.shape_cast %104 : vector<8xf32> to vector<8x1xf32>
    %cst_53 = arith.constant 3.200000e+01 : f32
    %106 = vector.broadcast %cst_53 : f32 to vector<8x1xf32>
    %107 = arith.divf %105, %106 : vector<8x1xf32>
    %cst_54 = arith.constant 9.99999997E-7 : f32
    %108 = vector.broadcast %cst_54 : f32 to vector<8x1xf32>
    %109 = arith.addf %107, %108 : vector<8x1xf32>
    %110 = math.rsqrt %109 : vector<8x1xf32>
    %111 = vector.broadcast %110 : vector<8x1xf32> to vector<8x32xf32>
    %112 = arith.mulf %102, %111 : vector<8x32xf32>
    %cst_55 = arith.constant 1.000000e+00 : f32
    %113 = vector.broadcast %cst_55 : f32 to vector<1x32xf32>
    %114 = arith.addf %113, %6 : vector<1x32xf32>
    %115 = vector.broadcast %114 : vector<1x32xf32> to vector<8x32xf32>
    %116 = arith.mulf %112, %115 : vector<8x32xf32>
    %117 = vector.broadcast %5 : vector<1x32xf32> to vector<8x32xf32>
    %118 = arith.addf %116, %117 : vector<8x32xf32>
    %119 = arith.truncf %118 : vector<8x32xf32> to vector<8x32xbf16>
    %cst_56 = arith.constant 0.000000e+00 : f32
    %120 = vector.broadcast %cst_56 : f32 to vector<8x32xf32>
    %c0_57 = arith.constant 0 : index
    %c0_58 = arith.constant 0 : index
    %c0_59 = arith.constant 0 : index
    %121 = vector.load %arg13[%c0_57, %c0_58, %c0_59] : memref<1x32x128xbf16, #tpu.memory_space<vmem>>, vector<1x32x128xbf16>
    %122 = vector.shape_cast %121 : vector<1x32x128xbf16> to vector<32x128xbf16>
    %cst_60 = arith.constant dense<0.000000e+00> : vector<8x128xf32>
    %123 = tpu.matmul %119, %122, %cst_60 {dimension_numbers = #tpu.dot_dimension_numbers<[1], [0], [0], [1], [0, 0, 1, 1], [], []>} : vector<8x32xbf16>, vector<32x128xbf16>, vector<8x128xf32> -> vector<8x128xf32>
    %c0_61 = arith.constant 0 : index
    %c0_62 = arith.constant 0 : index
    %c0_63 = arith.constant 0 : index
    %124 = vector.load %arg14[%c0_61, %c0_62, %c0_63] : memref<1x1x128xf32, #tpu.memory_space<vmem>>, vector<1x1x128xf32>
    %125 = vector.shape_cast %124 : vector<1x1x128xf32> to vector<1x128xf32>
    %126 = vector.broadcast %125 : vector<1x128xf32> to vector<8x128xf32>
    %127 = arith.addf %123, %126 : vector<8x128xf32>
    %cst_64 = arith.constant 5.000000e-01 : f32
    %128 = vector.broadcast %cst_64 : f32 to vector<8x128xf32>
    %129 = arith.mulf %128, %127 : vector<8x128xf32>
    %cst_65 = arith.constant 4.471500e-02 : f32
    %130 = vector.broadcast %cst_65 : f32 to vector<8x128xf32>
    %131 = arith.mulf %130, %127 : vector<8x128xf32>
    %132 = arith.mulf %131, %127 : vector<8x128xf32>
    %133 = arith.mulf %132, %127 : vector<8x128xf32>
    %134 = arith.addf %127, %133 : vector<8x128xf32>
    %cst_66 = arith.constant 0.797884583 : f32
    %135 = vector.broadcast %cst_66 : f32 to vector<8x128xf32>
    %136 = arith.mulf %135, %134 : vector<8x128xf32>
    %137 = math.tanh %136 : vector<8x128xf32>
    %cst_67 = arith.constant 1.000000e+00 : f32
    %138 = vector.broadcast %cst_67 : f32 to vector<8x128xf32>
    %139 = arith.addf %138, %137 : vector<8x128xf32>
    %140 = arith.mulf %129, %139 : vector<8x128xf32>
    %141 = arith.truncf %140 : vector<8x128xf32> to vector<8x128xbf16>
    %c0_68 = arith.constant 0 : index
    %c0_69 = arith.constant 0 : index
    %c0_70 = arith.constant 0 : index
    %142 = vector.load %arg15[%c0_68, %c0_69, %c0_70] : memref<1x128x32xbf16, #tpu.memory_space<vmem>>, vector<1x128x32xbf16>
    %143 = vector.shape_cast %142 : vector<1x128x32xbf16> to vector<128x32xbf16>
    %cst_71 = arith.constant dense<0.000000e+00> : vector<8x32xf32>
    %144 = tpu.matmul %141, %143, %cst_71 {dimension_numbers = #tpu.dot_dimension_numbers<[1], [0], [0], [1], [0, 0, 1, 1], [], []>} : vector<8x128xbf16>, vector<128x32xbf16>, vector<8x32xf32> -> vector<8x32xf32>
    %145 = arith.addf %120, %144 : vector<8x32xf32>
    %c0_72 = arith.constant 0 : index
    %c0_73 = arith.constant 0 : index
    %146 = vector.load %arg16[%c0_72, %c0_73] : memref<1x32xf32, #tpu.memory_space<vmem>>, vector<1x32xf32>
    %147 = vector.broadcast %146 : vector<1x32xf32> to vector<8x32xf32>
    %148 = arith.addf %145, %147 : vector<8x32xf32>
    %149 = vector.broadcast %7 : vector<1x32xf32> to vector<8x32xf32>
    %150 = arith.mulf %149, %148 : vector<8x32xf32>
    %151 = arith.addf %96, %150 : vector<8x32xf32>
    %152 = arith.truncf %151 : vector<8x32xf32> to vector<8x32xbf16>
    %c0_74 = arith.constant 0 : index
    %c0_75 = arith.constant 0 : index
    %c0_76 = arith.constant 0 : index
    %153 = vector.load %arg17[%c0_74, %c0_75, %c0_76] : memref<1x8x32xbf16, #tpu.memory_space<vmem>>, vector<1x8x32xbf16>
    %154 = vector.shape_cast %153 : vector<1x8x32xbf16> to vector<8x32xbf16>
    %155 = vector.shape_cast %152 : vector<8x32xbf16> to vector<1x8x32xbf16>
    tpu.vector_store %arg17[%c0_74, %c0_75, %c0_76], %155 {strides = array<i32>} : memref<1x8x32xbf16, #tpu.memory_space<vmem>>, vector<1x8x32xbf16>,
    return
  }
  func.func @transform_0(%arg0: i32, %arg1: i32) -> (i32, i32, i32) {
    %c0_i32 = arith.constant 0 : i32
    %c0_i32_0 = arith.constant 0 : i32
    return %arg0, %arg1, %c0_i32 : i32, i32, i32
  }
  func.func @transform_1(%arg0: i32, %arg1: i32) -> (i32, i32, i32) {
    %c0_i32 = arith.constant 0 : i32
    %c0_i32_0 = arith.constant 0 : i32
    %c0_i32_1 = arith.constant 0 : i32
    return %arg0, %c0_i32, %c0_i32_0 : i32, i32, i32
  }
  func.func @transform_2(%arg0: i32, %arg1: i32) -> (i32, i32, i32) {
    %c0_i32 = arith.constant 0 : i32
    %c0_i32_0 = arith.constant 0 : i32
    %c0_i32_1 = arith.constant 0 : i32
    return %arg0, %c0_i32, %c0_i32_0 : i32, i32, i32
  }
  func.func @transform_3(%arg0: i32, %arg1: i32) -> (i32, i32) {
    %c0_i32 = arith.constant 0 : i32
    %c0_i32_0 = arith.constant 0 : i32
    %c0_i32_1 = arith.constant 0 : i32
    return %c0_i32, %c0_i32_0 : i32, i32
  }
  func.func @transform_4(%arg0: i32, %arg1: i32) -> (i32, i32) {
    %c0_i32 = arith.constant 0 : i32
    %c0_i32_0 = arith.constant 0 : i32
    %c0_i32_1 = arith.constant 0 : i32
    return %c0_i32, %c0_i32_0 : i32, i32
  }
  func.func @transform_5(%arg0: i32, %arg1: i32) -> (i32, i32) {
    %c0_i32 = arith.constant 0 : i32
    %c0_i32_0 = arith.constant 0 : i32
    %c0_i32_1 = arith.constant 0 : i32
    return %c0_i32, %c0_i32_0 : i32, i32
  }
  func.func @transform_6(%arg0: i32, %arg1: i32) -> (i32, i32) {
    %c0_i32 = arith.constant 0 : i32
    %c0_i32_0 = arith.constant 0 : i32
    %c0_i32_1 = arith.constant 0 : i32
    return %c0_i32, %c0_i32_0 : i32, i32
  }
  func.func @transform_7(%arg0: i32, %arg1: i32) -> (i32, i32) {
    %c0_i32 = arith.constant 0 : i32
    %c0_i32_0 = arith.constant 0 : i32
    %c0_i32_1 = arith.constant 0 : i32
    return %c0_i32, %c0_i32_0 : i32, i32
  }
  func.func @transform_8(%arg0: i32, %arg1: i32) -> (i32, i32) {
    %c0_i32 = arith.constant 0 : i32
    %c0_i32_0 = arith.constant 0 : i32
    %c0_i32_1 = arith.constant 0 : i32
    return %c0_i32, %c0_i32_0 : i32, i32
  }
  func.func @transform_9(%arg0: i32, %arg1: i32) -> (i32, i32) {
    %c0_i32 = arith.constant 0 : i32
    %c0_i32_0 = arith.constant 0 : i32
    %c0_i32_1 = arith.constant 0 : i32
    return %c0_i32, %c0_i32_0 : i32, i32
  }
  func.func @transform_10(%arg0: i32, %arg1: i32) -> (i32, i32) {
    %c0_i32 = arith.constant 0 : i32
    %c0_i32_0 = arith.constant 0 : i32
    %c0_i32_1 = arith.constant 0 : i32
    return %c0_i32, %c0_i32_0 : i32, i32
  }
  func.func @transform_11(%arg0: i32, %arg1: i32) -> (i32, i32, i32) {
    %c0_i32 = arith.constant 0 : i32
    %c0_i32_0 = arith.constant 0 : i32
    %c0_i32_1 = arith.constant 0 : i32
    %c0_i32_2 = arith.constant 0 : i32
    return %c0_i32, %c0_i32_0, %c0_i32_1 : i32, i32, i32
  }
  func.func @transform_12(%arg0: i32, %arg1: i32) -> (i32, i32, i32) {
    %c0_i32 = arith.constant 0 : i32
    %c0_i32_0 = arith.constant 0 : i32
    %c0_i32_1 = arith.constant 0 : i32
    %c0_i32_2 = arith.constant 0 : i32
    return %c0_i32, %c0_i32_0, %c0_i32_1 : i32, i32, i32
  }
  func.func @transform_13(%arg0: i32, %arg1: i32) -> (i32, i32, i32) {
    %c0_i32 = arith.constant 0 : i32
    %c0_i32_0 = arith.constant 0 : i32
    %c0_i32_1 = arith.constant 0 : i32
    %c0_i32_2 = arith.constant 0 : i32
    return %c0_i32, %c0_i32_0, %c0_i32_1 : i32, i32, i32
  }
  func.func @transform_14(%arg0: i32, %arg1: i32) -> (i32, i32) {
    %c0_i32 = arith.constant 0 : i32
    %c0_i32_0 = arith.constant 0 : i32
    %c0_i32_1 = arith.constant 0 : i32
    return %c0_i32, %c0_i32_0 : i32, i32
  }
  func.func @transform_15(%arg0: i32, %arg1: i32) -> (i32, i32, i32) {
    %c0_i32 = arith.constant 0 : i32
    %c0_i32_0 = arith.constant 0 : i32
    return %arg0, %arg1, %c0_i32 : i32, i32, i32
  }
}

</mosaic_0001>

<llo_original>
// kernel: tpu_custom_call.1
$region0: #{tpu_custom_call.1}
  #allocation0 [shape = 'u32[]', space=smem, size = 0x4, offset = 0x4, fixed_abs, tag = 'smem constant byte address 0x4 - core index']
  #allocation1 [shape = 'u32[144,128]{1,0:T(1,128)}', space=vmem, size = 0x12000, scoped, tag = 'internal scratch']
  #allocation2 [shape = 'bf16[4,8,8]{2,1,0:T(8,128)(2,1)}', space=vmem, size = 0x2000, scoped, tag = 'scratch operand']
  #allocation3 [shape = 'bf16[4,8,8]{2,1,0:T(8,128)(2,1)}', space=vmem, size = 0x2000, scoped, tag = 'scratch operand']
  #allocation4 [shape = 'bf16[4,8,8]{2,1,0:T(8,128)(2,1)}', space=vmem, size = 0x2000, scoped, tag = 'scratch operand']
  #allocation5 [shape = 'bf16[8,32]{1,0:T(8,128)(2,1)}', space=vmem, size = 0x800, scoped, tag = 'scratch operand']
  %s0 = inlined_call_operand.vmem [shape: bf16[2,8,32], index: 0, kind: input, shape index: {}]
  %s1 = inlined_call_operand.hbm [shape: bf16[2,8,32], index: 1, kind: input, shape index: {}]
  %s2 = inlined_call_operand.vmem [shape: f32[2,6,32], index: 2, kind: input, shape index: {}]
  %s3 = inlined_call_operand.vmem [shape: bf16[32,32], index: 3, kind: input, shape index: {}]
  %s4 = inlined_call_operand.vmem [shape: f32[1,32], index: 4, kind: input, shape index: {}]
  %s5 = inlined_call_operand.vmem [shape: bf16[32,32], index: 5, kind: input, shape index: {}]
  %s6 = inlined_call_operand.vmem [shape: f32[1,32], index: 6, kind: input, shape index: {}]
  %s7 = inlined_call_operand.vmem [shape: bf16[32,32], index: 7, kind: input, shape index: {}]
  %s8 = inlined_call_operand.vmem [shape: f32[1,32], index: 8, kind: input, shape index: {}]
  %s9 = inlined_call_operand.vmem [shape: bf16[32,32], index: 9, kind: input, shape index: {}]
  %s10 = inlined_call_operand.vmem [shape: f32[1,32], index: 10, kind: input, shape index: {}]
  %s11 = inlined_call_operand.vmem [shape: bf16[1,32,128], index: 11, kind: input, shape index: {}]
  %s12 = inlined_call_operand.vmem [shape: f32[1,1,128], index: 12, kind: input, shape index: {}]
  %s13 = inlined_call_operand.vmem [shape: bf16[1,128,32], index: 13, kind: input, shape index: {}]
  %s14 = inlined_call_operand.vmem [shape: f32[1,32], index: 14, kind: input, shape index: {}]
  %s15 = inlined_call_operand.hbm [shape: bf16[2,8,32], index: 15, kind: output, shape index: {}]
  %s16 = sld [smem:[#allocation0]]
  $region101: #{tpu_custom_call.1} parent=0
    _
  %s18 = ssub.s32 1, %s16
  %s19 = scalar_select 0, %s18, %s16
  $region1: #{tpu_custom_call.1} parent=0
    #allocation6 [shape = 'u8[4096]{0}', space=vmem, size = 0x1000, scoped, tag = 'input window, operand 1']
    #allocation7 [shape = 's32[2]{0}', space=sflag, size = 0x8, scoped, tag = 'scoped memory for tpu_custom_call.1']
    #allocation8 [shape = 's32[2]{0}', space=sflag, size = 0x8, scoped, tag = 'scoped memory for tpu_custom_call.1']
    #allocation9 [shape = 'u8[4096]{0}', space=vmem, size = 0x1000, scoped, tag = 'output window, operand 0']
    %20 = vsyncpa [#allocation7], 0
    %s21 = scalar_lea.sflag [#allocation7], 1
    %22 = vsyncpa %s21, 0
    %23 = vsyncpa [#allocation8], 0
    %s24 = scalar_lea.sflag [#allocation8], 1
    %25 = vsyncpa %s24, 0
    loop: start=0, step=1, limit=4
    $region2: #{tpu_custom_call.1} parent=1 // loop_pre_header
      _
    $region3: #{tpu_custom_call.1} parent=1 // loop_header
      %s27 = sphi 0, %s31
      %p28 = scmp.ge.s32.totalorder %s27, 4
      %s34 = sphi 0, %s46
      %s35 = sphi 0, %s42
      %s36 = sphi 0, %s34
      %s37 = sphi 0, %s35
      %s38 = sphi 0, %s36
      %s39 = sphi 0, %s37
      %s51 = sphi 0, %s53
      %s54 = sphi 0, %s51
      %s55 = sphi 0, %s54
      %s71 = sphi 0, %s55
      %s77 = sphi 0, %s79
      %s80 = sphi 0, %s77
      %s81 = sphi 0, %s80
      %s97 = sphi 0, %s81
      %s103 = sphi 0, %s105
      %s106 = sphi 0, %s103
      %s107 = sphi 0, %s106
      %s123 = sphi 0, %s107
      %s127 = sphi 0, %s127
      %s129 = sphi 0, %s127
      %s130 = sphi 0, %s129
      %s144 = sphi 0, %s130
      %s148 = sphi 0, %s148
      %s150 = sphi 0, %s148
      %s151 = sphi 0, %s150
      %s165 = sphi 0, %s151
      %s169 = sphi 0, %s169
      %s171 = sphi 0, %s169
      %s172 = sphi 0, %s171
      %s186 = sphi 0, %s172
      %s190 = sphi 0, %s190
      %s192 = sphi 0, %s190
      %s193 = sphi 0, %s192
      %s207 = sphi 0, %s193
      %s211 = sphi 0, %s211
      %s213 = sphi 0, %s211
      %s214 = sphi 0, %s213
      %s228 = sphi 0, %s214
      %s232 = sphi 0, %s232
      %s234 = sphi 0, %s232
      %s235 = sphi 0, %s234
      %s249 = sphi 0, %s235
      %s253 = sphi 0, %s253
      %s255 = sphi 0, %s253
      %s256 = sphi 0, %s255
      %s270 = sphi 0, %s256
      %s274 = sphi 0, %s274
      %s276 = sphi 0, %s274
      %s277 = sphi 0, %s276
      %s291 = sphi 0, %s277
      %s295 = sphi 0, %s295
      %s297 = sphi 0, %s295
      %s298 = sphi 0, %s297
      %s312 = sphi 0, %s298
      %s316 = sphi 0, %s316
      %s318 = sphi 0, %s316
      %s319 = sphi 0, %s318
      %s333 = sphi 0, %s319
      %s337 = sphi 0, %s337
      %s339 = sphi 0, %s337
      %s340 = sphi 0, %s339
      %s354 = sphi 0, %s340
      %s358 = sphi 0, %s358
      %s360 = sphi 0, %s358
      %s361 = sphi 0, %s360
      %s375 = sphi 0, %s361
      %s383 = sphi 0, %s385
      %s386 = sphi 0, %s383
      %s387 = sphi 0, %s386
      %s403 = sphi 0, %s387
    $region4: #{tpu_custom_call.1} parent=1 // loop_header_branch
      %30 = sbr.rel (%p28) target = $region8
    $region5: #{tpu_custom_call.1} parent=1 // loop_body
      %s32 = ssub.s32 %s27, 1
      %s33 = ssub.s32 %s27, 2
      %s40 = sadd.s32 1, %s35
      %p41 = scmp.ge.s32.totalorder %s40, 1
      %s42 = scalar_select %p41, 0, %s40
      %s43 = sadd.s32 1, %s34
      %s44 = scalar_select %p41, %s43, %s34
      %p45 = scmp.ge.s32.totalorder %s44, 2
      %s46 = scalar_select %p45, 0, %s44
      %s47 = ssub.s32 %s34, %s46
      %s48 = ssub.s32 %s35, %s42
      %s49 = sor.u32 %s47, %s48
      %p50 = scmp.eq.s32.totalorder %s49, 0
      %s52 = sadd.s32 %s51, 1
      %s53 = scalar_select %p50, %s51, %s52
      %p56 = pneg %p50
      %p57 = scmp.eq.s32.totalorder %s27, 1
      %p58 = por %p56, %p57
      %p59 = scmp.ne.s32.totalorder %s51, %s54
      %p60 = scmp.eq.s32.totalorder %s27, 0
      %p61 = por %p59, %p60
      %p62 = scmp.ne.s32.totalorder %s51, %s54
      %p63 = scmp.eq.s32.totalorder %s32, 1
      %p64 = por %p62, %p63
      %p65 = scmp.ne.s32.totalorder %s54, %s55
      %p66 = scmp.eq.s32.totalorder %s32, 0
      %p67 = por %p65, %p66
      %p68 = scmp.ne.s32.totalorder %s54, %s55
      %p69 = scmp.eq.s32.totalorder %s33, 1
      %p70 = por %p68, %p69
      %p72 = scmp.ne.s32.totalorder %s55, %s71
      %p73 = scmp.eq.s32.totalorder %s33, 0
      %p74 = por %p72, %p73
      %s75 = ssub.s32 %s34, %s46
      %p76 = scmp.eq.s32.totalorder %s75, 0
      %s78 = sadd.s32 %s77, 1
      %s79 = scalar_select %p76, %s77, %s78
      %p82 = pneg %p76
      %p83 = scmp.eq.s32.totalorder %s27, 1
      %p84 = por %p82, %p83
      %p85 = scmp.ne.s32.totalorder %s77, %s80
      %p86 = scmp.eq.s32.totalorder %s27, 0
      %p87 = por %p85, %p86
      %p88 = scmp.ne.s32.totalorder %s77, %s80
      %p89 = scmp.eq.s32.totalorder %s32, 1
      %p90 = por %p88, %p89
      %p91 = scmp.ne.s32.totalorder %s80, %s81
      %p92 = scmp.eq.s32.totalorder %s32, 0
      %p93 = por %p91, %p92
      %p94 = scmp.ne.s32.totalorder %s80, %s81
      %p95 = scmp.eq.s32.totalorder %s33, 1
      %p96 = por %p94, %p95
      %p98 = scmp.ne.s32.totalorder %s81, %s97
      %p99 = scmp.eq.s32.totalorder %s33, 0
      %p100 = por %p98, %p99
      %s101 = ssub.s32 %s34, %s46
      %p102 = scmp.eq.s32.totalorder %s101, 0
      %s104 = sadd.s32 %s103, 1
      %s105 = scalar_select %p102, %s103, %s104
      %p108 = pneg %p102
      %p109 = scmp.eq.s32.totalorder %s27, 1
      %p110 = por %p108, %p109
      %p111 = scmp.ne.s32.totalorder %s103, %s106
      %p112 = scmp.eq.s32.totalorder %s27, 0
      %p113 = por %p111, %p112
      %p114 = scmp.ne.s32.totalorder %s103, %s106
      %p115 = scmp.eq.s32.totalorder %s32, 1
      %p116 = por %p114, %p115
      %p117 = scmp.ne.s32.totalorder %s106, %s107
      %p118 = scmp.eq.s32.totalorder %s32, 0
      %p119 = por %p117, %p118
      %p120 = scmp.ne.s32.totalorder %s106, %s107
      %p121 = scmp.eq.s32.totalorder %s33, 1
      %p122 = por %p120, %p121
      %p124 = scmp.ne.s32.totalorder %s107, %s123
      %p125 = scmp.eq.s32.totalorder %s33, 0
      %p126 = por %p124, %p125
      %s128 = sadd.s32 %s127, 1
      %p131 = scmp.eq.s32.totalorder %s27, 1
      %p132 = scmp.ne.s32.totalorder %s127, %s129
      %p133 = scmp.eq.s32.totalorder %s27, 0
      %p134 = por %p132, %p133
      %p135 = scmp.ne.s32.totalorder %s127, %s129
      %p136 = scmp.eq.s32.totalorder %s32, 1
      %p137 = por %p135, %p136
      %p138 = scmp.ne.s32.totalorder %s129, %s130
      %p139 = scmp.eq.s32.totalorder %s32, 0
      %p140 = por %p138, %p139
      %p141 = scmp.ne.s32.totalorder %s129, %s130
      %p142 = scmp.eq.s32.totalorder %s33, 1
      %p143 = por %p141, %p142
      %p145 = scmp.ne.s32.totalorder %s130, %s144
      %p146 = scmp.eq.s32.totalorder %s33, 0
      %p147 = por %p145, %p146
      %s149 = sadd.s32 %s148, 1
      %p152 = scmp.eq.s32.totalorder %s27, 1
      %p153 = scmp.ne.s32.totalorder %s148, %s150
      %p154 = scmp.eq.s32.totalorder %s27, 0
      %p155 = por %p153, %p154
      %p156 = scmp.ne.s32.totalorder %s148, %s150
      %p157 = scmp.eq.s32.totalorder %s32, 1
      %p158 = por %p156, %p157
      %p159 = scmp.ne.s32.totalorder %s150, %s151
      %p160 = scmp.eq.s32.totalorder %s32, 0
      %p161 = por %p159, %p160
      %p162 = scmp.ne.s32.totalorder %s150, %s151
      %p163 = scmp.eq.s32.totalorder %s33, 1
      %p164 = por %p162, %p163
      %p166 = scmp.ne.s32.totalorder %s151, %s165
      %p167 = scmp.eq.s32.totalorder %s33, 0
      %p168 = por %p166, %p167
      %s170 = sadd.s32 %s169, 1
      %p173 = scmp.eq.s32.totalorder %s27, 1
      %p174 = scmp.ne.s32.totalorder %s169, %s171
      %p175 = scmp.eq.s32.totalorder %s27, 0
      %p176 = por %p174, %p175
      %p177 = scmp.ne.s32.totalorder %s169, %s171
      %p178 = scmp.eq.s32.totalorder %s32, 1
      %p179 = por %p177, %p178
      %p180 = scmp.ne.s32.totalorder %s171, %s172
      %p181 = scmp.eq.s32.totalorder %s32, 0
      %p182 = por %p180, %p181
      %p183 = scmp.ne.s32.totalorder %s171, %s172
      %p184 = scmp.eq.s32.totalorder %s33, 1
      %p185 = por %p183, %p184
      %p187 = scmp.ne.s32.totalorder %s172, %s186
      %p188 = scmp.eq.s32.totalorder %s33, 0
      %p189 = por %p187, %p188
      %s191 = sadd.s32 %s190, 1
      %p194 = scmp.eq.s32.totalorder %s27, 1
      %p195 = scmp.ne.s32.totalorder %s190, %s192
      %p196 = scmp.eq.s32.totalorder %s27, 0
      %p197 = por %p195, %p196
      %p198 = scmp.ne.s32.totalorder %s190, %s192
      %p199 = scmp.eq.s32.totalorder %s32, 1
      %p200 = por %p198, %p199
      %p201 = scmp.ne.s32.totalorder %s192, %s193
      %p202 = scmp.eq.s32.totalorder %s32, 0
      %p203 = por %p201, %p202
      %p204 = scmp.ne.s32.totalorder %s192, %s193
      %p205 = scmp.eq.s32.totalorder %s33, 1
      %p206 = por %p204, %p205
      %p208 = scmp.ne.s32.totalorder %s193, %s207
      %p209 = scmp.eq.s32.totalorder %s33, 0
      %p210 = por %p208, %p209
      %s212 = sadd.s32 %s211, 1
      %p215 = scmp.eq.s32.totalorder %s27, 1
      %p216 = scmp.ne.s32.totalorder %s211, %s213
      %p217 = scmp.eq.s32.totalorder %s27, 0
      %p218 = por %p216, %p217
      %p219 = scmp.ne.s32.totalorder %s211, %s213
      %p220 = scmp.eq.s32.totalorder %s32, 1
      %p221 = por %p219, %p220
      %p222 = scmp.ne.s32.totalorder %s213, %s214
      %p223 = scmp.eq.s32.totalorder %s32, 0
      %p224 = por %p222, %p223
      %p225 = scmp.ne.s32.totalorder %s213, %s214
      %p226 = scmp.eq.s32.totalorder %s33, 1
      %p227 = por %p225, %p226
      %p229 = scmp.ne.s32.totalorder %s214, %s228
      %p230 = scmp.eq.s32.totalorder %s33, 0
      %p231 = por %p229, %p230
      %s233 = sadd.s32 %s232, 1
      %p236 = scmp.eq.s32.totalorder %s27, 1
      %p237 = scmp.ne.s32.totalorder %s232, %s234
      %p238 = scmp.eq.s32.totalorder %s27, 0
      %p239 = por %p237, %p238
      %p240 = scmp.ne.s32.totalorder %s232, %s234
      %p241 = scmp.eq.s32.totalorder %s32, 1
      %p242 = por %p240, %p241
      %p243 = scmp.ne.s32.totalorder %s234, %s235
      %p244 = scmp.eq.s32.totalorder %s32, 0
      %p245 = por %p243, %p244
      %p246 = scmp.ne.s32.totalorder %s234, %s235
      %p247 = scmp.eq.s32.totalorder %s33, 1
      %p248 = por %p246, %p247
      %p250 = scmp.ne.s32.totalorder %s235, %s249
      %p251 = scmp.eq.s32.totalorder %s33, 0
      %p252 = por %p250, %p251
      %s254 = sadd.s32 %s253, 1
      %p257 = scmp.eq.s32.totalorder %s27, 1
      %p258 = scmp.ne.s32.totalorder %s253, %s255
      %p259 = scmp.eq.s32.totalorder %s27, 0
      %p260 = por %p258, %p259
      %p261 = scmp.ne.s32.totalorder %s253, %s255
      %p262 = scmp.eq.s32.totalorder %s32, 1
      %p263 = por %p261, %p262
      %p264 = scmp.ne.s32.totalorder %s255, %s256
      %p265 = scmp.eq.s32.totalorder %s32, 0
      %p266 = por %p264, %p265
      %p267 = scmp.ne.s32.totalorder %s255, %s256
      %p268 = scmp.eq.s32.totalorder %s33, 1
      %p269 = por %p267, %p268
      %p271 = scmp.ne.s32.totalorder %s256, %s270
      %p272 = scmp.eq.s32.totalorder %s33, 0
      %p273 = por %p271, %p272
      %s275 = sadd.s32 %s274, 1
      %p278 = scmp.eq.s32.totalorder %s27, 1
      %p279 = scmp.ne.s32.totalorder %s274, %s276
      %p280 = scmp.eq.s32.totalorder %s27, 0
      %p281 = por %p279, %p280
      %p282 = scmp.ne.s32.totalorder %s274, %s276
      %p283 = scmp.eq.s32.totalorder %s32, 1
      %p284 = por %p282, %p283
      %p285 = scmp.ne.s32.totalorder %s276, %s277
      %p286 = scmp.eq.s32.totalorder %s32, 0
      %p287 = por %p285, %p286
      %p288 = scmp.ne.s32.totalorder %s276, %s277
      %p289 = scmp.eq.s32.totalorder %s33, 1
      %p290 = por %p288, %p289
      %p292 = scmp.ne.s32.totalorder %s277, %s291
      %p293 = scmp.eq.s32.totalorder %s33, 0
      %p294 = por %p292, %p293
      %s296 = sadd.s32 %s295, 1
      %p299 = scmp.eq.s32.totalorder %s27, 1
      %p300 = scmp.ne.s32.totalorder %s295, %s297
      %p301 = scmp.eq.s32.totalorder %s27, 0
      %p302 = por %p300, %p301
      %p303 = scmp.ne.s32.totalorder %s295, %s297
      %p304 = scmp.eq.s32.totalorder %s32, 1
      %p305 = por %p303, %p304
      %p306 = scmp.ne.s32.totalorder %s297, %s298
      %p307 = scmp.eq.s32.totalorder %s32, 0
      %p308 = por %p306, %p307
      %p309 = scmp.ne.s32.totalorder %s297, %s298
      %p310 = scmp.eq.s32.totalorder %s33, 1
      %p311 = por %p309, %p310
      %p313 = scmp.ne.s32.totalorder %s298, %s312
      %p314 = scmp.eq.s32.totalorder %s33, 0
      %p315 = por %p313, %p314
      %s317 = sadd.s32 %s316, 1
      %p320 = scmp.eq.s32.totalorder %s27, 1
      %p321 = scmp.ne.s32.totalorder %s316, %s318
      %p322 = scmp.eq.s32.totalorder %s27, 0
      %p323 = por %p321, %p322
      %p324 = scmp.ne.s32.totalorder %s316, %s318
      %p325 = scmp.eq.s32.totalorder %s32, 1
      %p326 = por %p324, %p325
      %p327 = scmp.ne.s32.totalorder %s318, %s319
      %p328 = scmp.eq.s32.totalorder %s32, 0
      %p329 = por %p327, %p328
      %p330 = scmp.ne.s32.totalorder %s318, %s319
      %p331 = scmp.eq.s32.totalorder %s33, 1
      %p332 = por %p330, %p331
      %p334 = scmp.ne.s32.totalorder %s319, %s333
      %p335 = scmp.eq.s32.totalorder %s33, 0
      %p336 = por %p334, %p335
      %s338 = sadd.s32 %s337, 1
      %p341 = scmp.eq.s32.totalorder %s27, 1
      %p342 = scmp.ne.s32.totalorder %s337, %s339
      %p343 = scmp.eq.s32.totalorder %s27, 0
      %p344 = por %p342, %p343
      %p345 = scmp.ne.s32.totalorder %s337, %s339
      %p346 = scmp.eq.s32.totalorder %s32, 1
      %p347 = por %p345, %p346
      %p348 = scmp.ne.s32.totalorder %s339, %s340
      %p349 = scmp.eq.s32.totalorder %s32, 0
      %p350 = por %p348, %p349
      %p351 = scmp.ne.s32.totalorder %s339, %s340
      %p352 = scmp.eq.s32.totalorder %s33, 1
      %p353 = por %p351, %p352
      %p355 = scmp.ne.s32.totalorder %s340, %s354
      %p356 = scmp.eq.s32.totalorder %s33, 0
      %p357 = por %p355, %p356
      %s359 = sadd.s32 %s358, 1
      %p362 = scmp.eq.s32.totalorder %s27, 1
      %p363 = scmp.ne.s32.totalorder %s358, %s360
      %p364 = scmp.eq.s32.totalorder %s27, 0
      %p365 = por %p363, %p364
      %p366 = scmp.ne.s32.totalorder %s358, %s360
      %p367 = scmp.eq.s32.totalorder %s32, 1
      %p368 = por %p366, %p367
      %p369 = scmp.ne.s32.totalorder %s360, %s361
      %p370 = scmp.eq.s32.totalorder %s32, 0
      %p371 = por %p369, %p370
      %p372 = scmp.ne.s32.totalorder %s360, %s361
      %p373 = scmp.eq.s32.totalorder %s33, 1
      %p374 = por %p372, %p373
      %p376 = scmp.ne.s32.totalorder %s361, %s375
      %p377 = scmp.eq.s32.totalorder %s33, 0
      %p378 = por %p376, %p377
      %s379 = ssub.s32 %s34, %s46
      %s380 = ssub.s32 %s35, %s42
      %s381 = sor.u32 %s379, %s380
      %p382 = scmp.eq.s32.totalorder %s381, 0
      %s384 = sadd.s32 %s383, 1
      %s385 = scalar_select %p382, %s383, %s384
      %p388 = pneg %p382
      %p389 = scmp.eq.s32.totalorder %s27, 1
      %p390 = por %p388, %p389
      %p391 = scmp.ne.s32.totalorder %s383, %s386
      %p392 = scmp.eq.s32.totalorder %s27, 0
      %p393 = por %p391, %p392
      %p394 = scmp.ne.s32.totalorder %s383, %s386
      %p395 = scmp.eq.s32.totalorder %s32, 1
      %p396 = por %p394, %p395
      %p397 = scmp.ne.s32.totalorder %s386, %s387
      %p398 = scmp.eq.s32.totalorder %s32, 0
      %p399 = por %p397, %p398
      %p400 = scmp.ne.s32.totalorder %s386, %s387
      %p401 = scmp.eq.s32.totalorder %s33, 1
      %p402 = por %p400, %p401
      %p404 = scmp.ne.s32.totalorder %s387, %s403
      %p405 = scmp.eq.s32.totalorder %s33, 0
      %p406 = por %p404, %p405
      %p407 = scmp.le.s32.totalorder 1, %s27
      %p408 = scmp.lt.s32.totalorder %s27, 3
      %p409 = pnand %p407, %p408
      %p410 = pneg %p409
      // Predicated region
      $region9: #{tpu_custom_call.1} parent=5 // pred_check
        _
      $region10: #{tpu_custom_call.1} parent=5 // pred_check_branch
        %412 = sbr.rel (%p409) target = $region12
      $region11: #{tpu_custom_call.1} parent=5 // pred_region
        %s413 = ssub.s32 %s27, 1
        // Predicated region
        $region13: #{tpu_custom_call.1} parent=11 // pred_check
          %p414 = pneg %p140
        $region14: #{tpu_custom_call.1} parent=11 // pred_check_branch
          %416 = sbr.rel (%p414) target = $region16
        $region15: #{tpu_custom_call.1} parent=11 // pred_region
          _
        $region16: #{tpu_custom_call.1} parent=11 // pred_fallthru
          _
        // Predicated region
        $region17: #{tpu_custom_call.1} parent=11 // pred_check
          %p417 = pneg %p161
        $region18: #{tpu_custom_call.1} parent=11 // pred_check_branch
          %419 = sbr.rel (%p417) target = $region20
        $region19: #{tpu_custom_call.1} parent=11 // pred_region
          _
        $region20: #{tpu_custom_call.1} parent=11 // pred_fallthru
          _
        // Predicated region
        $region21: #{tpu_custom_call.1} parent=11 // pred_check
          %p420 = pneg %p182
        $region22: #{tpu_custom_call.1} parent=11 // pred_check_branch
          %422 = sbr.rel (%p420) target = $region24
        $region23: #{tpu_custom_call.1} parent=11 // pred_region
          _
        $region24: #{tpu_custom_call.1} parent=11 // pred_fallthru
          _
        // Predicated region
        $region25: #{tpu_custom_call.1} parent=11 // pred_check
          %p423 = pneg %p203
        $region26: #{tpu_custom_call.1} parent=11 // pred_check_branch
          %425 = sbr.rel (%p423) target = $region28
        $region27: #{tpu_custom_call.1} parent=11 // pred_region
          _
        $region28: #{tpu_custom_call.1} parent=11 // pred_fallthru
          _
        // Predicated region
        $region29: #{tpu_custom_call.1} parent=11 // pred_check
          %p426 = pneg %p224
        $region30: #{tpu_custom_call.1} parent=11 // pred_check_branch
          %428 = sbr.rel (%p426) target = $region32
        $region31: #{tpu_custom_call.1} parent=11 // pred_region
          _
        $region32: #{tpu_custom_call.1} parent=11 // pred_fallthru
          _
        // Predicated region
        $region33: #{tpu_custom_call.1} parent=11 // pred_check
          %p429 = pneg %p245
        $region34: #{tpu_custom_call.1} parent=11 // pred_check_branch
          %431 = sbr.rel (%p429) target = $region36
        $region35: #{tpu_custom_call.1} parent=11 // pred_region
          _
        $region36: #{tpu_custom_call.1} parent=11 // pred_fallthru
          _
        // Predicated region
        $region37: #{tpu_custom_call.1} parent=11 // pred_check
          %p432 = pneg %p266
        $region38: #{tpu_custom_call.1} parent=11 // pred_check_branch
          %434 = sbr.rel (%p432) target = $region40
        $region39: #{tpu_custom_call.1} parent=11 // pred_region
          _
        $region40: #{tpu_custom_call.1} parent=11 // pred_fallthru
          _
        // Predicated region
        $region41: #{tpu_custom_call.1} parent=11 // pred_check
          %p435 = pneg %p287
        $region42: #{tpu_custom_call.1} parent=11 // pred_check_branch
          %437 = sbr.rel (%p435) target = $region44
        $region43: #{tpu_custom_call.1} parent=11 // pred_region
          _
        $region44: #{tpu_custom_call.1} parent=11 // pred_fallthru
          _
        // Predicated region
        $region45: #{tpu_custom_call.1} parent=11 // pred_check
          %p438 = pneg %p308
        $region46: #{tpu_custom_call.1} parent=11 // pred_check_branch
          %440 = sbr.rel (%p438) target = $region48
        $region47: #{tpu_custom_call.1} parent=11 // pred_region
          _
        $region48: #{tpu_custom_call.1} parent=11 // pred_fallthru
          _
        // Predicated region
        $region49: #{tpu_custom_call.1} parent=11 // pred_check
          %p441 = pneg %p329
        $region50: #{tpu_custom_call.1} parent=11 // pred_check_branch
          %443 = sbr.rel (%p441) target = $region52
        $region51: #{tpu_custom_call.1} parent=11 // pred_region
          _
        $region52: #{tpu_custom_call.1} parent=11 // pred_fallthru
          _
        // Predicated region
        $region53: #{tpu_custom_call.1} parent=11 // pred_check
          %p444 = pneg %p350
        $region54: #{tpu_custom_call.1} parent=11 // pred_check_branch
          %446 = sbr.rel (%p444) target = $region56
        $region55: #{tpu_custom_call.1} parent=11 // pred_region
          _
        $region56: #{tpu_custom_call.1} parent=11 // pred_fallthru
          _
        // Predicated region
        $region57: #{tpu_custom_call.1} parent=11 // pred_check
          %p447 = pneg %p371
        $region58: #{tpu_custom_call.1} parent=11 // pred_check_branch
          %449 = sbr.rel (%p447) target = $region60
        $region59: #{tpu_custom_call.1} parent=11 // pred_region
          _
        $region60: #{tpu_custom_call.1} parent=11 // pred_fallthru
          _
      $region12: #{tpu_custom_call.1} parent=5 // pred_fallthru
        _
      %p450 = scmp.lt.s32.totalorder %s27, 2
      // Predicated region
      $region61: #{tpu_custom_call.1} parent=5 // pred_check
        %p451 = pneg %p450
      $region62: #{tpu_custom_call.1} parent=5 // pred_check_branch
        %453 = sbr.rel (%p451) target = $region64
      $region63: #{tpu_custom_call.1} parent=5 // pred_region
        // Predicated region
        $region65: #{tpu_custom_call.1} parent=63 // pred_check
          %p454 = pneg %p61
        $region66: #{tpu_custom_call.1} parent=63 // pred_check_branch
          %456 = sbr.rel (%p454) target = $region68
        $region67: #{tpu_custom_call.1} parent=63 // pred_region
          %p457 = scmp.lt.s32.totalorder %s34, 1
          %s458 = scalar_select %p457, %s34, 1
          %p459 = scmp.lt.s32.totalorder %s35, 0
          %s460 = scalar_select %p459, %s35, 0
          %s461 = sadd.s32 %s460, %s458
          %s462 = smul.addr %s461, 4
          %s463 = scalar_lea.vmem %s0, %s462
        $region68: #{tpu_custom_call.1} parent=63 // pred_fallthru
          _
        // Predicated region
        $region69: #{tpu_custom_call.1} parent=63 // pred_check
          %p464 = pneg %p87
        $region70: #{tpu_custom_call.1} parent=63 // pred_check_branch
          %466 = sbr.rel (%p464) target = $region72
        $region71: #{tpu_custom_call.1} parent=63 // pred_region
          %s467 = sand.u32 %s77, 1
          %s468 = scalar_lea.sflag [#allocation7], %s467
          %s469 = sand.u32 %s77, 1
          %s470 = smul.addr %s469, 4
          %s471 = scalar_lea.vmem [#allocation6], %s470
          %s473 = ssub.s32 64, 64
          %474 = vsyncadd %s468, %s473
          %s475 = smul.addr %s34, 64
          %s476 = scalar_lea.hbm %s1, %s475
          %s478 = sshll.u32 %s471, 4
          %s479 = int_to_ptr.vmem [resolvable:$true] %s478
          %481 = dma.hbm_to_vmem [thread:$0]  %s476, 64, %s479, %s468
        $region72: #{tpu_custom_call.1} parent=63 // pred_fallthru
          _
        // Predicated region
        $region73: #{tpu_custom_call.1} parent=63 // pred_check
          %p482 = pneg %p113
        $region74: #{tpu_custom_call.1} parent=63 // pred_check_branch
          %484 = sbr.rel (%p482) target = $region76
        $region75: #{tpu_custom_call.1} parent=63 // pred_region
          %p485 = scmp.lt.s32.totalorder %s34, 1
          %s486 = scalar_select %p485, %s34, 1
          %s487 = smul.addr %s486, 8
          %s488 = scalar_lea.vmem %s2, %s487
        $region76: #{tpu_custom_call.1} parent=63 // pred_fallthru
          _
      $region64: #{tpu_custom_call.1} parent=5 // pred_fallthru
        _
      %p489 = scmp.le.s32.totalorder 1, %s27
      %p490 = scmp.lt.s32.totalorder %s27, 3
      %p491 = pnand %p489, %p490
      %p492 = pneg %p491
      // Predicated region
      $region77: #{tpu_custom_call.1} parent=5 // pred_check
        _
      $region78: #{tpu_custom_call.1} parent=5 // pred_check_branch
        %494 = sbr.rel (%p491) target = $region80
      $region79: #{tpu_custom_call.1} parent=5 // pred_region
        %s495 = ssub.s32 %s27, 1
        %s496 = sand.u32 %s80, 1
        %s497 = scalar_lea.sflag [#allocation7], %s496
        %s498 = sand.u32 %s80, 1
        %s499 = smul.addr %s498, 4
        %s500 = scalar_lea.vmem [#allocation6], %s499
        // Predicated region
        $region81: #{tpu_custom_call.1} parent=79 // pred_check
          %p501 = pneg %p93
        $region82: #{tpu_custom_call.1} parent=79 // pred_check_branch
          %503 = sbr.rel (%p501) target = $region84
        $region83: #{tpu_custom_call.1} parent=79 // pred_region
          %504 = dma.done %s497, 64
        $region84: #{tpu_custom_call.1} parent=79 // pred_fallthru
          _
        %p505 = scmp.lt.s32.totalorder %s36, 1
        %s506 = scalar_select %p505, %s36, 1
        %p507 = scmp.lt.s32.totalorder %s37, 0
        %s508 = scalar_select %p507, %s37, 0
        %s509 = sadd.s32 %s508, %s506
        %s510 = smul.addr %s509, 4
        %s511 = scalar_lea.vmem %s0, %s510
        %p512 = pneg %p67
        %p513 = pneg %p64
        %s514 = sand.u32 %s80, 1
        %s515 = scalar_lea.sflag [#allocation7], %s514
        %s516 = sand.u32 %s80, 1
        %s517 = smul.addr %s516, 4
        %s518 = scalar_lea.vmem [#allocation6], %s517
        %p519 = pneg %p93
        %p520 = pneg %p90
        %p521 = scmp.lt.s32.totalorder %s36, 1
        %s522 = scalar_select %p521, %s36, 1
        %s523 = smul.addr %s522, 8
        %s524 = scalar_lea.vmem %s2, %s523
        %p525 = pneg %p119
        %p526 = pneg %p116
        %p527 = pneg %p140
        %p528 = pneg %p137
        %p529 = pneg %p161
        %p530 = pneg %p158
        %p531 = pneg %p182
        %p532 = pneg %p179
        %p533 = pneg %p203
        %p534 = pneg %p200
        %p535 = pneg %p224
        %p536 = pneg %p221
        %p537 = pneg %p245
        %p538 = pneg %p242
        %p539 = pneg %p266
        %p540 = pneg %p263
        %p541 = pneg %p287
        %p542 = pneg %p284
        %p543 = pneg %p308
        %p544 = pneg %p305
        %p545 = pneg %p329
        %p546 = pneg %p326
        %p547 = pneg %p350
        %p548 = pneg %p347
        %p549 = pneg %p371
        %p550 = pneg %p368
        %p551 = pneg %p399
        %p552 = pneg %p396
        %s553 = sand.u32 %s386, 1
        %s554 = scalar_lea.sflag [#allocation8], %s553
        %s555 = sand.u32 %s386, 1
        %s556 = smul.addr %s555, 4
        %s557 = scalar_lea.vmem [#allocation9], %s556
        %p558 = scmp.lt.s32.totalorder %s36, 1
        %s559 = scalar_select %p558, %s36, 1
        %p560 = scmp.lt.s32.totalorder %s37, 0
        %s561 = scalar_select %p560, %s37, 0
        %s562 = sadd.s32 %s561, %s559
        %s563 = smul.addr %s562, 4
        %s564 = scalar_lea.vmem %s0, %s563
        %p565 = scmp.lt.s32.totalorder %s36, 1
        %s566 = scalar_select %p565, %s36, 1
        %s567 = smul.addr %s566, 8
        %s568 = scalar_lea.vmem %s2, %s567
        %v570 = vld [vmem:[%s568] sm:$0x3f]
        %p571 = scmp.eq.s32.totalorder %s37, 0
        // Predicated region
        $region85: #{tpu_custom_call.1} parent=79 // pred_check
          %p572 = pneg %p571
        $region86: #{tpu_custom_call.1} parent=79 // pred_check_branch
          %574 = sbr.rel (%p572) target = $region88
        $region87: #{tpu_custom_call.1} parent=79 // pred_region
          %v575 = vld [vmem:[%s500] sm:$0xf]
          %v576 = vunpack.c.l.bf16 %v575
          %vm577 = vcmask 261120
          %v578 = vsel %vm577, %v576, 0.0
          %579 = vadd.xlane.f32.xlu0 %v578
          %v580 = vpop.xlane.xlu0 %579
          %v581 = vrcp.pop 32.0
          %v582 = vmul.f32 %v580, %v581
          %v583 = vsub.f32 %v576, %v582
          %v584 = vmul.f32 %v583, %v583
          %v585 = vsel %vm577, %v584, 0.0
          %586 = vadd.xlane.f32.xlu0 %v585
          %v587 = vpop.xlane.xlu0 %586
          %v588 = vmul.f32 %v587, %v581
          %v589 = vadd.f32 %v588, 1e-06
          %v590 = vrsqrt.pop %v589
          %v591 = vmul.f32 %v583, %v590
          %v592 = vadd.f32 %v570, 1.0
          %v593 = vlaneseq
          %v594 = vshrl.u32 %v593, 7
          %v595 = vsub.s32 1, %v594
          %v596 = vrot.slane %v592, %v595
          %v597 = vmul.f32 %v591, %v596
          %v598 = vlaneseq
          %v599 = vshrl.u32 %v598, 7
          %v600 = vsub.s32 0, %v599
          %v601 = vrot.slane %v570, %v600
          %v602 = vadd.f32 %v597, %v601
          %v603 = vpack.c.bf16 %v602, %v602
          %v604 = vld [vmem:[%s5] sm:$0xf]
          %v605 = vld [vmem:[%s5 + $0x4] sm:$0xf]
          %v606 = vld [vmem:[%s5 + $0x8] sm:$0xf]
          %v607 = vld [vmem:[%s5 + $0xc] sm:$0xf]
          %v608 = vld [vmem:[%s6] sm:$0x1]
          %v610 = vlaneseq
          %v611 = vshrl.u32 %v610, 7
          %v612 = vsub.s32 0, %v611
          %v613 = vrot.slane %v608, %v612
          %v619 = vunpack.c.l.b16 %v604
          %v620 = vunpack.c.l.b16 %v605
          %v621 = vunpack.c.l.b16 %v606
          %v622 = vunpack.c.l.b16 %v607
          %v623 = vpack.c.b16 %v620, %v619
          %v624 = vpack.c.b16 %v622, %v621
          %v628 = vsel %vm577, %v603, 0
          %630 = vmatprep.subr.bf16.mxu0 0
          %631 = vmatpush1.bf16.msra.mxu0 %v623
          %632 = vmatprep.subr.bf16.mxu0 0
          %633 = vmatpush1.bf16.msra.mxu0 %v624
          %634 = vmatprep.subr.bf16.mxu0 0
          %635 = vmatpush1.bf16.msra.mxu0 0
          %636 = vmatprep.subr.bf16.mxu0 0
          %637 = vmatpush1.bf16.msra.mxu0 0
          %638 = vmatprep.subr.bf16.mxu0 0
          %639 = vmatpush1.bf16.msra.mxu0 0
          %640 = vmatprep.subr.bf16.mxu0 0
          %641 = vmatpush1.bf16.msra.mxu0 0
          %642 = vmatprep.subr.bf16.mxu0 0
          %643 = vmatpush1.bf16.msra.mxu0 0
          %644 = vmatprep.subr.bf16.mxu0 0
          %645 = vmatpush1.bf16.msra.mxu0 0
          %646 = vmatprep.subr.bf16.mxu0 0
          %647 = vmatpush1.bf16.msra.mxu0 0
          %648 = vmatprep.subr.bf16.mxu0 0
          %649 = vmatpush1.bf16.msra.mxu0 0
          %650 = vmatprep.subr.bf16.mxu0 0
          %651 = vmatpush1.bf16.msra.mxu0 0
          %652 = vmatprep.subr.bf16.mxu0 0
          %653 = vmatpush1.bf16.msra.mxu0 0
          %654 = vmatprep.subr.bf16.mxu0 0
          %655 = vmatpush1.bf16.msra.mxu0 0
          %656 = vmatprep.subr.bf16.mxu0 0
          %657 = vmatpush1.bf16.msra.mxu0 0
          %658 = vmatprep.subr.bf16.mxu0 0
          %659 = vmatpush1.bf16.msra.mxu0 0
          %660 = vmatprep.subr.bf16.mxu0 0
          %661 = vmatpush1.bf16.msra.mxu0 0
          %662 = vmatprep.mubr.bf16.mxu0 0
          %663 = vmatmul.mubr.bf16.gmra.mrb[0].mxu0 %v628
          %v664 = vpop.f32.mrb[0].mxu0
          %v665 = vadd.f32 %v613, %v664
          %v666 = vpop.f32.mrb[0].mxu0
          %v667 = vpop.f32.mrb[0].mxu0
          %v668 = vpop.f32.mrb[0].mxu0
          %669 = vdwg.mxu0
          %v670 = vpack.c.bf16 %v665, %v665
          %v671 = vld [vmem:[%s7] sm:$0xf]
          %v672 = vld [vmem:[%s7 + $0x4] sm:$0xf]
          %v673 = vld [vmem:[%s7 + $0x8] sm:$0xf]
          %v674 = vld [vmem:[%s7 + $0xc] sm:$0xf]
          %v675 = vld [vmem:[%s8] sm:$0x1]
          %v677 = vlaneseq
          %v678 = vshrl.u32 %v677, 7
          %v679 = vsub.s32 0, %v678
          %v680 = vrot.slane %v675, %v679
          %v686 = vunpack.c.l.b16 %v671
          %v687 = vunpack.c.l.b16 %v672
          %v688 = vunpack.c.l.b16 %v673
          %v689 = vunpack.c.l.b16 %v674
          %v690 = vpack.c.b16 %v687, %v686
          %v691 = vpack.c.b16 %v689, %v688
          %694 = vmatprep.subr.bf16.mxu0 0
          %695 = vmatpush1.bf16.msra.mxu0 %v690
          %696 = vmatprep.subr.bf16.mxu0 0
          %697 = vmatpush1.bf16.msra.mxu0 %v691
          %698 = vmatprep.subr.bf16.mxu0 0
          %699 = vmatpush1.bf16.msra.mxu0 0
          %700 = vmatprep.subr.bf16.mxu0 0
          %701 = vmatpush1.bf16.msra.mxu0 0
          %702 = vmatprep.subr.bf16.mxu0 0
          %703 = vmatpush1.bf16.msra.mxu0 0
          %704 = vmatprep.subr.bf16.mxu0 0
          %705 = vmatpush1.bf16.msra.mxu0 0
          %706 = vmatprep.subr.bf16.mxu0 0
          %707 = vmatpush1.bf16.msra.mxu0 0
          %708 = vmatprep.subr.bf16.mxu0 0
          %709 = vmatpush1.bf16.msra.mxu0 0
          %710 = vmatprep.subr.bf16.mxu0 0
          %711 = vmatpush1.bf16.msra.mxu0 0
          %712 = vmatprep.subr.bf16.mxu0 0
          %713 = vmatpush1.bf16.msra.mxu0 0
          %714 = vmatprep.subr.bf16.mxu0 0
          %715 = vmatpush1.bf16.msra.mxu0 0
          %716 = vmatprep.subr.bf16.mxu0 0
          %717 = vmatpush1.bf16.msra.mxu0 0
          %718 = vmatprep.subr.bf16.mxu0 0
          %719 = vmatpush1.bf16.msra.mxu0 0
          %720 = vmatprep.subr.bf16.mxu0 0
          %721 = vmatpush1.bf16.msra.mxu0 0
          %722 = vmatprep.subr.bf16.mxu0 0
          %723 = vmatpush1.bf16.msra.mxu0 0
          %724 = vmatprep.subr.bf16.mxu0 0
          %725 = vmatpush1.bf16.msra.mxu0 0
          %726 = vmatprep.mubr.bf16.mxu0 0
          %727 = vmatmul.mubr.bf16.gmra.mrb[0].mxu0 %v628
          %v728 = vpop.f32.mrb[0].mxu0
          %v729 = vadd.f32 %v680, %v728
          %v730 = vpop.f32.mrb[0].mxu0
          %v731 = vpop.f32.mrb[0].mxu0
          %v732 = vpop.f32.mrb[0].mxu0
          %733 = vdwg.mxu0
          %v734 = vpack.c.bf16 %v729, %v729
          %vm735 = vcmask 60416
          %736 = vst.msk [vmem:[#allocation2] sm:$0xf] %vm735, %v670
          %737 = vst.msk [vmem:[#allocation3] sm:$0xf] %vm735, %v734
          %v739 = vunpack.c.l.b16 %v670
          %v740 = vpack.c.b16 %v739, %v739
          %741 = vrot.lane.b32.xlu0 %v740, 120
          %v742 = vpop.permute.xlu0 %741
          %s744 = scalar_lea.vmem [#allocation2], 4
          %745 = vst.msk [vmem:[%s744] sm:$0xf] %vm735, %v742
          %v747 = vunpack.c.l.b16 %v734
          %v748 = vpack.c.b16 %v747, %v747
          %749 = vrot.lane.b32.xlu0 %v748, 120
          %v750 = vpop.permute.xlu0 %749
          %s752 = scalar_lea.vmem [#allocation3], 4
          %753 = vst.msk [vmem:[%s752] sm:$0xf] %vm735, %v750
          %754 = vrot.lane.b32.xlu0 %v740, 112
          %v755 = vpop.permute.xlu0 %754
          %s757 = scalar_lea.vmem [#allocation2], 8
          %758 = vst.msk [vmem:[%s757] sm:$0xf] %vm735, %v755
          %759 = vrot.lane.b32.xlu0 %v748, 112
          %v760 = vpop.permute.xlu0 %759
          %s762 = scalar_lea.vmem [#allocation3], 8
          %763 = vst.msk [vmem:[%s762] sm:$0xf] %vm735, %v760
          %764 = vrot.lane.b32.xlu0 %v740, 104
          %v765 = vpop.permute.xlu0 %764
          %s767 = scalar_lea.vmem [#allocation2], 12
          %768 = vst.msk [vmem:[%s767] sm:$0xf] %vm735, %v765
          %769 = vrot.lane.b32.xlu0 %v748, 104
          %v770 = vpop.permute.xlu0 %769
          %s772 = scalar_lea.vmem [#allocation3], 12
          %773 = vst.msk [vmem:[%s772] sm:$0xf] %vm735, %v770
        $region88: #{tpu_custom_call.1} parent=79 // pred_fallthru
          _
        %v774 = vld [vmem:[%s564] sm:$0xf]
        %v775 = vunpack.c.l.bf16 %v774
        %vm776 = vcmask 261120
        %v777 = vsel %vm776, %v775, 0.0
        %778 = vadd.xlane.f32.xlu0 %v777
        %v779 = vpop.xlane.xlu0 %778
        %v780 = vrcp.pop 32.0
        %v781 = vmul.f32 %v779, %v780
        %v782 = vsub.f32 %v775, %v781
        %v783 = vmul.f32 %v782, %v782
        %v784 = vsel %vm776, %v783, 0.0
        %785 = vadd.xlane.f32.xlu0 %v784
        %v786 = vpop.xlane.xlu0 %785
        %v787 = vmul.f32 %v786, %v780
        %v788 = vadd.f32 %v787, 1e-06
        %v789 = vrsqrt.pop %v788
        %v790 = vmul.f32 %v782, %v789
        %v791 = vadd.f32 %v570, 1.0
        %v792 = vlaneseq
        %v793 = vshrl.u32 %v792, 7
        %v794 = vsub.s32 1, %v793
        %v795 = vrot.slane %v791, %v794
        %v796 = vmul.f32 %v790, %v795
        %v797 = vlaneseq
        %v798 = vshrl.u32 %v797, 7
        %v799 = vsub.s32 0, %v798
        %v800 = vrot.slane %v570, %v799
        %v801 = vadd.f32 %v796, %v800
        %v802 = vpack.c.bf16 %v801, %v801
        %v803 = vld [vmem:[%s3] sm:$0xf]
        %v804 = vld [vmem:[%s3 + $0x4] sm:$0xf]
        %v805 = vld [vmem:[%s3 + $0x8] sm:$0xf]
        %v806 = vld [vmem:[%s3 + $0xc] sm:$0xf]
        %v807 = vld [vmem:[%s4] sm:$0x1]
        %v809 = vlaneseq
        %v810 = vshrl.u32 %v809, 7
        %v811 = vsub.s32 0, %v810
        %v812 = vrot.slane %v807, %v811
        %v818 = vunpack.c.l.b16 %v803
        %v819 = vunpack.c.l.b16 %v804
        %v820 = vunpack.c.l.b16 %v805
        %v821 = vunpack.c.l.b16 %v806
        %v822 = vpack.c.b16 %v819, %v818
        %v823 = vpack.c.b16 %v821, %v820
        %v827 = vsel %vm776, %v802, 0
        %829 = vmatprep.subr.bf16.mxu0 0
        %830 = vmatpush1.bf16.msra.mxu0 %v822
        %831 = vmatprep.subr.bf16.mxu0 0
        %832 = vmatpush1.bf16.msra.mxu0 %v823
        %833 = vmatprep.subr.bf16.mxu0 0
        %834 = vmatpush1.bf16.msra.mxu0 0
        %835 = vmatprep.subr.bf16.mxu0 0
        %836 = vmatpush1.bf16.msra.mxu0 0
        %837 = vmatprep.subr.bf16.mxu0 0
        %838 = vmatpush1.bf16.msra.mxu0 0
        %839 = vmatprep.subr.bf16.mxu0 0
        %840 = vmatpush1.bf16.msra.mxu0 0
        %841 = vmatprep.subr.bf16.mxu0 0
        %842 = vmatpush1.bf16.msra.mxu0 0
        %843 = vmatprep.subr.bf16.mxu0 0
        %844 = vmatpush1.bf16.msra.mxu0 0
        %845 = vmatprep.subr.bf16.mxu0 0
        %846 = vmatpush1.bf16.msra.mxu0 0
        %847 = vmatprep.subr.bf16.mxu0 0
        %848 = vmatpush1.bf16.msra.mxu0 0
        %849 = vmatprep.subr.bf16.mxu0 0
        %850 = vmatpush1.bf16.msra.mxu0 0
        %851 = vmatprep.subr.bf16.mxu0 0
        %852 = vmatpush1.bf16.msra.mxu0 0
        %853 = vmatprep.subr.bf16.mxu0 0
        %854 = vmatpush1.bf16.msra.mxu0 0
        %855 = vmatprep.subr.bf16.mxu0 0
        %856 = vmatpush1.bf16.msra.mxu0 0
        %857 = vmatprep.subr.bf16.mxu0 0
        %858 = vmatpush1.bf16.msra.mxu0 0
        %859 = vmatprep.subr.bf16.mxu0 0
        %860 = vmatpush1.bf16.msra.mxu0 0
        %861 = vmatprep.mubr.bf16.mxu0 0
        %862 = vmatmul.mubr.bf16.gmra.mrb[0].mxu0 %v827
        %v863 = vpop.f32.mrb[0].mxu0
        %v864 = vadd.f32 %v812, %v863
        %v865 = vpop.f32.mrb[0].mxu0
        %v866 = vpop.f32.mrb[0].mxu0
        %v867 = vpop.f32.mrb[0].mxu0
        %868 = vdwg.mxu0
        %v869 = vpack.c.bf16 %v864, %v864
        %vm870 = vcmask 60416
        %871 = vst.msk [vmem:[#allocation4] sm:$0xf] %vm870, %v869
        %v873 = vunpack.c.l.b16 %v869
        %v874 = vpack.c.b16 %v873, %v873
        %875 = vrot.lane.b32.xlu0 %v874, 120
        %v876 = vpop.permute.xlu0 %875
        %s878 = scalar_lea.vmem [#allocation4], 4
        %879 = vst.msk [vmem:[%s878] sm:$0xf] %vm870, %v876
        %880 = vrot.lane.b32.xlu0 %v874, 112
        %v881 = vpop.permute.xlu0 %880
        %s883 = scalar_lea.vmem [#allocation4], 8
        %884 = vst.msk [vmem:[%s883] sm:$0xf] %vm870, %v881
        %885 = vrot.lane.b32.xlu0 %v874, 104
        %v886 = vpop.permute.xlu0 %885
        %s888 = scalar_lea.vmem [#allocation4], 12
        %889 = vst.msk [vmem:[%s888] sm:$0xf] %vm870, %v886
        %v890 = vld [vmem:[#allocation4] sm:$0xf]
        %v891 = vld [vmem:[#allocation4 + $0x4] sm:$0xf]
        %v892 = vld [vmem:[#allocation4 + $0x8] sm:$0xf]
        %v893 = vld [vmem:[#allocation4 + $0xc] sm:$0xf]
        %v894 = vld [vmem:[#allocation2] sm:$0xf]
        %v895 = vld [vmem:[#allocation2 + $0x4] sm:$0xf]
        %v896 = vld [vmem:[#allocation2 + $0x8] sm:$0xf]
        %v897 = vld [vmem:[#allocation2 + $0xc] sm:$0xf]
        %vm898 = vcmask 64512
        %v900 = vsel %vm898, %v890, 0
        %v903 = vsel %vm898, %v894, 0
        %905 = vmatprep.subr.bf16.mxu0 0
        %906 = vmatpush1.bf16.xpose.msra.mxu0 %v903
        %907 = vmatprep.subr.bf16.mxu0 0
        %908 = vmatpush1.bf16.xpose.msra.mxu0 0
        %909 = vmatprep.subr.bf16.mxu0 0
        %910 = vmatpush1.bf16.xpose.msra.mxu0 0
        %911 = vmatprep.subr.bf16.mxu0 0
        %912 = vmatpush1.bf16.xpose.msra.mxu0 0
        %913 = vmatprep.subr.bf16.mxu0 0
        %914 = vmatpush1.bf16.xpose.msra.mxu0 0
        %915 = vmatprep.subr.bf16.mxu0 0
        %916 = vmatpush1.bf16.xpose.msra.mxu0 0
        %917 = vmatprep.subr.bf16.mxu0 0
        %918 = vmatpush1.bf16.xpose.msra.mxu0 0
        %919 = vmatprep.subr.bf16.mxu0 0
        %920 = vmatpush1.bf16.xpose.msra.mxu0 0
        %921 = vmatprep.subr.bf16.mxu0 0
        %922 = vmatpush1.bf16.xpose.msra.mxu0 0
        %923 = vmatprep.subr.bf16.mxu0 0
        %924 = vmatpush1.bf16.xpose.msra.mxu0 0
        %925 = vmatprep.subr.bf16.mxu0 0
        %926 = vmatpush1.bf16.xpose.msra.mxu0 0
        %927 = vmatprep.subr.bf16.mxu0 0
        %928 = vmatpush1.bf16.xpose.msra.mxu0 0
        %929 = vmatprep.subr.bf16.mxu0 0
        %930 = vmatpush1.bf16.xpose.msra.mxu0 0
        %931 = vmatprep.subr.bf16.mxu0 0
        %932 = vmatpush1.bf16.xpose.msra.mxu0 0
        %933 = vmatprep.subr.bf16.mxu0 0
        %934 = vmatpush1.bf16.xpose.msra.mxu0 0
        %935 = vmatprep.subr.bf16.mxu0 0
        %936 = vmatpush1.bf16.xpose.msra.mxu0 0
        %937 = vmatprep.mubr.bf16.mxu0 0
        %938 = vmatmul.mubr.bf16.gmra.mrb[0].mxu0 %v900
        %v939 = vpop.f32.mrb[0].mxu0
        %v940 = vadd.f32 0.0, %v939
        %v941 = vpop.f32.mrb[0].mxu0
        %v942 = vpop.f32.mrb[0].mxu0
        %v943 = vpop.f32.mrb[0].mxu0
        %944 = vdwg.mxu0
        %v946 = vsel %vm898, %v891, 0
        %v949 = vsel %vm898, %v895, 0
        %951 = vmatprep.subr.bf16.mxu0 0
        %952 = vmatpush1.bf16.xpose.msra.mxu0 %v949
        %953 = vmatprep.subr.bf16.mxu0 0
        %954 = vmatpush1.bf16.xpose.msra.mxu0 0
        %955 = vmatprep.subr.bf16.mxu0 0
        %956 = vmatpush1.bf16.xpose.msra.mxu0 0
        %957 = vmatprep.subr.bf16.mxu0 0
        %958 = vmatpush1.bf16.xpose.msra.mxu0 0
        %959 = vmatprep.subr.bf16.mxu0 0
        %960 = vmatpush1.bf16.xpose.msra.mxu0 0
        %961 = vmatprep.subr.bf16.mxu0 0
        %962 = vmatpush1.bf16.xpose.msra.mxu0 0
        %963 = vmatprep.subr.bf16.mxu0 0
        %964 = vmatpush1.bf16.xpose.msra.mxu0 0
        %965 = vmatprep.subr.bf16.mxu0 0
        %966 = vmatpush1.bf16.xpose.msra.mxu0 0
        %967 = vmatprep.subr.bf16.mxu0 0
        %968 = vmatpush1.bf16.xpose.msra.mxu0 0
        %969 = vmatprep.subr.bf16.mxu0 0
        %970 = vmatpush1.bf16.xpose.msra.mxu0 0
        %971 = vmatprep.subr.bf16.mxu0 0
        %972 = vmatpush1.bf16.xpose.msra.mxu0 0
        %973 = vmatprep.subr.bf16.mxu0 0
        %974 = vmatpush1.bf16.xpose.msra.mxu0 0
        %975 = vmatprep.subr.bf16.mxu0 0
        %976 = vmatpush1.bf16.xpose.msra.mxu0 0
        %977 = vmatprep.subr.bf16.mxu0 0
        %978 = vmatpush1.bf16.xpose.msra.mxu0 0
        %979 = vmatprep.subr.bf16.mxu0 0
        %980 = vmatpush1.bf16.xpose.msra.mxu0 0
        %981 = vmatprep.subr.bf16.mxu0 0
        %982 = vmatpush1.bf16.xpose.msra.mxu0 0
        %983 = vmatprep.mubr.bf16.mxu0 0
        %984 = vmatmul.mubr.bf16.gmra.mrb[0].mxu0 %v946
        %v985 = vpop.f32.mrb[0].mxu0
        %v986 = vadd.f32 0.0, %v985
        %v987 = vpop.f32.mrb[0].mxu0
        %v988 = vpop.f32.mrb[0].mxu0
        %v989 = vpop.f32.mrb[0].mxu0
        %990 = vdwg.mxu0
        %v992 = vsel %vm898, %v892, 0
        %v995 = vsel %vm898, %v896, 0
        %997 = vmatprep.subr.bf16.mxu0 0
        %998 = vmatpush1.bf16.xpose.msra.mxu0 %v995
        %999 = vmatprep.subr.bf16.mxu0 0
        %1000 = vmatpush1.bf16.xpose.msra.mxu0 0
        %1001 = vmatprep.subr.bf16.mxu0 0
        %1002 = vmatpush1.bf16.xpose.msra.mxu0 0
        %1003 = vmatprep.subr.bf16.mxu0 0
        %1004 = vmatpush1.bf16.xpose.msra.mxu0 0
        %1005 = vmatprep.subr.bf16.mxu0 0
        %1006 = vmatpush1.bf16.xpose.msra.mxu0 0
        %1007 = vmatprep.subr.bf16.mxu0 0
        %1008 = vmatpush1.bf16.xpose.msra.mxu0 0
        %1009 = vmatprep.subr.bf16.mxu0 0
        %1010 = vmatpush1.bf16.xpose.msra.mxu0 0
        %1011 = vmatprep.subr.bf16.mxu0 0
        %1012 = vmatpush1.bf16.xpose.msra.mxu0 0
        %1013 = vmatprep.subr.bf16.mxu0 0
        %1014 = vmatpush1.bf16.xpose.msra.mxu0 0
        %1015 = vmatprep.subr.bf16.mxu0 0
        %1016 = vmatpush1.bf16.xpose.msra.mxu0 0
        %1017 = vmatprep.subr.bf16.mxu0 0
        %1018 = vmatpush1.bf16.xpose.msra.mxu0 0
        %1019 = vmatprep.subr.bf16.mxu0 0
        %1020 = vmatpush1.bf16.xpose.msra.mxu0 0
        %1021 = vmatprep.subr.bf16.mxu0 0
        %1022 = vmatpush1.bf16.xpose.msra.mxu0 0
        %1023 = vmatprep.subr.bf16.mxu0 0
        %1024 = vmatpush1.bf16.xpose.msra.mxu0 0
        %1025 = vmatprep.subr.bf16.mxu0 0
        %1026 = vmatpush1.bf16.xpose.msra.mxu0 0
        %1027 = vmatprep.subr.bf16.mxu0 0
        %1028 = vmatpush1.bf16.xpose.msra.mxu0 0
        %1029 = vmatprep.mubr.bf16.mxu0 0
        %1030 = vmatmul.mubr.bf16.gmra.mrb[0].mxu0 %v992
        %v1031 = vpop.f32.mrb[0].mxu0
        %v1032 = vadd.f32 0.0, %v1031
        %v1033 = vpop.f32.mrb[0].mxu0
        %v1034 = vpop.f32.mrb[0].mxu0
        %v1035 = vpop.f32.mrb[0].mxu0
        %1036 = vdwg.mxu0
        %v1038 = vsel %vm898, %v893, 0
        %v1041 = vsel %vm898, %v897, 0
        %1043 = vmatprep.subr.bf16.mxu0 0
        %1044 = vmatpush1.bf16.xpose.msra.mxu0 %v1041
        %1045 = vmatprep.subr.bf16.mxu0 0
        %1046 = vmatpush1.bf16.xpose.msra.mxu0 0
        %1047 = vmatprep.subr.bf16.mxu0 0
        %1048 = vmatpush1.bf16.xpose.msra.mxu0 0
        %1049 = vmatprep.subr.bf16.mxu0 0
        %1050 = vmatpush1.bf16.xpose.msra.mxu0 0
        %1051 = vmatprep.subr.bf16.mxu0 0
        %1052 = vmatpush1.bf16.xpose.msra.mxu0 0
        %1053 = vmatprep.subr.bf16.mxu0 0
        %1054 = vmatpush1.bf16.xpose.msra.mxu0 0
        %1055 = vmatprep.subr.bf16.mxu0 0
        %1056 = vmatpush1.bf16.xpose.msra.mxu0 0
        %1057 = vmatprep.subr.bf16.mxu0 0
        %1058 = vmatpush1.bf16.xpose.msra.mxu0 0
        %1059 = vmatprep.subr.bf16.mxu0 0
        %1060 = vmatpush1.bf16.xpose.msra.mxu0 0
        %1061 = vmatprep.subr.bf16.mxu0 0
        %1062 = vmatpush1.bf16.xpose.msra.mxu0 0
        %1063 = vmatprep.subr.bf16.mxu0 0
        %1064 = vmatpush1.bf16.xpose.msra.mxu0 0
        %1065 = vmatprep.subr.bf16.mxu0 0
        %1066 = vmatpush1.bf16.xpose.msra.mxu0 0
        %1067 = vmatprep.subr.bf16.mxu0 0
        %1068 = vmatpush1.bf16.xpose.msra.mxu0 0
        %1069 = vmatprep.subr.bf16.mxu0 0
        %1070 = vmatpush1.bf16.xpose.msra.mxu0 0
        %1071 = vmatprep.subr.bf16.mxu0 0
        %1072 = vmatpush1.bf16.xpose.msra.mxu0 0
        %1073 = vmatprep.subr.bf16.mxu0 0
        %1074 = vmatpush1.bf16.xpose.msra.mxu0 0
        %1075 = vmatprep.mubr.bf16.mxu0 0
        %1076 = vmatmul.mubr.bf16.gmra.mrb[0].mxu0 %v1038
        %v1077 = vpop.f32.mrb[0].mxu0
        %v1078 = vadd.f32 0.0, %v1077
        %v1079 = vpop.f32.mrb[0].mxu0
        %v1080 = vpop.f32.mrb[0].mxu0
        %v1081 = vpop.f32.mrb[0].mxu0
        %1082 = vdwg.mxu0
        %v1083 = vsel %vm898, %v940, -inf
        %1084 = vmax.xlane.f32.xlu0 %v1083
        %v1085 = vpop.xlane.xlu0 %1084
        %v1086 = vsel %vm898, %v986, -inf
        %1087 = vmax.xlane.f32.xlu0 %v1086
        %v1088 = vpop.xlane.xlu0 %1087
        %v1089 = vsel %vm898, %v1032, -inf
        %1090 = vmax.xlane.f32.xlu0 %v1089
        %v1091 = vpop.xlane.xlu0 %1090
        %v1092 = vsel %vm898, %v1078, -inf
        %1093 = vmax.xlane.f32.xlu0 %v1092
        %v1094 = vpop.xlane.xlu0 %1093
        %v1095 = vsub.f32 %v940, %v1085
        %v1096 = vsub.f32 %v986, %v1088
        %v1097 = vsub.f32 %v1032, %v1091
        %v1098 = vsub.f32 %v1078, %v1094
        %v1099 = vmul.f32 %v1095, 1.442695
        %v1100 = vpow.pop %v1099
        %v1101 = vmul.f32 %v1096, 1.442695
        %v1102 = vpow.pop %v1101
        %v1103 = vmul.f32 %v1097, 1.442695
        %v1104 = vpow.pop %v1103
        %v1105 = vmul.f32 %v1098, 1.442695
        %v1106 = vpow.pop %v1105
        %v1107 = vsel %vm898, %v1100, 0.0
        %1108 = vadd.xlane.f32.xlu0 %v1107
        %v1109 = vpop.xlane.xlu0 %1108
        %v1110 = vsel %vm898, %v1102, 0.0
        %1111 = vadd.xlane.f32.xlu0 %v1110
        %v1112 = vpop.xlane.xlu0 %1111
        %v1113 = vsel %vm898, %v1104, 0.0
        %1114 = vadd.xlane.f32.xlu0 %v1113
        %v1115 = vpop.xlane.xlu0 %1114
        %v1116 = vsel %vm898, %v1106, 0.0
        %1117 = vadd.xlane.f32.xlu0 %v1116
        %v1118 = vpop.xlane.xlu0 %1117
        %v1119 = vrcp.pop %v1109
        %v1120 = vrcp.pop %v1112
        %v1121 = vrcp.pop %v1115
        %v1122 = vrcp.pop %v1118
        %v1123 = vmul.f32 %v1100, %v1119
        %v1124 = vmul.f32 %v1102, %v1120
        %v1125 = vmul.f32 %v1104, %v1121
        %v1126 = vmul.f32 %v1106, %v1122
        %v1127 = vpack.c.bf16 %v1123, %v1123
        %v1128 = vpack.c.bf16 %v1124, %v1124
        %v1129 = vpack.c.bf16 %v1125, %v1125
        %v1130 = vpack.c.bf16 %v1126, %v1126
        %v1131 = vld [vmem:[#allocation3] sm:$0xf]
        %v1132 = vld [vmem:[#allocation3 + $0x4] sm:$0xf]
        %v1133 = vld [vmem:[#allocation3 + $0x8] sm:$0xf]
        %v1134 = vld [vmem:[#allocation3 + $0xc] sm:$0xf]
        %v1136 = vsel %vm898, %v1127, 0
        %vm1138 = vcmask 1043456
        %v1140 = vsel %vm1138, %v1131, 0
        %1142 = vmatprep.subr.bf16.mxu0 0
        %1143 = vmatpush1.bf16.msra.mxu0 %v1140
        %1144 = vmatprep.subr.bf16.mxu0 0
        %1145 = vmatpush1.bf16.msra.mxu0 0
        %1146 = vmatprep.subr.bf16.mxu0 0
        %1147 = vmatpush1.bf16.msra.mxu0 0
        %1148 = vmatprep.subr.bf16.mxu0 0
        %1149 = vmatpush1.bf16.msra.mxu0 0
        %1150 = vmatprep.subr.bf16.mxu0 0
        %1151 = vmatpush1.bf16.msra.mxu0 0
        %1152 = vmatprep.subr.bf16.mxu0 0
        %1153 = vmatpush1.bf16.msra.mxu0 0
        %1154 = vmatprep.subr.bf16.mxu0 0
        %1155 = vmatpush1.bf16.msra.mxu0 0
        %1156 = vmatprep.subr.bf16.mxu0 0
        %1157 = vmatpush1.bf16.msra.mxu0 0
        %1158 = vmatprep.subr.bf16.mxu0 0
        %1159 = vmatpush1.bf16.msra.mxu0 0
        %1160 = vmatprep.subr.bf16.mxu0 0
        %1161 = vmatpush1.bf16.msra.mxu0 0
        %1162 = vmatprep.subr.bf16.mxu0 0
        %1163 = vmatpush1.bf16.msra.mxu0 0
        %1164 = vmatprep.subr.bf16.mxu0 0
        %1165 = vmatpush1.bf16.msra.mxu0 0
        %1166 = vmatprep.subr.bf16.mxu0 0
        %1167 = vmatpush1.bf16.msra.mxu0 0
        %1168 = vmatprep.subr.bf16.mxu0 0
        %1169 = vmatpush1.bf16.msra.mxu0 0
        %1170 = vmatprep.subr.bf16.mxu0 0
        %1171 = vmatpush1.bf16.msra.mxu0 0
        %1172 = vmatprep.subr.bf16.mxu0 0
        %1173 = vmatpush1.bf16.msra.mxu0 0
        %1174 = vmatprep.mubr.bf16.mxu0 0
        %1175 = vmatmul.mubr.bf16.gmra.mrb[0].mxu0 %v1136
        %v1176 = vpop.f32.mrb[0].mxu0
        %v1177 = vadd.f32 0.0, %v1176
        %v1178 = vpop.f32.mrb[0].mxu0
        %v1179 = vpop.f32.mrb[0].mxu0
        %v1180 = vpop.f32.mrb[0].mxu0
        %1181 = vdwg.mxu0
        %v1183 = vsel %vm898, %v1128, 0
        %v1186 = vsel %vm1138, %v1132, 0
        %1188 = vmatprep.subr.bf16.mxu0 0
        %1189 = vmatpush1.bf16.msra.mxu0 %v1186
        %1190 = vmatprep.subr.bf16.mxu0 0
        %1191 = vmatpush1.bf16.msra.mxu0 0
        %1192 = vmatprep.subr.bf16.mxu0 0
        %1193 = vmatpush1.bf16.msra.mxu0 0
        %1194 = vmatprep.subr.bf16.mxu0 0
        %1195 = vmatpush1.bf16.msra.mxu0 0
        %1196 = vmatprep.subr.bf16.mxu0 0
        %1197 = vmatpush1.bf16.msra.mxu0 0
        %1198 = vmatprep.subr.bf16.mxu0 0
        %1199 = vmatpush1.bf16.msra.mxu0 0
        %1200 = vmatprep.subr.bf16.mxu0 0
        %1201 = vmatpush1.bf16.msra.mxu0 0
        %1202 = vmatprep.subr.bf16.mxu0 0
        %1203 = vmatpush1.bf16.msra.mxu0 0
        %1204 = vmatprep.subr.bf16.mxu0 0
        %1205 = vmatpush1.bf16.msra.mxu0 0
        %1206 = vmatprep.subr.bf16.mxu0 0
        %1207 = vmatpush1.bf16.msra.mxu0 0
        %1208 = vmatprep.subr.bf16.mxu0 0
        %1209 = vmatpush1.bf16.msra.mxu0 0
        %1210 = vmatprep.subr.bf16.mxu0 0
        %1211 = vmatpush1.bf16.msra.mxu0 0
        %1212 = vmatprep.subr.bf16.mxu0 0
        %1213 = vmatpush1.bf16.msra.mxu0 0
        %1214 = vmatprep.subr.bf16.mxu0 0
        %1215 = vmatpush1.bf16.msra.mxu0 0
        %1216 = vmatprep.subr.bf16.mxu0 0
        %1217 = vmatpush1.bf16.msra.mxu0 0
        %1218 = vmatprep.subr.bf16.mxu0 0
        %1219 = vmatpush1.bf16.msra.mxu0 0
        %1220 = vmatprep.mubr.bf16.mxu0 0
        %1221 = vmatmul.mubr.bf16.gmra.mrb[0].mxu0 %v1183
        %v1222 = vpop.f32.mrb[0].mxu0
        %v1223 = vadd.f32 0.0, %v1222
        %v1224 = vpop.f32.mrb[0].mxu0
        %v1225 = vpop.f32.mrb[0].mxu0
        %v1226 = vpop.f32.mrb[0].mxu0
        %1227 = vdwg.mxu0
        %v1229 = vsel %vm898, %v1129, 0
        %v1232 = vsel %vm1138, %v1133, 0
        %1234 = vmatprep.subr.bf16.mxu0 0
        %1235 = vmatpush1.bf16.msra.mxu0 %v1232
        %1236 = vmatprep.subr.bf16.mxu0 0
        %1237 = vmatpush1.bf16.msra.mxu0 0
        %1238 = vmatprep.subr.bf16.mxu0 0
        %1239 = vmatpush1.bf16.msra.mxu0 0
        %1240 = vmatprep.subr.bf16.mxu0 0
        %1241 = vmatpush1.bf16.msra.mxu0 0
        %1242 = vmatprep.subr.bf16.mxu0 0
        %1243 = vmatpush1.bf16.msra.mxu0 0
        %1244 = vmatprep.subr.bf16.mxu0 0
        %1245 = vmatpush1.bf16.msra.mxu0 0
        %1246 = vmatprep.subr.bf16.mxu0 0
        %1247 = vmatpush1.bf16.msra.mxu0 0
        %1248 = vmatprep.subr.bf16.mxu0 0
        %1249 = vmatpush1.bf16.msra.mxu0 0
        %1250 = vmatprep.subr.bf16.mxu0 0
        %1251 = vmatpush1.bf16.msra.mxu0 0
        %1252 = vmatprep.subr.bf16.mxu0 0
        %1253 = vmatpush1.bf16.msra.mxu0 0
        %1254 = vmatprep.subr.bf16.mxu0 0
        %1255 = vmatpush1.bf16.msra.mxu0 0
        %1256 = vmatprep.subr.bf16.mxu0 0
        %1257 = vmatpush1.bf16.msra.mxu0 0
        %1258 = vmatprep.subr.bf16.mxu0 0
        %1259 = vmatpush1.bf16.msra.mxu0 0
        %1260 = vmatprep.subr.bf16.mxu0 0
        %1261 = vmatpush1.bf16.msra.mxu0 0
        %1262 = vmatprep.subr.bf16.mxu0 0
        %1263 = vmatpush1.bf16.msra.mxu0 0
        %1264 = vmatprep.subr.bf16.mxu0 0
        %1265 = vmatpush1.bf16.msra.mxu0 0
        %1266 = vmatprep.mubr.bf16.mxu0 0
        %1267 = vmatmul.mubr.bf16.gmra.mrb[0].mxu0 %v1229
        %v1268 = vpop.f32.mrb[0].mxu0
        %v1269 = vadd.f32 0.0, %v1268
        %v1270 = vpop.f32.mrb[0].mxu0
        %v1271 = vpop.f32.mrb[0].mxu0
        %v1272 = vpop.f32.mrb[0].mxu0
        %1273 = vdwg.mxu0
        %v1275 = vsel %vm898, %v1130, 0
        %v1278 = vsel %vm1138, %v1134, 0
        %1280 = vmatprep.subr.bf16.mxu0 0
        %1281 = vmatpush1.bf16.msra.mxu0 %v1278
        %1282 = vmatprep.subr.bf16.mxu0 0
        %1283 = vmatpush1.bf16.msra.mxu0 0
        %1284 = vmatprep.subr.bf16.mxu0 0
        %1285 = vmatpush1.bf16.msra.mxu0 0
        %1286 = vmatprep.subr.bf16.mxu0 0
        %1287 = vmatpush1.bf16.msra.mxu0 0
        %1288 = vmatprep.subr.bf16.mxu0 0
        %1289 = vmatpush1.bf16.msra.mxu0 0
        %1290 = vmatprep.subr.bf16.mxu0 0
        %1291 = vmatpush1.bf16.msra.mxu0 0
        %1292 = vmatprep.subr.bf16.mxu0 0
        %1293 = vmatpush1.bf16.msra.mxu0 0
        %1294 = vmatprep.subr.bf16.mxu0 0
        %1295 = vmatpush1.bf16.msra.mxu0 0
        %1296 = vmatprep.subr.bf16.mxu0 0
        %1297 = vmatpush1.bf16.msra.mxu0 0
        %1298 = vmatprep.subr.bf16.mxu0 0
        %1299 = vmatpush1.bf16.msra.mxu0 0
        %1300 = vmatprep.subr.bf16.mxu0 0
        %1301 = vmatpush1.bf16.msra.mxu0 0
        %1302 = vmatprep.subr.bf16.mxu0 0
        %1303 = vmatpush1.bf16.msra.mxu0 0
        %1304 = vmatprep.subr.bf16.mxu0 0
        %1305 = vmatpush1.bf16.msra.mxu0 0
        %1306 = vmatprep.subr.bf16.mxu0 0
        %1307 = vmatpush1.bf16.msra.mxu0 0
        %1308 = vmatprep.subr.bf16.mxu0 0
        %1309 = vmatpush1.bf16.msra.mxu0 0
        %1310 = vmatprep.subr.bf16.mxu0 0
        %1311 = vmatpush1.bf16.msra.mxu0 0
        %1312 = vmatprep.mubr.bf16.mxu0 0
        %1313 = vmatmul.mubr.bf16.gmra.mrb[0].mxu0 %v1275
        %v1314 = vpop.f32.mrb[0].mxu0
        %v1315 = vadd.f32 0.0, %v1314
        %v1316 = vpop.f32.mrb[0].mxu0
        %v1317 = vpop.f32.mrb[0].mxu0
        %v1318 = vpop.f32.mrb[0].mxu0
        %1319 = vdwg.mxu0
        %v1320 = vpack.c.bf16 %v1177, %v1177
        %v1321 = vpack.c.bf16 %v1223, %v1223
        %v1322 = vpack.c.bf16 %v1269, %v1269
        %v1323 = vpack.c.bf16 %v1315, %v1315
        %1324 = vst.msk [vmem:[#allocation5] sm:$0xf] %vm870, %v1320
        %v1326 = vunpack.c.l.b16 %v1321
        %v1327 = vpack.c.b16 %v1326, %v1326
        %1328 = vrot.lane.b32.xlu0 %v1327, 8
        %v1329 = vpop.permute.xlu0 %1328
        %vm1331 = vcmask 126016
        %1332 = vst.msk [vmem:[#allocation5] sm:$0xf] %vm1331, %v1329
        %v1334 = vunpack.c.l.b16 %v1322
        %v1335 = vpack.c.b16 %v1334, %v1334
        %1336 = vrot.lane.b32.xlu0 %v1335, 16
        %v1337 = vpop.permute.xlu0 %1336
        %vm1339 = vcmask 191616
        %1340 = vst.msk [vmem:[#allocation5] sm:$0xf] %vm1339, %v1337
        %v1342 = vunpack.c.l.b16 %v1323
        %v1343 = vpack.c.b16 %v1342, %v1342
        %1344 = vrot.lane.b32.xlu0 %v1343, 24
        %v1345 = vpop.permute.xlu0 %1344
        %vm1347 = vcmask 257216
        %1348 = vst.msk [vmem:[#allocation5] sm:$0xf] %vm1347, %v1345
        %v1349 = vld [vmem:[#allocation5] sm:$0xf]
        %v1350 = vld [vmem:[%s9] sm:$0xf]
        %v1351 = vld [vmem:[%s9 + $0x4] sm:$0xf]
        %v1352 = vld [vmem:[%s9 + $0x8] sm:$0xf]
        %v1353 = vld [vmem:[%s9 + $0xc] sm:$0xf]
        %v1354 = vld [vmem:[%s10] sm:$0x1]
        %v1356 = vlaneseq
        %v1357 = vshrl.u32 %v1356, 7
        %v1358 = vsub.s32 0, %v1357
        %v1359 = vrot.slane %v1354, %v1358
        %v1365 = vunpack.c.l.b16 %v1350
        %v1366 = vunpack.c.l.b16 %v1351
        %v1367 = vunpack.c.l.b16 %v1352
        %v1368 = vunpack.c.l.b16 %v1353
        %v1369 = vpack.c.b16 %v1366, %v1365
        %v1370 = vpack.c.b16 %v1368, %v1367
        %v1374 = vsel %vm776, %v1349, 0
        %1376 = vmatprep.subr.bf16.mxu0 0
        %1377 = vmatpush1.bf16.msra.mxu0 %v1369
        %1378 = vmatprep.subr.bf16.mxu0 0
        %1379 = vmatpush1.bf16.msra.mxu0 %v1370
        %1380 = vmatprep.subr.bf16.mxu0 0
        %1381 = vmatpush1.bf16.msra.mxu0 0
        %1382 = vmatprep.subr.bf16.mxu0 0
        %1383 = vmatpush1.bf16.msra.mxu0 0
        %1384 = vmatprep.subr.bf16.mxu0 0
        %1385 = vmatpush1.bf16.msra.mxu0 0
        %1386 = vmatprep.subr.bf16.mxu0 0
        %1387 = vmatpush1.bf16.msra.mxu0 0
        %1388 = vmatprep.subr.bf16.mxu0 0
        %1389 = vmatpush1.bf16.msra.mxu0 0
        %1390 = vmatprep.subr.bf16.mxu0 0
        %1391 = vmatpush1.bf16.msra.mxu0 0
        %1392 = vmatprep.subr.bf16.mxu0 0
        %1393 = vmatpush1.bf16.msra.mxu0 0
        %1394 = vmatprep.subr.bf16.mxu0 0
        %1395 = vmatpush1.bf16.msra.mxu0 0
        %1396 = vmatprep.subr.bf16.mxu0 0
        %1397 = vmatpush1.bf16.msra.mxu0 0
        %1398 = vmatprep.subr.bf16.mxu0 0
        %1399 = vmatpush1.bf16.msra.mxu0 0
        %1400 = vmatprep.subr.bf16.mxu0 0
        %1401 = vmatpush1.bf16.msra.mxu0 0
        %1402 = vmatprep.subr.bf16.mxu0 0
        %1403 = vmatpush1.bf16.msra.mxu0 0
        %1404 = vmatprep.subr.bf16.mxu0 0
        %1405 = vmatpush1.bf16.msra.mxu0 0
        %1406 = vmatprep.subr.bf16.mxu0 0
        %1407 = vmatpush1.bf16.msra.mxu0 0
        %1408 = vmatprep.mubr.bf16.mxu0 0
        %1409 = vmatmul.mubr.bf16.gmra.mrb[0].mxu0 %v1374
        %v1410 = vpop.f32.mrb[0].mxu0
        %v1411 = vadd.f32 %v1359, %v1410
        %v1412 = vpop.f32.mrb[0].mxu0
        %v1413 = vpop.f32.mrb[0].mxu0
        %v1414 = vpop.f32.mrb[0].mxu0
        %1415 = vdwg.mxu0
        %v1416 = vlaneseq
        %v1417 = vshrl.u32 %v1416, 7
        %v1418 = vsub.s32 2, %v1417
        %v1419 = vrot.slane %v570, %v1418
        %v1420 = vmul.f32 %v1419, %v1411
        %v1421 = vadd.f32 %v775, %v1420
        %v1422 = vsel %vm776, %v1421, 0.0
        %1423 = vadd.xlane.f32.xlu0 %v1422
        %v1424 = vpop.xlane.xlu0 %1423
        %v1425 = vmul.f32 %v1424, %v780
        %v1426 = vsub.f32 %v1421, %v1425
        %v1427 = vmul.f32 %v1426, %v1426
        %v1428 = vsel %vm776, %v1427, 0.0
        %1429 = vadd.xlane.f32.xlu0 %v1428
        %v1430 = vpop.xlane.xlu0 %1429
        %v1431 = vmul.f32 %v1430, %v780
        %v1432 = vadd.f32 %v1431, 1e-06
        %v1433 = vrsqrt.pop %v1432
        %v1434 = vmul.f32 %v1426, %v1433
        %v1435 = vlaneseq
        %v1436 = vshrl.u32 %v1435, 7
        %v1437 = vsub.s32 4, %v1436
        %v1438 = vrot.slane %v791, %v1437
        %v1439 = vmul.f32 %v1434, %v1438
        %v1440 = vlaneseq
        %v1441 = vshrl.u32 %v1440, 7
        %v1442 = vsub.s32 3, %v1441
        %v1443 = vrot.slane %v570, %v1442
        %v1444 = vadd.f32 %v1439, %v1443
        %v1445 = vpack.c.bf16 %v1444, %v1444
        %v1446 = vld [vmem:[%s11] sm:$0xf]
        %v1447 = vld [vmem:[%s11 + $0x4] sm:$0xf]
        %v1448 = vld [vmem:[%s11 + $0x8] sm:$0xf]
        %v1449 = vld [vmem:[%s11 + $0xc] sm:$0xf]
        %v1450 = vld [vmem:[%s12] sm:$0x1]
        %v1452 = vlaneseq
        %v1453 = vshrl.u32 %v1452, 7
        %v1454 = vsub.s32 0, %v1453
        %v1455 = vrot.slane %v1450, %v1454
        %v1461 = vunpack.c.l.b16 %v1446
        %v1462 = vunpack.c.l.b16 %v1447
        %v1463 = vunpack.c.l.b16 %v1448
        %v1464 = vunpack.c.l.b16 %v1449
        %v1465 = vpack.c.b16 %v1462, %v1461
        %v1466 = vpack.c.b16 %v1464, %v1463
        %v1470 = vsel %vm776, %v1445, 0
        %1472 = vmatprep.subr.bf16.mxu0 0
        %1473 = vmatpush1.bf16.msra.mxu0 %v1465
        %1474 = vmatprep.subr.bf16.mxu0 0
        %1475 = vmatpush1.bf16.msra.mxu0 %v1466
        %1476 = vmatprep.subr.bf16.mxu0 0
        %1477 = vmatpush1.bf16.msra.mxu0 0
        %1478 = vmatprep.subr.bf16.mxu0 0
        %1479 = vmatpush1.bf16.msra.mxu0 0
        %1480 = vmatprep.subr.bf16.mxu0 0
        %1481 = vmatpush1.bf16.msra.mxu0 0
        %1482 = vmatprep.subr.bf16.mxu0 0
        %1483 = vmatpush1.bf16.msra.mxu0 0
        %1484 = vmatprep.subr.bf16.mxu0 0
        %1485 = vmatpush1.bf16.msra.mxu0 0
        %1486 = vmatprep.subr.bf16.mxu0 0
        %1487 = vmatpush1.bf16.msra.mxu0 0
        %1488 = vmatprep.subr.bf16.mxu0 0
        %1489 = vmatpush1.bf16.msra.mxu0 0
        %1490 = vmatprep.subr.bf16.mxu0 0
        %1491 = vmatpush1.bf16.msra.mxu0 0
        %1492 = vmatprep.subr.bf16.mxu0 0
        %1493 = vmatpush1.bf16.msra.mxu0 0
        %1494 = vmatprep.subr.bf16.mxu0 0
        %1495 = vmatpush1.bf16.msra.mxu0 0
        %1496 = vmatprep.subr.bf16.mxu0 0
        %1497 = vmatpush1.bf16.msra.mxu0 0
        %1498 = vmatprep.subr.bf16.mxu0 0
        %1499 = vmatpush1.bf16.msra.mxu0 0
        %1500 = vmatprep.subr.bf16.mxu0 0
        %1501 = vmatpush1.bf16.msra.mxu0 0
        %1502 = vmatprep.subr.bf16.mxu0 0
        %1503 = vmatpush1.bf16.msra.mxu0 0
        %1504 = vmatprep.mubr.bf16.mxu0 0
        %1505 = vmatmul.mubr.bf16.gmra.mrb[0].mxu0 %v1470
        %v1506 = vpop.f32.mrb[0].mxu0
        %v1507 = vadd.f32 %v1455, %v1506
        %v1508 = vpop.f32.mrb[0].mxu0
        %v1509 = vpop.f32.mrb[0].mxu0
        %v1510 = vpop.f32.mrb[0].mxu0
        %1511 = vdwg.mxu0
        %v1512 = vmul.f32 %v1507, 0.5
        %v1513 = vmul.f32 %v1507, 0.044715
        %v1514 = vmul.f32 %v1513, %v1507
        %v1515 = vmul.f32 %v1514, %v1507
        %v1516 = vadd.f32 %v1507, %v1515
        %v1517 = vmul.f32 %v1516, 0.7978846
        %v1518 = vtanh.pop %v1517
        %v1519 = vadd.f32 %v1518, 1.0
        %v1520 = vmul.f32 %v1512, %v1519
        %v1521 = vpack.c.bf16 %v1520, %v1520
        %v1522 = vld [vmem:[%s13] sm:$0xf]
        %v1523 = vld [vmem:[%s13 + $0x4] sm:$0xf]
        %v1524 = vld [vmem:[%s13 + $0x8] sm:$0xf]
        %v1525 = vld [vmem:[%s13 + $0xc] sm:$0xf]
        %v1526 = vld [vmem:[%s13 + $0x10] sm:$0xf]
        %v1527 = vld [vmem:[%s13 + $0x14] sm:$0xf]
        %v1528 = vld [vmem:[%s13 + $0x18] sm:$0xf]
        %v1529 = vld [vmem:[%s13 + $0x1c] sm:$0xf]
        %v1530 = vld [vmem:[%s13 + $0x20] sm:$0xf]
        %v1531 = vld [vmem:[%s13 + $0x24] sm:$0xf]
        %v1532 = vld [vmem:[%s13 + $0x28] sm:$0xf]
        %v1533 = vld [vmem:[%s13 + $0x2c] sm:$0xf]
        %v1534 = vld [vmem:[%s13 + $0x30] sm:$0xf]
        %v1535 = vld [vmem:[%s13 + $0x34] sm:$0xf]
        %v1536 = vld [vmem:[%s13 + $0x38] sm:$0xf]
        %v1537 = vld [vmem:[%s13 + $0x3c] sm:$0xf]
        %v1538 = vld [vmem:[%s14] sm:$0x1]
        %v1540 = vlaneseq
        %v1541 = vshrl.u32 %v1540, 7
        %v1542 = vsub.s32 0, %v1541
        %v1543 = vrot.slane %v1538, %v1542
        %v1561 = vunpack.c.l.b16 %v1522
        %v1562 = vunpack.c.l.b16 %v1523
        %v1563 = vunpack.c.l.b16 %v1524
        %v1564 = vunpack.c.l.b16 %v1525
        %v1565 = vunpack.c.l.b16 %v1526
        %v1566 = vunpack.c.l.b16 %v1527
        %v1567 = vunpack.c.l.b16 %v1528
        %v1568 = vunpack.c.l.b16 %v1529
        %v1569 = vunpack.c.l.b16 %v1530
        %v1570 = vunpack.c.l.b16 %v1531
        %v1571 = vunpack.c.l.b16 %v1532
        %v1572 = vunpack.c.l.b16 %v1533
        %v1573 = vunpack.c.l.b16 %v1534
        %v1574 = vunpack.c.l.b16 %v1535
        %v1575 = vunpack.c.l.b16 %v1536
        %v1576 = vunpack.c.l.b16 %v1537
        %v1577 = vpack.c.b16 %v1562, %v1561
        %v1578 = vpack.c.b16 %v1564, %v1563
        %v1579 = vpack.c.b16 %v1566, %v1565
        %v1580 = vpack.c.b16 %v1568, %v1567
        %v1581 = vpack.c.b16 %v1570, %v1569
        %v1582 = vpack.c.b16 %v1572, %v1571
        %v1583 = vpack.c.b16 %v1574, %v1573
        %v1584 = vpack.c.b16 %v1576, %v1575
        %1593 = vmatprep.subr.bf16.mxu0 0
        %1594 = vmatpush1.bf16.msra.mxu0 %v1577
        %1595 = vmatprep.subr.bf16.mxu0 0
        %1596 = vmatpush1.bf16.msra.mxu0 %v1578
        %1597 = vmatprep.subr.bf16.mxu0 0
        %1598 = vmatpush1.bf16.msra.mxu0 %v1579
        %1599 = vmatprep.subr.bf16.mxu0 0
        %1600 = vmatpush1.bf16.msra.mxu0 %v1580
        %1601 = vmatprep.subr.bf16.mxu0 0
        %1602 = vmatpush1.bf16.msra.mxu0 %v1581
        %1603 = vmatprep.subr.bf16.mxu0 0
        %1604 = vmatpush1.bf16.msra.mxu0 %v1582
        %1605 = vmatprep.subr.bf16.mxu0 0
        %1606 = vmatpush1.bf16.msra.mxu0 %v1583
        %1607 = vmatprep.subr.bf16.mxu0 0
        %1608 = vmatpush1.bf16.msra.mxu0 %v1584
        %1609 = vmatprep.subr.bf16.mxu0 0
        %1610 = vmatpush1.bf16.msra.mxu0 0
        %1611 = vmatprep.subr.bf16.mxu0 0
        %1612 = vmatpush1.bf16.msra.mxu0 0
        %1613 = vmatprep.subr.bf16.mxu0 0
        %1614 = vmatpush1.bf16.msra.mxu0 0
        %1615 = vmatprep.subr.bf16.mxu0 0
        %1616 = vmatpush1.bf16.msra.mxu0 0
        %1617 = vmatprep.subr.bf16.mxu0 0
        %1618 = vmatpush1.bf16.msra.mxu0 0
        %1619 = vmatprep.subr.bf16.mxu0 0
        %1620 = vmatpush1.bf16.msra.mxu0 0
        %1621 = vmatprep.subr.bf16.mxu0 0
        %1622 = vmatpush1.bf16.msra.mxu0 0
        %1623 = vmatprep.subr.bf16.mxu0 0
        %1624 = vmatpush1.bf16.msra.mxu0 0
        %1625 = vmatprep.mubr.bf16.mxu0 0
        %1626 = vmatmul.mubr.bf16.gmra.mrb[0].mxu0 %v1521
        %v1627 = vpop.f32.mrb[0].mxu0
        %v1628 = vadd.f32 %v1543, %v1627
        %v1629 = vpop.f32.mrb[0].mxu0
        %v1630 = vpop.f32.mrb[0].mxu0
        %v1631 = vpop.f32.mrb[0].mxu0
        %1632 = vdwg.mxu0
        %v1633 = vlaneseq
        %v1634 = vshrl.u32 %v1633, 7
        %v1635 = vsub.s32 5, %v1634
        %v1636 = vrot.slane %v570, %v1635
        %v1637 = vmul.f32 %v1636, %v1628
        %v1638 = vadd.f32 %v1421, %v1637
        %v1639 = vpack.c.bf16 %v1638, %v1638
        %vm1640 = vcmask 257024
        %1641 = vst.msk [vmem:[%s557] sm:$0xf] %vm1640, %v1639
        %s1642 = sand.u32 %s386, 1
        %s1643 = scalar_lea.sflag [#allocation8], %s1642
        %s1644 = sand.u32 %s386, 1
        %s1645 = smul.addr %s1644, 4
        %s1646 = scalar_lea.vmem [#allocation9], %s1645
        // Predicated region
        $region89: #{tpu_custom_call.1} parent=79 // pred_check
          %p1647 = pneg %p396
        $region90: #{tpu_custom_call.1} parent=79 // pred_check_branch
          %1649 = sbr.rel (%p1647) target = $region92
        $region91: #{tpu_custom_call.1} parent=79 // pred_region
          %s1651 = ssub.s32 64, 64
          %1652 = vsyncadd %s1643, %s1651
          %s1653 = sadd.s32 %s37, %s36
          %s1654 = smul.addr %s1653, 64
          %s1655 = scalar_lea.hbm %s15, %s1654
          %s1657 = sshll.u32 %s1646, 4
          %s1658 = int_to_ptr.vmem [resolvable:$true] %s1657
          %1660 = dma.vmem_to_hbm [thread:$0]  %s1658, 64, %s1655, %s1643
        $region92: #{tpu_custom_call.1} parent=79 // pred_fallthru
          _
      $region80: #{tpu_custom_call.1} parent=5 // pred_fallthru
        _
      %p1661 = scmp.le.s32.totalorder 2, %s27
      // Predicated region
      $region93: #{tpu_custom_call.1} parent=5 // pred_check
        %p1662 = pneg %p1661
      $region94: #{tpu_custom_call.1} parent=5 // pred_check_branch
        %1664 = sbr.rel (%p1662) target = $region96
      $region95: #{tpu_custom_call.1} parent=5 // pred_region
        %s1665 = ssub.s32 %s27, 2
        // Predicated region
        $region97: #{tpu_custom_call.1} parent=95 // pred_check
          %p1666 = pneg %p402
        $region98: #{tpu_custom_call.1} parent=95 // pred_check_branch
          %1668 = sbr.rel (%p1666) target = $region100
        $region99: #{tpu_custom_call.1} parent=95 // pred_region
          %s1669 = sand.u32 %s387, 1
          %s1670 = scalar_lea.sflag [#allocation8], %s1669
          %s1671 = sand.u32 %s387, 1
          %s1672 = smul.addr %s1671, 4
          %s1673 = scalar_lea.vmem [#allocation9], %s1672
          %1674 = dma.done %s1670, 64
        $region100: #{tpu_custom_call.1} parent=95 // pred_fallthru
          _
      $region96: #{tpu_custom_call.1} parent=5 // pred_fallthru
        _
    $region6: #{tpu_custom_call.1} parent=1 // loop_footer
      %s31 = sadd.s32 1, %s27
    $region7: #{tpu_custom_call.1} parent=1 // loop_footer_branch
      %26 = sbr.rel target = $region3
    $region8: #{tpu_custom_call.1} parent=1 // loop_exit
      _
    %1675 = vsyncpa [#allocation7], 1
    %s1676 = scalar_lea.sflag [#allocation7], 1
    %1677 = vsyncpa %s1676, 1
    %1678 = vsyncpa [#allocation8], 1
    %s1679 = scalar_lea.sflag [#allocation8], 1
    %1680 = vsyncpa %s1679, 1

// kernel: tpu_custom_call.1
$region0: #{tpu_custom_call.1}
  #allocation0 [shape = 'u32[]', space=smem, size = 0x4, offset = 0x4, fixed_abs, tag = 'smem constant byte address 0x4 - core index']
  #allocation1 [shape = 'u32[144,128]{1,0:T(1,128)}', space=vmem, size = 0x12000, scoped, tag = 'internal scratch']
  #allocation2 [shape = 'bf16[4,8,8]{2,1,0:T(8,128)(2,1)}', space=vmem, size = 0x2000, scoped, tag = 'scratch operand']
  #allocation3 [shape = 'bf16[4,8,8]{2,1,0:T(8,128)(2,1)}', space=vmem, size = 0x2000, scoped, tag = 'scratch operand']
  #allocation4 [shape = 'bf16[4,8,8]{2,1,0:T(8,128)(2,1)}', space=vmem, size = 0x2000, scoped, tag = 'scratch operand']
  #allocation5 [shape = 'bf16[8,32]{1,0:T(8,128)(2,1)}', space=vmem, size = 0x800, scoped, tag = 'scratch operand']
  %s0 = inlined_call_operand.vmem [shape: bf16[2,8,32], index: 0, kind: input, shape index: {}]
  %s1 = inlined_call_operand.hbm [shape: bf16[2,8,32], index: 1, kind: input, shape index: {}]
  %s2 = inlined_call_operand.vmem [shape: f32[2,6,32], index: 2, kind: input, shape index: {}]
  %s3 = inlined_call_operand.vmem [shape: bf16[32,32], index: 3, kind: input, shape index: {}]
  %s4 = inlined_call_operand.vmem [shape: f32[1,32], index: 4, kind: input, shape index: {}]
  %s5 = inlined_call_operand.vmem [shape: bf16[32,32], index: 5, kind: input, shape index: {}]
  %s6 = inlined_call_operand.vmem [shape: f32[1,32], index: 6, kind: input, shape index: {}]
  %s7 = inlined_call_operand.vmem [shape: bf16[32,32], index: 7, kind: input, shape index: {}]
  %s8 = inlined_call_operand.vmem [shape: f32[1,32], index: 8, kind: input, shape index: {}]
  %s9 = inlined_call_operand.vmem [shape: bf16[32,32], index: 9, kind: input, shape index: {}]
  %s10 = inlined_call_operand.vmem [shape: f32[1,32], index: 10, kind: input, shape index: {}]
  %s11 = inlined_call_operand.vmem [shape: bf16[1,32,128], index: 11, kind: input, shape index: {}]
  %s12 = inlined_call_operand.vmem [shape: f32[1,1,128], index: 12, kind: input, shape index: {}]
  %s13 = inlined_call_operand.vmem [shape: bf16[1,128,32], index: 13, kind: input, shape index: {}]
  %s14 = inlined_call_operand.vmem [shape: f32[1,32], index: 14, kind: input, shape index: {}]
  %s15 = inlined_call_operand.hbm [shape: bf16[2,8,32], index: 15, kind: output, shape index: {}]
  %s16 = sld [smem:[#allocation0]]
  $region101: #{tpu_custom_call.1} parent=0
    _
  %s18 = ssub.s32 1, %s16
  %s19 = scalar_select 0, %s18, %s16
  $region1: #{tpu_custom_call.1} parent=0
    #allocation6 [shape = 'u8[4096]{0}', space=vmem, size = 0x1000, scoped, tag = 'input window, operand 1']
    #allocation7 [shape = 's32[2]{0}', space=sflag, size = 0x8, scoped, tag = 'scoped memory for tpu_custom_call.1']
    #allocation8 [shape = 's32[2]{0}', space=sflag, size = 0x8, scoped, tag = 'scoped memory for tpu_custom_call.1']
    #allocation9 [shape = 'u8[4096]{0}', space=vmem, size = 0x1000, scoped, tag = 'output window, operand 0']
    %20 = vsyncpa [#allocation7], 0
    %s21 = scalar_lea.sflag [#allocation7], 1
    %22 = vsyncpa %s21, 0
    %23 = vsyncpa [#allocation8], 0
    %s24 = scalar_lea.sflag [#allocation8], 1
    %25 = vsyncpa %s24, 0
    loop: start=0, step=1, limit=4
    $region2: #{tpu_custom_call.1} parent=1 // loop_pre_header
      _
    $region3: #{tpu_custom_call.1} parent=1 // loop_header
      %s27 = sphi 0, %s31
      %p28 = scmp.ge.s32.totalorder %s27, 4
      %s34 = sphi 0, %s46
      %s35 = sphi 0, %s42
      %s36 = sphi 0, %s34
      %s37 = sphi 0, %s35
      %s38 = sphi 0, %s36
      %s39 = sphi 0, %s37
      %s51 = sphi 0, %s53
      %s54 = sphi 0, %s51
      %s55 = sphi 0, %s54
      %s71 = sphi 0, %s55
      %s77 = sphi 0, %s79
      %s80 = sphi 0, %s77
      %s81 = sphi 0, %s80
      %s97 = sphi 0, %s81
      %s103 = sphi 0, %s105
      %s106 = sphi 0, %s103
      %s107 = sphi 0, %s106
      %s123 = sphi 0, %s107
      %s127 = sphi 0, %s127
      %s129 = sphi 0, %s127
      %s130 = sphi 0, %s129
      %s144 = sphi 0, %s130
      %s148 = sphi 0, %s148
      %s150 = sphi 0, %s148
      %s151 = sphi 0, %s150
      %s165 = sphi 0, %s151
      %s169 = sphi 0, %s169
      %s171 = sphi 0, %s169
      %s172 = sphi 0, %s171
      %s186 = sphi 0, %s172
      %s190 = sphi 0, %s190
      %s192 = sphi 0, %s190
      %s193 = sphi 0, %s192
      %s207 = sphi 0, %s193
      %s211 = sphi 0, %s211
      %s213 = sphi 0, %s211
      %s214 = sphi 0, %s213
      %s228 = sphi 0, %s214
      %s232 = sphi 0, %s232
      %s234 = sphi 0, %s232
      %s235 = sphi 0, %s234
      %s249 = sphi 0, %s235
      %s253 = sphi 0, %s253
      %s255 = sphi 0, %s253
      %s256 = sphi 0, %s255
      %s270 = sphi 0, %s256
      %s274 = sphi 0, %s274
      %s276 = sphi 0, %s274
      %s277 = sphi 0, %s276
      %s291 = sphi 0, %s277
      %s295 = sphi 0, %s295
      %s297 = sphi 0, %s295
      %s298 = sphi 0, %s297
      %s312 = sphi 0, %s298
      %s316 = sphi 0, %s316
      %s318 = sphi 0, %s316
      %s319 = sphi 0, %s318
      %s333 = sphi 0, %s319
      %s337 = sphi 0, %s337
      %s339 = sphi 0, %s337
      %s340 = sphi 0, %s339
      %s354 = sphi 0, %s340
      %s358 = sphi 0, %s358
      %s360 = sphi 0, %s358
      %s361 = sphi 0, %s360
      %s375 = sphi 0, %s361
      %s383 = sphi 0, %s385
      %s386 = sphi 0, %s383
      %s387 = sphi 0, %s386
      %s403 = sphi 0, %s387
    $region4: #{tpu_custom_call.1} parent=1 // loop_header_branch
      %30 = sbr.rel (%p28) target = $region8
    $region5: #{tpu_custom_call.1} parent=1 // loop_body
      %s32 = ssub.s32 %s27, 1
      %s33 = ssub.s32 %s27, 2
      %s40 = sadd.s32 1, %s35
      %p41 = scmp.ge.s32.totalorder %s40, 1
      %s42 = scalar_select %p41, 0, %s40
      %s43 = sadd.s32 1, %s34
      %s44 = scalar_select %p41, %s43, %s34
      %p45 = scmp.ge.s32.totalorder %s44, 2
      %s46 = scalar_select %p45, 0, %s44
      %s47 = ssub.s32 %s34, %s46
      %s48 = ssub.s32 %s35, %s42
      %s49 = sor.u32 %s47, %s48
      %p50 = scmp.eq.s32.totalorder %s49, 0
      %s52 = sadd.s32 %s51, 1
      %s53 = scalar_select %p50, %s51, %s52
      %p56 = pneg %p50
      %p57 = scmp.eq.s32.totalorder %s27, 1
      %p58 = por %p56, %p57
      %p59 = scmp.ne.s32.totalorder %s51, %s54
      %p60 = scmp.eq.s32.totalorder %s27, 0
      %p61 = por %p59, %p60
      %p62 = scmp.ne.s32.totalorder %s51, %s54
      %p63 = scmp.eq.s32.totalorder %s32, 1
      %p64 = por %p62, %p63
      %p65 = scmp.ne.s32.totalorder %s54, %s55
      %p66 = scmp.eq.s32.totalorder %s32, 0
      %p67 = por %p65, %p66
      %p68 = scmp.ne.s32.totalorder %s54, %s55
      %p69 = scmp.eq.s32.totalorder %s33, 1
      %p70 = por %p68, %p69
      %p72 = scmp.ne.s32.totalorder %s55, %s71
      %p73 = scmp.eq.s32.totalorder %s33, 0
      %p74 = por %p72, %p73
      %s75 = ssub.s32 %s34, %s46
      %p76 = scmp.eq.s32.totalorder %s75, 0
      %s78 = sadd.s32 %s77, 1
      %s79 = scalar_select %p76, %s77, %s78
      %p82 = pneg %p76
      %p83 = scmp.eq.s32.totalorder %s27, 1
      %p84 = por %p82, %p83
      %p85 = scmp.ne.s32.totalorder %s77, %s80
      %p86 = scmp.eq.s32.totalorder %s27, 0
      %p87 = por %p85, %p86
      %p88 = scmp.ne.s32.totalorder %s77, %s80
      %p89 = scmp.eq.s32.totalorder %s32, 1
      %p90 = por %p88, %p89
      %p91 = scmp.ne.s32.totalorder %s80, %s81
      %p92 = scmp.eq.s32.totalorder %s32, 0
      %p93 = por %p91, %p92
      %p94 = scmp.ne.s32.totalorder %s80, %s81
      %p95 = scmp.eq.s32.totalorder %s33, 1
      %p96 = por %p94, %p95
      %p98 = scmp.ne.s32.totalorder %s81, %s97
      %p99 = scmp.eq.s32.totalorder %s33, 0
      %p100 = por %p98, %p99
      %s101 = ssub.s32 %s34, %s46
      %p102 = scmp.eq.s32.totalorder %s101, 0
      %s104 = sadd.s32 %s103, 1
      %s105 = scalar_select %p102, %s103, %s104
      %p108 = pneg %p102
      %p109 = scmp.eq.s32.totalorder %s27, 1
      %p110 = por %p108, %p109
      %p111 = scmp.ne.s32.totalorder %s103, %s106
      %p112 = scmp.eq.s32.totalorder %s27, 0
      %p113 = por %p111, %p112
      %p114 = scmp.ne.s32.totalorder %s103, %s106
      %p115 = scmp.eq.s32.totalorder %s32, 1
      %p116 = por %p114, %p115
      %p117 = scmp.ne.s32.totalorder %s106, %s107
      %p118 = scmp.eq.s32.totalorder %s32, 0
      %p119 = por %p117, %p118
      %p120 = scmp.ne.s32.totalorder %s106, %s107
      %p121 = scmp.eq.s32.totalorder %s33, 1
      %p122 = por %p120, %p121
      %p124 = scmp.ne.s32.totalorder %s107, %s123
      %p125 = scmp.eq.s32.totalorder %s33, 0
      %p126 = por %p124, %p125
      %s128 = sadd.s32 %s127, 1
      %p131 = scmp.eq.s32.totalorder %s27, 1
      %p132 = scmp.ne.s32.totalorder %s127, %s129
      %p133 = scmp.eq.s32.totalorder %s27, 0
      %p134 = por %p132, %p133
      %p135 = scmp.ne.s32.totalorder %s127, %s129
      %p136 = scmp.eq.s32.totalorder %s32, 1
      %p137 = por %p135, %p136
      %p138 = scmp.ne.s32.totalorder %s129, %s130
      %p139 = scmp.eq.s32.totalorder %s32, 0
      %p140 = por %p138, %p139
      %p141 = scmp.ne.s32.totalorder %s129, %s130
      %p142 = scmp.eq.s32.totalorder %s33, 1
      %p143 = por %p141, %p142
      %p145 = scmp.ne.s32.totalorder %s130, %s144
      %p146 = scmp.eq.s32.totalorder %s33, 0
      %p147 = por %p145, %p146
      %s149 = sadd.s32 %s148, 1
      %p152 = scmp.eq.s32.totalorder %s27, 1
      %p153 = scmp.ne.s32.totalorder %s148, %s150
      %p154 = scmp.eq.s32.totalorder %s27, 0
      %p155 = por %p153, %p154
      %p156 = scmp.ne.s32.totalorder %s148, %s150
      %p157 = scmp.eq.s32.totalorder %s32, 1
      %p158 = por %p156, %p157
      %p159 = scmp.ne.s32.totalorder %s150, %s151
      %p160 = scmp.eq.s32.totalorder %s32, 0
      %p161 = por %p159, %p160
      %p162 = scmp.ne.s32.totalorder %s150, %s151
      %p163 = scmp.eq.s32.totalorder %s33, 1
      %p164 = por %p162, %p163
      %p166 = scmp.ne.s32.totalorder %s151, %s165
      %p167 = scmp.eq.s32.totalorder %s33, 0
      %p168 = por %p166, %p167
      %s170 = sadd.s32 %s169, 1
      %p173 = scmp.eq.s32.totalorder %s27, 1
      %p174 = scmp.ne.s32.totalorder %s169, %s171
      %p175 = scmp.eq.s32.totalorder %s27, 0
      %p176 = por %p174, %p175
      %p177 = scmp.ne.s32.totalorder %s169, %s171
      %p178 = scmp.eq.s32.totalorder %s32, 1
      %p179 = por %p177, %p178
      %p180 = scmp.ne.s32.totalorder %s171, %s172
      %p181 = scmp.eq.s32.totalorder %s32, 0
      %p182 = por %p180, %p181
      %p183 = scmp.ne.s32.totalorder %s171, %s172
      %p184 = scmp.eq.s32.totalorder %s33, 1
      %p185 = por %p183, %p184
      %p187 = scmp.ne.s32.totalorder %s172, %s186
      %p188 = scmp.eq.s32.totalorder %s33, 0
      %p189 = por %p187, %p188
      %s191 = sadd.s32 %s190, 1
      %p194 = scmp.eq.s32.totalorder %s27, 1
      %p195 = scmp.ne.s32.totalorder %s190, %s192
      %p196 = scmp.eq.s32.totalorder %s27, 0
      %p197 = por %p195, %p196
      %p198 = scmp.ne.s32.totalorder %s190, %s192
      %p199 = scmp.eq.s32.totalorder %s32, 1
      %p200 = por %p198, %p199
      %p201 = scmp.ne.s32.totalorder %s192, %s193
      %p202 = scmp.eq.s32.totalorder %s32, 0
      %p203 = por %p201, %p202
      %p204 = scmp.ne.s32.totalorder %s192, %s193
      %p205 = scmp.eq.s32.totalorder %s33, 1
      %p206 = por %p204, %p205
      %p208 = scmp.ne.s32.totalorder %s193, %s207
      %p209 = scmp.eq.s32.totalorder %s33, 0
      %p210 = por %p208, %p209
      %s212 = sadd.s32 %s211, 1
      %p215 = scmp.eq.s32.totalorder %s27, 1
      %p216 = scmp.ne.s32.totalorder %s211, %s213
      %p217 = scmp.eq.s32.totalorder %s27, 0
      %p218 = por %p216, %p217
      %p219 = scmp.ne.s32.totalorder %s211, %s213
      %p220 = scmp.eq.s32.totalorder %s32, 1
      %p221 = por %p219, %p220
      %p222 = scmp.ne.s32.totalorder %s213, %s214
      %p223 = scmp.eq.s32.totalorder %s32, 0
      %p224 = por %p222, %p223
      %p225 = scmp.ne.s32.totalorder %s213, %s214
      %p226 = scmp.eq.s32.totalorder %s33, 1
      %p227 = por %p225, %p226
      %p229 = scmp.ne.s32.totalorder %s214, %s228
      %p230 = scmp.eq.s32.totalorder %s33, 0
      %p231 = por %p229, %p230
      %s233 = sadd.s32 %s232, 1
      %p236 = scmp.eq.s32.totalorder %s27, 1
      %p237 = scmp.ne.s32.totalorder %s232, %s234
      %p238 = scmp.eq.s32.totalorder %s27, 0
      %p239 = por %p237, %p238
      %p240 = scmp.ne.s32.totalorder %s232, %s234
      %p241 = scmp.eq.s32.totalorder %s32, 1
      %p242 = por %p240, %p241
      %p243 = scmp.ne.s32.totalorder %s234, %s235
      %p244 = scmp.eq.s32.totalorder %s32, 0
      %p245 = por %p243, %p244
      %p246 = scmp.ne.s32.totalorder %s234, %s235
      %p247 = scmp.eq.s32.totalorder %s33, 1
      %p248 = por %p246, %p247
      %p250 = scmp.ne.s32.totalorder %s235, %s249
      %p251 = scmp.eq.s32.totalorder %s33, 0
      %p252 = por %p250, %p251
      %s254 = sadd.s32 %s253, 1
      %p257 = scmp.eq.s32.totalorder %s27, 1
      %p258 = scmp.ne.s32.totalorder %s253, %s255
      %p259 = scmp.eq.s32.totalorder %s27, 0
      %p260 = por %p258, %p259
      %p261 = scmp.ne.s32.totalorder %s253, %s255
      %p262 = scmp.eq.s32.totalorder %s32, 1
      %p263 = por %p261, %p262
      %p264 = scmp.ne.s32.totalorder %s255, %s256
      %p265 = scmp.eq.s32.totalorder %s32, 0
      %p266 = por %p264, %p265
      %p267 = scmp.ne.s32.totalorder %s255, %s256
      %p268 = scmp.eq.s32.totalorder %s33, 1
      %p269 = por %p267, %p268
      %p271 = scmp.ne.s32.totalorder %s256, %s270
      %p272 = scmp.eq.s32.totalorder %s33, 0
      %p273 = por %p271, %p272
      %s275 = sadd.s32 %s274, 1
      %p278 = scmp.eq.s32.totalorder %s27, 1
      %p279 = scmp.ne.s32.totalorder %s274, %s276
      %p280 = scmp.eq.s32.totalorder %s27, 0
      %p281 = por %p279, %p280
      %p282 = scmp.ne.s32.totalorder %s274, %s276
      %p283 = scmp.eq.s32.totalorder %s32, 1
      %p284 = por %p282, %p283
      %p285 = scmp.ne.s32.totalorder %s276, %s277
      %p286 = scmp.eq.s32.totalorder %s32, 0
      %p287 = por %p285, %p286
      %p288 = scmp.ne.s32.totalorder %s276, %s277
      %p289 = scmp.eq.s32.totalorder %s33, 1
      %p290 = por %p288, %p289
      %p292 = scmp.ne.s32.totalorder %s277, %s291
      %p293 = scmp.eq.s32.totalorder %s33, 0
      %p294 = por %p292, %p293
      %s296 = sadd.s32 %s295, 1
      %p299 = scmp.eq.s32.totalorder %s27, 1
      %p300 = scmp.ne.s32.totalorder %s295, %s297
      %p301 = scmp.eq.s32.totalorder %s27, 0
      %p302 = por %p300, %p301
      %p303 = scmp.ne.s32.totalorder %s295, %s297
      %p304 = scmp.eq.s32.totalorder %s32, 1
      %p305 = por %p303, %p304
      %p306 = scmp.ne.s32.totalorder %s297, %s298
      %p307 = scmp.eq.s32.totalorder %s32, 0
      %p308 = por %p306, %p307
      %p309 = scmp.ne.s32.totalorder %s297, %s298
      %p310 = scmp.eq.s32.totalorder %s33, 1
      %p311 = por %p309, %p310
      %p313 = scmp.ne.s32.totalorder %s298, %s312
      %p314 = scmp.eq.s32.totalorder %s33, 0
      %p315 = por %p313, %p314
      %s317 = sadd.s32 %s316, 1
      %p320 = scmp.eq.s32.totalorder %s27, 1
      %p321 = scmp.ne.s32.totalorder %s316, %s318
      %p322 = scmp.eq.s32.totalorder %s27, 0
      %p323 = por %p321, %p322
      %p324 = scmp.ne.s32.totalorder %s316, %s318
      %p325 = scmp.eq.s32.totalorder %s32, 1
      %p326 = por %p324, %p325
      %p327 = scmp.ne.s32.totalorder %s318, %s319
      %p328 = scmp.eq.s32.totalorder %s32, 0
      %p329 = por %p327, %p328
      %p330 = scmp.ne.s32.totalorder %s318, %s319
      %p331 = scmp.eq.s32.totalorder %s33, 1
      %p332 = por %p330, %p331
      %p334 = scmp.ne.s32.totalorder %s319, %s333
      %p335 = scmp.eq.s32.totalorder %s33, 0
      %p336 = por %p334, %p335
      %s338 = sadd.s32 %s337, 1
      %p341 = scmp.eq.s32.totalorder %s27, 1
      %p342 = scmp.ne.s32.totalorder %s337, %s339
      %p343 = scmp.eq.s32.totalorder %s27, 0
      %p344 = por %p342, %p343
      %p345 = scmp.ne.s32.totalorder %s337, %s339
      %p346 = scmp.eq.s32.totalorder %s32, 1
      %p347 = por %p345, %p346
      %p348 = scmp.ne.s32.totalorder %s339, %s340
      %p349 = scmp.eq.s32.totalorder %s32, 0
      %p350 = por %p348, %p349
      %p351 = scmp.ne.s32.totalorder %s339, %s340
      %p352 = scmp.eq.s32.totalorder %s33, 1
      %p353 = por %p351, %p352
      %p355 = scmp.ne.s32.totalorder %s340, %s354
      %p356 = scmp.eq.s32.totalorder %s33, 0
      %p357 = por %p355, %p356
      %s359 = sadd.s32 %s358, 1
      %p362 = scmp.eq.s32.totalorder %s27, 1
      %p363 = scmp.ne.s32.totalorder %s358, %s360
      %p364 = scmp.eq.s32.totalorder %s27, 0
      %p365 = por %p363, %p364
      %p366 = scmp.ne.s32.totalorder %s358, %s360
      %p367 = scmp.eq.s32.totalorder %s32, 1
      %p368 = por %p366, %p367
      %p369 = scmp.ne.s32.totalorder %s360, %s361
      %p370 = scmp.eq.s32.totalorder %s32, 0
      %p371 = por %p369, %p370
      %p372 = scmp.ne.s32.totalorder %s360, %s361
      %p373 = scmp.eq.s32.totalorder %s33, 1
      %p374 = por %p372, %p373
      %p376 = scmp.ne.s32.totalorder %s361, %s375
      %p377 = scmp.eq.s32.totalorder %s33, 0
      %p378 = por %p376, %p377
      %s379 = ssub.s32 %s34, %s46
      %s380 = ssub.s32 %s35, %s42
      %s381 = sor.u32 %s379, %s380
      %p382 = scmp.eq.s32.totalorder %s381, 0
      %s384 = sadd.s32 %s383, 1
      %s385 = scalar_select %p382, %s383, %s384
      %p388 = pneg %p382
      %p389 = scmp.eq.s32.totalorder %s27, 1
      %p390 = por %p388, %p389
      %p391 = scmp.ne.s32.totalorder %s383, %s386
      %p392 = scmp.eq.s32.totalorder %s27, 0
      %p393 = por %p391, %p392
      %p394 = scmp.ne.s32.totalorder %s383, %s386
      %p395 = scmp.eq.s32.totalorder %s32, 1
      %p396 = por %p394, %p395
      %p397 = scmp.ne.s32.totalorder %s386, %s387
      %p398 = scmp.eq.s32.totalorder %s32, 0
      %p399 = por %p397, %p398
      %p400 = scmp.ne.s32.totalorder %s386, %s387
      %p401 = scmp.eq.s32.totalorder %s33, 1
      %p402 = por %p400, %p401
      %p404 = scmp.ne.s32.totalorder %s387, %s403
      %p405 = scmp.eq.s32.totalorder %s33, 0
      %p406 = por %p404, %p405
      %p407 = scmp.le.s32.totalorder 1, %s27
      %p408 = scmp.lt.s32.totalorder %s27, 3
      %p409 = pnand %p407, %p408
      %p410 = pneg %p409
      // Predicated region
      $region9: #{tpu_custom_call.1} parent=5 // pred_check
        _
      $region10: #{tpu_custom_call.1} parent=5 // pred_check_branch
        %412 = sbr.rel (%p409) target = $region12
      $region11: #{tpu_custom_call.1} parent=5 // pred_region
        %s413 = ssub.s32 %s27, 1
        // Predicated region
        $region13: #{tpu_custom_call.1} parent=11 // pred_check
          %p414 = pneg %p140
        $region14: #{tpu_custom_call.1} parent=11 // pred_check_branch
          %416 = sbr.rel (%p414) target = $region16
        $region15: #{tpu_custom_call.1} parent=11 // pred_region
          _
        $region16: #{tpu_custom_call.1} parent=11 // pred_fallthru
          _
        // Predicated region
        $region17: #{tpu_custom_call.1} parent=11 // pred_check
          %p417 = pneg %p161
        $region18: #{tpu_custom_call.1} parent=11 // pred_check_branch
          %419 = sbr.rel (%p417) target = $region20
        $region19: #{tpu_custom_call.1} parent=11 // pred_region
          _
        $region20: #{tpu_custom_call.1} parent=11 // pred_fallthru
          _
        // Predicated region
        $region21: #{tpu_custom_call.1} parent=11 // pred_check
          %p420 = pneg %p182
        $region22: #{tpu_custom_call.1} parent=11 // pred_check_branch
          %422 = sbr.rel (%p420) target = $region24
        $region23: #{tpu_custom_call.1} parent=11 // pred_region
          _
        $region24: #{tpu_custom_call.1} parent=11 // pred_fallthru
          _
        // Predicated region
        $region25: #{tpu_custom_call.1} parent=11 // pred_check
          %p423 = pneg %p203
        $region26: #{tpu_custom_call.1} parent=11 // pred_check_branch
          %425 = sbr.rel (%p423) target = $region28
        $region27: #{tpu_custom_call.1} parent=11 // pred_region
          _
        $region28: #{tpu_custom_call.1} parent=11 // pred_fallthru
          _
        // Predicated region
        $region29: #{tpu_custom_call.1} parent=11 // pred_check
          %p426 = pneg %p224
        $region30: #{tpu_custom_call.1} parent=11 // pred_check_branch
          %428 = sbr.rel (%p426) target = $region32
        $region31: #{tpu_custom_call.1} parent=11 // pred_region
          _
        $region32: #{tpu_custom_call.1} parent=11 // pred_fallthru
          _
        // Predicated region
        $region33: #{tpu_custom_call.1} parent=11 // pred_check
          %p429 = pneg %p245
        $region34: #{tpu_custom_call.1} parent=11 // pred_check_branch
          %431 = sbr.rel (%p429) target = $region36
        $region35: #{tpu_custom_call.1} parent=11 // pred_region
          _
        $region36: #{tpu_custom_call.1} parent=11 // pred_fallthru
          _
        // Predicated region
        $region37: #{tpu_custom_call.1} parent=11 // pred_check
          %p432 = pneg %p266
        $region38: #{tpu_custom_call.1} parent=11 // pred_check_branch
          %434 = sbr.rel (%p432) target = $region40
        $region39: #{tpu_custom_call.1} parent=11 // pred_region
          _
        $region40: #{tpu_custom_call.1} parent=11 // pred_fallthru
          _
        // Predicated region
        $region41: #{tpu_custom_call.1} parent=11 // pred_check
          %p435 = pneg %p287
        $region42: #{tpu_custom_call.1} parent=11 // pred_check_branch
          %437 = sbr.rel (%p435) target = $region44
        $region43: #{tpu_custom_call.1} parent=11 // pred_region
          _
        $region44: #{tpu_custom_call.1} parent=11 // pred_fallthru
          _
        // Predicated region
        $region45: #{tpu_custom_call.1} parent=11 // pred_check
          %p438 = pneg %p308
        $region46: #{tpu_custom_call.1} parent=11 // pred_check_branch
          %440 = sbr.rel (%p438) target = $region48
        $region47: #{tpu_custom_call.1} parent=11 // pred_region
          _
        $region48: #{tpu_custom_call.1} parent=11 // pred_fallthru
          _
        // Predicated region
        $region49: #{tpu_custom_call.1} parent=11 // pred_check
          %p441 = pneg %p329
        $region50: #{tpu_custom_call.1} parent=11 // pred_check_branch
          %443 = sbr.rel (%p441) target = $region52
        $region51: #{tpu_custom_call.1} parent=11 // pred_region
          _
        $region52: #{tpu_custom_call.1} parent=11 // pred_fallthru
          _
        // Predicated region
        $region53: #{tpu_custom_call.1} parent=11 // pred_check
          %p444 = pneg %p350
        $region54: #{tpu_custom_call.1} parent=11 // pred_check_branch
          %446 = sbr.rel (%p444) target = $region56
        $region55: #{tpu_custom_call.1} parent=11 // pred_region
          _
        $region56: #{tpu_custom_call.1} parent=11 // pred_fallthru
          _
        // Predicated region
        $region57: #{tpu_custom_call.1} parent=11 // pred_check
          %p447 = pneg %p371
        $region58: #{tpu_custom_call.1} parent=11 // pred_check_branch
          %449 = sbr.rel (%p447) target = $region60
        $region59: #{tpu_custom_call.1} parent=11 // pred_region
          _
        $region60: #{tpu_custom_call.1} parent=11 // pred_fallthru
          _
      $region12: #{tpu_custom_call.1} parent=5 // pred_fallthru
        _
      %p450 = scmp.lt.s32.totalorder %s27, 2
      // Predicated region
      $region61: #{tpu_custom_call.1} parent=5 // pred_check
        %p451 = pneg %p450
      $region62: #{tpu_custom_call.1} parent=5 // pred_check_branch
        %453 = sbr.rel (%p451) target = $region64
      $region63: #{tpu_custom_call.1} parent=5 // pred_region
        // Predicated region
        $region65: #{tpu_custom_call.1} parent=63 // pred_check
          %p454 = pneg %p61
        $region66: #{tpu_custom_call.1} parent=63 // pred_check_branch
          %456 = sbr.rel (%p454) target = $region68
        $region67: #{tpu_custom_call.1} parent=63 // pred_region
          %p457 = scmp.lt.s32.totalorder %s34, 1
          %s458 = scalar_select %p457, %s34, 1
          %p459 = scmp.lt.s32.totalorder %s35, 0
          %s460 = scalar_select %p459, %s35, 0
          %s461 = sadd.s32 %s460, %s458
          %s462 = smul.addr %s461, 4
          %s463 = scalar_lea.vmem %s0, %s462
        $region68: #{tpu_custom_call.1} parent=63 // pred_fallthru
          _
        // Predicated region
        $region69: #{tpu_custom_call.1} parent=63 // pred_check
          %p464 = pneg %p87
        $region70: #{tpu_custom_call.1} parent=63 // pred_check_branch
          %466 = sbr.rel (%p464) target = $region72
        $region71: #{tpu_custom_call.1} parent=63 // pred_region
          %s467 = sand.u32 %s77, 1
          %s468 = scalar_lea.sflag [#allocation7], %s467
          %s469 = sand.u32 %s77, 1
          %s470 = smul.addr %s469, 4
          %s471 = scalar_lea.vmem [#allocation6], %s470
          %s473 = ssub.s32 64, 64
          %474 = vsyncadd %s468, %s473
          %s475 = smul.addr %s34, 64
          %s476 = scalar_lea.hbm %s1, %s475
          %s478 = sshll.u32 %s471, 4
          %s479 = int_to_ptr.vmem [resolvable:$true] %s478
          %481 = dma.hbm_to_vmem [thread:$0]  %s476, 64, %s479, %s468
        $region72: #{tpu_custom_call.1} parent=63 // pred_fallthru
          _
        // Predicated region
        $region73: #{tpu_custom_call.1} parent=63 // pred_check
          %p482 = pneg %p113
        $region74: #{tpu_custom_call.1} parent=63 // pred_check_branch
          %484 = sbr.rel (%p482) target = $region76
        $region75: #{tpu_custom_call.1} parent=63 // pred_region
          %p485 = scmp.lt.s32.totalorder %s34, 1
          %s486 = scalar_select %p485, %s34, 1
          %s487 = smul.addr %s486, 8
          %s488 = scalar_lea.vmem %s2, %s487
        $region76: #{tpu_custom_call.1} parent=63 // pred_fallthru
          _
      $region64: #{tpu_custom_call.1} parent=5 // pred_fallthru
        _
      %p489 = scmp.le.s32.totalorder 1, %s27
      %p490 = scmp.lt.s32.totalorder %s27, 3
      %p491 = pnand %p489, %p490
      %p492 = pneg %p491
      // Predicated region
      $region77: #{tpu_custom_call.1} parent=5 // pred_check
        _
      $region78: #{tpu_custom_call.1} parent=5 // pred_check_branch
        %494 = sbr.rel (%p491) target = $region80
      $region79: #{tpu_custom_call.1} parent=5 // pred_region
        %s495 = ssub.s32 %s27, 1
        %s496 = sand.u32 %s80, 1
        %s497 = scalar_lea.sflag [#allocation7], %s496
        %s498 = sand.u32 %s80, 1
        %s499 = smul.addr %s498, 4
        %s500 = scalar_lea.vmem [#allocation6], %s499
        // Predicated region
        $region81: #{tpu_custom_call.1} parent=79 // pred_check
          %p501 = pneg %p93
        $region82: #{tpu_custom_call.1} parent=79 // pred_check_branch
          %503 = sbr.rel (%p501) target = $region84
        $region83: #{tpu_custom_call.1} parent=79 // pred_region
          %504 = dma.done %s497, 64
        $region84: #{tpu_custom_call.1} parent=79 // pred_fallthru
          _
        %p505 = scmp.lt.s32.totalorder %s36, 1
        %s506 = scalar_select %p505, %s36, 1
        %p507 = scmp.lt.s32.totalorder %s37, 0
        %s508 = scalar_select %p507, %s37, 0
        %s509 = sadd.s32 %s508, %s506
        %s510 = smul.addr %s509, 4
        %s511 = scalar_lea.vmem %s0, %s510
        %p512 = pneg %p67
        %p513 = pneg %p64
        %s514 = sand.u32 %s80, 1
        %s515 = scalar_lea.sflag [#allocation7], %s514
        %s516 = sand.u32 %s80, 1
        %s517 = smul.addr %s516, 4
        %s518 = scalar_lea.vmem [#allocation6], %s517
        %p519 = pneg %p93
        %p520 = pneg %p90
        %p521 = scmp.lt.s32.totalorder %s36, 1
        %s522 = scalar_select %p521, %s36, 1
        %s523 = smul.addr %s522, 8
        %s524 = scalar_lea.vmem %s2, %s523
        %p525 = pneg %p119
        %p526 = pneg %p116
        %p527 = pneg %p140
        %p528 = pneg %p137
        %p529 = pneg %p161
        %p530 = pneg %p158
        %p531 = pneg %p182
        %p532 = pneg %p179
        %p533 = pneg %p203
        %p534 = pneg %p200
        %p535 = pneg %p224
        %p536 = pneg %p221
        %p537 = pneg %p245
        %p538 = pneg %p242
        %p539 = pneg %p266
        %p540 = pneg %p263
        %p541 = pneg %p287
        %p542 = pneg %p284
        %p543 = pneg %p308
        %p544 = pneg %p305
        %p545 = pneg %p329
        %p546 = pneg %p326
        %p547 = pneg %p350
        %p548 = pneg %p347
        %p549 = pneg %p371
        %p550 = pneg %p368
        %p551 = pneg %p399
        %p552 = pneg %p396
        %s553 = sand.u32 %s386, 1
        %s554 = scalar_lea.sflag [#allocation8], %s553
        %s555 = sand.u32 %s386, 1
        %s556 = smul.addr %s555, 4
        %s557 = scalar_lea.vmem [#allocation9], %s556
        %p558 = scmp.lt.s32.totalorder %s36, 1
        %s559 = scalar_select %p558, %s36, 1
        %p560 = scmp.lt.s32.totalorder %s37, 0
        %s561 = scalar_select %p560, %s37, 0
        %s562 = sadd.s32 %s561, %s559
        %s563 = smul.addr %s562, 4
        %s564 = scalar_lea.vmem %s0, %s563
        %p565 = scmp.lt.s32.totalorder %s36, 1
        %s566 = scalar_select %p565, %s36, 1
        %s567 = smul.addr %s566, 8
        %s568 = scalar_lea.vmem %s2, %s567
        %v570 = vld [vmem:[%s568] sm:$0x3f]
        %p571 = scmp.eq.s32.totalorder %s37, 0
        // Predicated region
        $region85: #{tpu_custom_call.1} parent=79 // pred_check
          %p572 = pneg %p571
        $region86: #{tpu_custom_call.1} parent=79 // pred_check_branch
          %574 = sbr.rel (%p572) target = $region88
        $region87: #{tpu_custom_call.1} parent=79 // pred_region
          %v575 = vld [vmem:[%s500] sm:$0xf]
          %v576 = vunpack.c.l.bf16 %v575
          %vm577 = vcmask 261120
          %v578 = vsel %vm577, %v576, 0.0
          %579 = vadd.xlane.f32.xlu0 %v578
          %v580 = vpop.xlane.xlu0 %579
          %v581 = vrcp.pop 32.0
          %v582 = vmul.f32 %v580, %v581
          %v583 = vsub.f32 %v576, %v582
          %v584 = vmul.f32 %v583, %v583
          %v585 = vsel %vm577, %v584, 0.0
          %586 = vadd.xlane.f32.xlu0 %v585
          %v587 = vpop.xlane.xlu0 %586
          %v588 = vmul.f32 %v587, %v581
          %v589 = vadd.f32 %v588, 1e-06
          %v590 = vrsqrt.pop %v589
          %v591 = vmul.f32 %v583, %v590
          %v592 = vadd.f32 %v570, 1.0
          %v593 = vlaneseq
          %v594 = vshrl.u32 %v593, 7
          %v595 = vsub.s32 1, %v594
          %v596 = vrot.slane %v592, %v595
          %v597 = vmul.f32 %v591, %v596
          %v598 = vlaneseq
          %v599 = vshrl.u32 %v598, 7
          %v600 = vsub.s32 0, %v599
          %v601 = vrot.slane %v570, %v600
          %v602 = vadd.f32 %v597, %v601
          %v603 = vpack.c.bf16 %v602, %v602
          %v604 = vld [vmem:[%s5] sm:$0xf]
          %v605 = vld [vmem:[%s5 + $0x4] sm:$0xf]
          %v606 = vld [vmem:[%s5 + $0x8] sm:$0xf]
          %v607 = vld [vmem:[%s5 + $0xc] sm:$0xf]
          %v608 = vld [vmem:[%s6] sm:$0x1]
          %v610 = vlaneseq
          %v611 = vshrl.u32 %v610, 7
          %v612 = vsub.s32 0, %v611
          %v613 = vrot.slane %v608, %v612
          %v619 = vunpack.c.l.b16 %v604
          %v620 = vunpack.c.l.b16 %v605
          %v621 = vunpack.c.l.b16 %v606
          %v622 = vunpack.c.l.b16 %v607
          %v623 = vpack.c.b16 %v620, %v619
          %v624 = vpack.c.b16 %v622, %v621
          %v628 = vsel %vm577, %v603, 0
          %630 = vmatprep.subr.bf16.mxu0 0
          %631 = vmatpush1.bf16.msra.mxu0 %v623
          %632 = vmatprep.subr.bf16.mxu0 0
          %633 = vmatpush1.bf16.msra.mxu0 %v624
          %634 = vmatprep.subr.bf16.mxu0 0
          %635 = vmatpush1.bf16.msra.mxu0 0
          %636 = vmatprep.subr.bf16.mxu0 0
          %637 = vmatpush1.bf16.msra.mxu0 0
          %638 = vmatprep.subr.bf16.mxu0 0
          %639 = vmatpush1.bf16.msra.mxu0 0
          %640 = vmatprep.subr.bf16.mxu0 0
          %641 = vmatpush1.bf16.msra.mxu0 0
          %642 = vmatprep.subr.bf16.mxu0 0
          %643 = vmatpush1.bf16.msra.mxu0 0
          %644 = vmatprep.subr.bf16.mxu0 0
          %645 = vmatpush1.bf16.msra.mxu0 0
          %646 = vmatprep.subr.bf16.mxu0 0
          %647 = vmatpush1.bf16.msra.mxu0 0
          %648 = vmatprep.subr.bf16.mxu0 0
          %649 = vmatpush1.bf16.msra.mxu0 0
          %650 = vmatprep.subr.bf16.mxu0 0
          %651 = vmatpush1.bf16.msra.mxu0 0
          %652 = vmatprep.subr.bf16.mxu0 0
          %653 = vmatpush1.bf16.msra.mxu0 0
          %654 = vmatprep.subr.bf16.mxu0 0
          %655 = vmatpush1.bf16.msra.mxu0 0
          %656 = vmatprep.subr.bf16.mxu0 0
          %657 = vmatpush1.bf16.msra.mxu0 0
          %658 = vmatprep.subr.bf16.mxu0 0
          %659 = vmatpush1.bf16.msra.mxu0 0
          %660 = vmatprep.subr.bf16.mxu0 0
          %661 = vmatpush1.bf16.msra.mxu0 0
          %662 = vmatprep.mubr.bf16.mxu0 0
          %663 = vmatmul.mubr.bf16.gmra.mrb[0].mxu0 %v628
          %v664 = vpop.f32.mrb[0].mxu0
          %v665 = vadd.f32 %v613, %v664
          %v666 = vpop.f32.mrb[0].mxu0
          %v667 = vpop.f32.mrb[0].mxu0
          %v668 = vpop.f32.mrb[0].mxu0
          %669 = vdwg.mxu0
          %v670 = vpack.c.bf16 %v665, %v665
          %v671 = vld [vmem:[%s7] sm:$0xf]
          %v672 = vld [vmem:[%s7 + $0x4] sm:$0xf]
          %v673 = vld [vmem:[%s7 + $0x8] sm:$0xf]
          %v674 = vld [vmem:[%s7 + $0xc] sm:$0xf]
          %v675 = vld [vmem:[%s8] sm:$0x1]
          %v677 = vlaneseq
          %v678 = vshrl.u32 %v677, 7
          %v679 = vsub.s32 0, %v678
          %v680 = vrot.slane %v675, %v679
          %v686 = vunpack.c.l.b16 %v671
          %v687 = vunpack.c.l.b16 %v672
          %v688 = vunpack.c.l.b16 %v673
          %v689 = vunpack.c.l.b16 %v674
          %v690 = vpack.c.b16 %v687, %v686
          %v691 = vpack.c.b16 %v689, %v688
          %694 = vmatprep.subr.bf16.mxu0 0
          %695 = vmatpush1.bf16.msra.mxu0 %v690
          %696 = vmatprep.subr.bf16.mxu0 0
          %697 = vmatpush1.bf16.msra.mxu0 %v691
          %698 = vmatprep.subr.bf16.mxu0 0
          %699 = vmatpush1.bf16.msra.mxu0 0
          %700 = vmatprep.subr.bf16.mxu0 0
          %701 = vmatpush1.bf16.msra.mxu0 0
          %702 = vmatprep.subr.bf16.mxu0 0
          %703 = vmatpush1.bf16.msra.mxu0 0
          %704 = vmatprep.subr.bf16.mxu0 0
          %705 = vmatpush1.bf16.msra.mxu0 0
          %706 = vmatprep.subr.bf16.mxu0 0
          %707 = vmatpush1.bf16.msra.mxu0 0
          %708 = vmatprep.subr.bf16.mxu0 0
          %709 = vmatpush1.bf16.msra.mxu0 0
          %710 = vmatprep.subr.bf16.mxu0 0
          %711 = vmatpush1.bf16.msra.mxu0 0
          %712 = vmatprep.subr.bf16.mxu0 0
          %713 = vmatpush1.bf16.msra.mxu0 0
          %714 = vmatprep.subr.bf16.mxu0 0
          %715 = vmatpush1.bf16.msra.mxu0 0
          %716 = vmatprep.subr.bf16.mxu0 0
          %717 = vmatpush1.bf16.msra.mxu0 0
          %718 = vmatprep.subr.bf16.mxu0 0
          %719 = vmatpush1.bf16.msra.mxu0 0
          %720 = vmatprep.subr.bf16.mxu0 0
          %721 = vmatpush1.bf16.msra.mxu0 0
          %722 = vmatprep.subr.bf16.mxu0 0
          %723 = vmatpush1.bf16.msra.mxu0 0
          %724 = vmatprep.subr.bf16.mxu0 0
          %725 = vmatpush1.bf16.msra.mxu0 0
          %726 = vmatprep.mubr.bf16.mxu0 0
          %727 = vmatmul.mubr.bf16.gmra.mrb[0].mxu0 %v628
          %v728 = vpop.f32.mrb[0].mxu0
          %v729 = vadd.f32 %v680, %v728
          %v730 = vpop.f32.mrb[0].mxu0
          %v731 = vpop.f32.mrb[0].mxu0
          %v732 = vpop.f32.mrb[0].mxu0
          %733 = vdwg.mxu0
          %v734 = vpack.c.bf16 %v729, %v729
          %vm735 = vcmask 60416
          %736 = vst.msk [vmem:[#allocation2] sm:$0xf] %vm735, %v670
          %737 = vst.msk [vmem:[#allocation3] sm:$0xf] %vm735, %v734
          %v739 = vunpack.c.l.b16 %v670
          %v740 = vpack.c.b16 %v739, %v739
          %741 = vrot.lane.b32.xlu0 %v740, 120
          %v742 = vpop.permute.xlu0 %741
          %s744 = scalar_lea.vmem [#allocation2], 4
          %745 = vst.msk [vmem:[%s744] sm:$0xf] %vm735, %v742
          %v747 = vunpack.c.l.b16 %v734
          %v748 = vpack.c.b16 %v747, %v747
          %749 = vrot.lane.b32.xlu0 %v748, 120
          %v750 = vpop.permute.xlu0 %749
          %s752 = scalar_lea.vmem [#allocation3], 4
          %753 = vst.msk [vmem:[%s752] sm:$0xf] %vm735, %v750
          %754 = vrot.lane.b32.xlu0 %v740, 112
          %v755 = vpop.permute.xlu0 %754
          %s757 = scalar_lea.vmem [#allocation2], 8
          %758 = vst.msk [vmem:[%s757] sm:$0xf] %vm735, %v755
          %759 = vrot.lane.b32.xlu0 %v748, 112
          %v760 = vpop.permute.xlu0 %759
          %s762 = scalar_lea.vmem [#allocation3], 8
          %763 = vst.msk [vmem:[%s762] sm:$0xf] %vm735, %v760
          %764 = vrot.lane.b32.xlu0 %v740, 104
          %v765 = vpop.permute.xlu0 %764
          %s767 = scalar_lea.vmem [#allocation2], 12
          %768 = vst.msk [vmem:[%s767] sm:$0xf] %vm735, %v765
          %769 = vrot.lane.b32.xlu0 %v748, 104
          %v770 = vpop.permute.xlu0 %769
          %s772 = scalar_lea.vmem [#allocation3], 12
          %773 = vst.msk [vmem:[%s772] sm:$0xf] %vm735, %v770
        $region88: #{tpu_custom_call.1} parent=79 // pred_fallthru
          _
        %v774 = vld [vmem:[%s564] sm:$0xf]
        %v775 = vunpack.c.l.bf16 %v774
        %vm776 = vcmask 261120
        %v777 = vsel %vm776, %v775, 0.0
        %778 = vadd.xlane.f32.xlu0 %v777
        %v779 = vpop.xlane.xlu0 %778
        %v780 = vrcp.pop 32.0
        %v781 = vmul.f32 %v779, %v780
        %v782 = vsub.f32 %v775, %v781
        %v783 = vmul.f32 %v782, %v782
        %v784 = vsel %vm776, %v783, 0.0
        %785 = vadd.xlane.f32.xlu0 %v784
        %v786 = vpop.xlane.xlu0 %785
        %v787 = vmul.f32 %v786, %v780
        %v788 = vadd.f32 %v787, 1e-06
        %v789 = vrsqrt.pop %v788
        %v790 = vmul.f32 %v782, %v789
        %v791 = vadd.f32 %v570, 1.0
        %v792 = vlaneseq
        %v793 = vshrl.u32 %v792, 7
        %v794 = vsub.s32 1, %v793
        %v795 = vrot.slane %v791, %v794
        %v796 = vmul.f32 %v790, %v795
        %v797 = vlaneseq
        %v798 = vshrl.u32 %v797, 7
        %v799 = vsub.s32 0, %v798
        %v800 = vrot.slane %v570, %v799
        %v801 = vadd.f32 %v796, %v800
        %v802 = vpack.c.bf16 %v801, %v801
        %v803 = vld [vmem:[%s3] sm:$0xf]
        %v804 = vld [vmem:[%s3 + $0x4] sm:$0xf]
        %v805 = vld [vmem:[%s3 + $0x8] sm:$0xf]
        %v806 = vld [vmem:[%s3 + $0xc] sm:$0xf]
        %v807 = vld [vmem:[%s4] sm:$0x1]
        %v809 = vlaneseq
        %v810 = vshrl.u32 %v809, 7
        %v811 = vsub.s32 0, %v810
        %v812 = vrot.slane %v807, %v811
        %v818 = vunpack.c.l.b16 %v803
        %v819 = vunpack.c.l.b16 %v804
        %v820 = vunpack.c.l.b16 %v805
        %v821 = vunpack.c.l.b16 %v806
        %v822 = vpack.c.b16 %v819, %v818
        %v823 = vpack.c.b16 %v821, %v820
        %v827 = vsel %vm776, %v802, 0
        %829 = vmatprep.subr.bf16.mxu0 0
        %830 = vmatpush1.bf16.msra.mxu0 %v822
        %831 = vmatprep.subr.bf16.mxu0 0
        %832 = vmatpush1.bf16.msra.mxu0 %v823
        %833 = vmatprep.subr.bf16.mxu0 0
        %834 = vmatpush1.bf16.msra.mxu0 0
        %835 = vmatprep.subr.bf16.mxu0 0
        %836 = vmatpush1.bf16.msra.mxu0 0
        %837 = vmatprep.subr.bf16.mxu0 0
        %838 = vmatpush1.bf16.msra.mxu0 0
        %839 = vmatprep.subr.bf16.mxu0 0
        %840 = vmatpush1.bf16.msra.mxu0 0
        %841 = vmatprep.subr.bf16.mxu0 0
        %842 = vmatpush1.bf16.msra.mxu0 0
        %843 = vmatprep.subr.bf16.mxu0 0
        %844 = vmatpush1.bf16.msra.mxu0 0
        %845 = vmatprep.subr.bf16.mxu0 0
        %846 = vmatpush1.bf16.msra.mxu0 0
        %847 = vmatprep.subr.bf16.mxu0 0
        %848 = vmatpush1.bf16.msra.mxu0 0
        %849 = vmatprep.subr.bf16.mxu0 0
        %850 = vmatpush1.bf16.msra.mxu0 0
        %851 = vmatprep.subr.bf16.mxu0 0
        %852 = vmatpush1.bf16.msra.mxu0 0
        %853 = vmatprep.subr.bf16.mxu0 0
        %854 = vmatpush1.bf16.msra.mxu0 0
        %855 = vmatprep.subr.bf16.mxu0 0
        %856 = vmatpush1.bf16.msra.mxu0 0
        %857 = vmatprep.subr.bf16.mxu0 0
        %858 = vmatpush1.bf16.msra.mxu0 0
        %859 = vmatprep.subr.bf16.mxu0 0
        %860 = vmatpush1.bf16.msra.mxu0 0
        %861 = vmatprep.mubr.bf16.mxu0 0
        %862 = vmatmul.mubr.bf16.gmra.mrb[0].mxu0 %v827
        %v863 = vpop.f32.mrb[0].mxu0
        %v864 = vadd.f32 %v812, %v863
        %v865 = vpop.f32.mrb[0].mxu0
        %v866 = vpop.f32.mrb[0].mxu0
        %v867 = vpop.f32.mrb[0].mxu0
        %868 = vdwg.mxu0
        %v869 = vpack.c.bf16 %v864, %v864
        %vm870 = vcmask 60416
        %871 = vst.msk [vmem:[#allocation4] sm:$0xf] %vm870, %v869
        %v873 = vunpack.c.l.b16 %v869
        %v874 = vpack.c.b16 %v873, %v873
        %875 = vrot.lane.b32.xlu0 %v874, 120
        %v876 = vpop.permute.xlu0 %875
        %s878 = scalar_lea.vmem [#allocation4], 4
        %879 = vst.msk [vmem:[%s878] sm:$0xf] %vm870, %v876
        %880 = vrot.lane.b32.xlu0 %v874, 112
        %v881 = vpop.permute.xlu0 %880
        %s883 = scalar_lea.vmem [#allocation4], 8
        %884 = vst.msk [vmem:[%s883] sm:$0xf] %vm870, %v881
        %885 = vrot.lane.b32.xlu0 %v874, 104
        %v886 = vpop.permute.xlu0 %885
        %s888 = scalar_lea.vmem [#allocation4], 12
        %889 = vst.msk [vmem:[%s888] sm:$0xf] %vm870, %v886
        %v890 = vld [vmem:[#allocation4] sm:$0xf]
        %v891 = vld [vmem:[#allocation4 + $0x4] sm:$0xf]
        %v892 = vld [vmem:[#allocation4 + $0x8] sm:$0xf]
        %v893 = vld [vmem:[#allocation4 + $0xc] sm:$0xf]
        %v894 = vld [vmem:[#allocation2] sm:$0xf]
        %v895 = vld [vmem:[#allocation2 + $0x4] sm:$0xf]
        %v896 = vld [vmem:[#allocation2 + $0x8] sm:$0xf]
        %v897 = vld [vmem:[#allocation2 + $0xc] sm:$0xf]
        %vm898 = vcmask 64512
        %v900 = vsel %vm898, %v890, 0
        %v903 = vsel %vm898, %v894, 0
        %905 = vmatprep.subr.bf16.mxu0 0
        %906 = vmatpush1.bf16.xpose.msra.mxu0 %v903
        %907 = vmatprep.subr.bf16.mxu0 0
        %908 = vmatpush1.bf16.xpose.msra.mxu0 0
        %909 = vmatprep.subr.bf16.mxu0 0
        %910 = vmatpush1.bf16.xpose.msra.mxu0 0
        %911 = vmatprep.subr.bf16.mxu0 0
        %912 = vmatpush1.bf16.xpose.msra.mxu0 0
        %913 = vmatprep.subr.bf16.mxu0 0
        %914 = vmatpush1.bf16.xpose.msra.mxu0 0
        %915 = vmatprep.subr.bf16.mxu0 0
        %916 = vmatpush1.bf16.xpose.msra.mxu0 0
        %917 = vmatprep.subr.bf16.mxu0 0
        %918 = vmatpush1.bf16.xpose.msra.mxu0 0
        %919 = vmatprep.subr.bf16.mxu0 0
        %920 = vmatpush1.bf16.xpose.msra.mxu0 0
        %921 = vmatprep.subr.bf16.mxu0 0
        %922 = vmatpush1.bf16.xpose.msra.mxu0 0
        %923 = vmatprep.subr.bf16.mxu0 0
        %924 = vmatpush1.bf16.xpose.msra.mxu0 0
        %925 = vmatprep.subr.bf16.mxu0 0
        %926 = vmatpush1.bf16.xpose.msra.mxu0 0
        %927 = vmatprep.subr.bf16.mxu0 0
        %928 = vmatpush1.bf16.xpose.msra.mxu0 0
        %929 = vmatprep.subr.bf16.mxu0 0
        %930 = vmatpush1.bf16.xpose.msra.mxu0 0
        %931 = vmatprep.subr.bf16.mxu0 0
        %932 = vmatpush1.bf16.xpose.msra.mxu0 0
        %933 = vmatprep.subr.bf16.mxu0 0
        %934 = vmatpush1.bf16.xpose.msra.mxu0 0
        %935 = vmatprep.subr.bf16.mxu0 0
        %936 = vmatpush1.bf16.xpose.msra.mxu0 0
        %937 = vmatprep.mubr.bf16.mxu0 0
        %938 = vmatmul.mubr.bf16.gmra.mrb[0].mxu0 %v900
        %v939 = vpop.f32.mrb[0].mxu0
        %v940 = vadd.f32 0.0, %v939
        %v941 = vpop.f32.mrb[0].mxu0
        %v942 = vpop.f32.mrb[0].mxu0
        %v943 = vpop.f32.mrb[0].mxu0
        %944 = vdwg.mxu0
        %v946 = vsel %vm898, %v891, 0
        %v949 = vsel %vm898, %v895, 0
        %951 = vmatprep.subr.bf16.mxu0 0
        %952 = vmatpush1.bf16.xpose.msra.mxu0 %v949
        %953 = vmatprep.subr.bf16.mxu0 0
        %954 = vmatpush1.bf16.xpose.msra.mxu0 0
        %955 = vmatprep.subr.bf16.mxu0 0
        %956 = vmatpush1.bf16.xpose.msra.mxu0 0
        %957 = vmatprep.subr.bf16.mxu0 0
        %958 = vmatpush1.bf16.xpose.msra.mxu0 0
        %959 = vmatprep.subr.bf16.mxu0 0
        %960 = vmatpush1.bf16.xpose.msra.mxu0 0
        %961 = vmatprep.subr.bf16.mxu0 0
        %962 = vmatpush1.bf16.xpose.msra.mxu0 0
        %963 = vmatprep.subr.bf16.mxu0 0
        %964 = vmatpush1.bf16.xpose.msra.mxu0 0
        %965 = vmatprep.subr.bf16.mxu0 0
        %966 = vmatpush1.bf16.xpose.msra.mxu0 0
        %967 = vmatprep.subr.bf16.mxu0 0
        %968 = vmatpush1.bf16.xpose.msra.mxu0 0
        %969 = vmatprep.subr.bf16.mxu0 0
        %970 = vmatpush1.bf16.xpose.msra.mxu0 0
        %971 = vmatprep.subr.bf16.mxu0 0
        %972 = vmatpush1.bf16.xpose.msra.mxu0 0
        %973 = vmatprep.subr.bf16.mxu0 0
        %974 = vmatpush1.bf16.xpose.msra.mxu0 0
        %975 = vmatprep.subr.bf16.mxu0 0
        %976 = vmatpush1.bf16.xpose.msra.mxu0 0
        %977 = vmatprep.subr.bf16.mxu0 0
        %978 = vmatpush1.bf16.xpose.msra.mxu0 0
        %979 = vmatprep.subr.bf16.mxu0 0
        %980 = vmatpush1.bf16.xpose.msra.mxu0 0
        %981 = vmatprep.subr.bf16.mxu0 0
        %982 = vmatpush1.bf16.xpose.msra.mxu0 0
        %983 = vmatprep.mubr.bf16.mxu0 0
        %984 = vmatmul.mubr.bf16.gmra.mrb[0].mxu0 %v946
        %v985 = vpop.f32.mrb[0].mxu0
        %v986 = vadd.f32 0.0, %v985
        %v987 = vpop.f32.mrb[0].mxu0
        %v988 = vpop.f32.mrb[0].mxu0
        %v989 = vpop.f32.mrb[0].mxu0
        %990 = vdwg.mxu0
        %v992 = vsel %vm898, %v892, 0
        %v995 = vsel %vm898, %v896, 0
        %997 = vmatprep.subr.bf16.mxu0 0
        %998 = vmatpush1.bf16.xpose.msra.mxu0 %v995
        %999 = vmatprep.subr.bf16.mxu0 0
        %1000 = vmatpush1.bf16.xpose.msra.mxu0 0
        %1001 = vmatprep.subr.bf16.mxu0 0
        %1002 = vmatpush1.bf16.xpose.msra.mxu0 0
        %1003 = vmatprep.subr.bf16.mxu0 0
        %1004 = vmatpush1.bf16.xpose.msra.mxu0 0
        %1005 = vmatprep.subr.bf16.mxu0 0
        %1006 = vmatpush1.bf16.xpose.msra.mxu0 0
        %1007 = vmatprep.subr.bf16.mxu0 0
        %1008 = vmatpush1.bf16.xpose.msra.mxu0 0
        %1009 = vmatprep.subr.bf16.mxu0 0
        %1010 = vmatpush1.bf16.xpose.msra.mxu0 0
        %1011 = vmatprep.subr.bf16.mxu0 0
        %1012 = vmatpush1.bf16.xpose.msra.mxu0 0
        %1013 = vmatprep.subr.bf16.mxu0 0
        %1014 = vmatpush1.bf16.xpose.msra.mxu0 0
        %1015 = vmatprep.subr.bf16.mxu0 0
        %1016 = vmatpush1.bf16.xpose.msra.mxu0 0
        %1017 = vmatprep.subr.bf16.mxu0 0
        %1018 = vmatpush1.bf16.xpose.msra.mxu0 0
        %1019 = vmatprep.subr.bf16.mxu0 0
        %1020 = vmatpush1.bf16.xpose.msra.mxu0 0
        %1021 = vmatprep.subr.bf16.mxu0 0
        %1022 = vmatpush1.bf16.xpose.msra.mxu0 0
        %1023 = vmatprep.subr.bf16.mxu0 0
        %1024 = vmatpush1.bf16.xpose.msra.mxu0 0
        %1025 = vmatprep.subr.bf16.mxu0 0
        %1026 = vmatpush1.bf16.xpose.msra.mxu0 0
        %1027 = vmatprep.subr.bf16.mxu0 0
        %1028 = vmatpush1.bf16.xpose.msra.mxu0 0
        %1029 = vmatprep.mubr.bf16.mxu0 0
        %1030 = vmatmul.mubr.bf16.gmra.mrb[0].mxu0 %v992
        %v1031 = vpop.f32.mrb[0].mxu0
        %v1032 = vadd.f32 0.0, %v1031
        %v1033 = vpop.f32.mrb[0].mxu0
        %v1034 = vpop.f32.mrb[0].mxu0
        %v1035 = vpop.f32.mrb[0].mxu0
        %1036 = vdwg.mxu0
        %v1038 = vsel %vm898, %v893, 0
        %v1041 = vsel %vm898, %v897, 0
        %1043 = vmatprep.subr.bf16.mxu0 0
        %1044 = vmatpush1.bf16.xpose.msra.mxu0 %v1041
        %1045 = vmatprep.subr.bf16.mxu0 0
        %1046 = vmatpush1.bf16.xpose.msra.mxu0 0
        %1047 = vmatprep.subr.bf16.mxu0 0
        %1048 = vmatpush1.bf16.xpose.msra.mxu0 0
        %1049 = vmatprep.subr.bf16.mxu0 0
        %1050 = vmatpush1.bf16.xpose.msra.mxu0 0
        %1051 = vmatprep.subr.bf16.mxu0 0
        %1052 = vmatpush1.bf16.xpose.msra.mxu0 0
        %1053 = vmatprep.subr.bf16.mxu0 0
        %1054 = vmatpush1.bf16.xpose.msra.mxu0 0
        %1055 = vmatprep.subr.bf16.mxu0 0
        %1056 = vmatpush1.bf16.xpose.msra.mxu0 0
        %1057 = vmatprep.subr.bf16.mxu0 0
        %1058 = vmatpush1.bf16.xpose.msra.mxu0 0
        %1059 = vmatprep.subr.bf16.mxu0 0
        %1060 = vmatpush1.bf16.xpose.msra.mxu0 0
        %1061 = vmatprep.subr.bf16.mxu0 0
        %1062 = vmatpush1.bf16.xpose.msra.mxu0 0
        %1063 = vmatprep.subr.bf16.mxu0 0
        %1064 = vmatpush1.bf16.xpose.msra.mxu0 0
        %1065 = vmatprep.subr.bf16.mxu0 0
        %1066 = vmatpush1.bf16.xpose.msra.mxu0 0
        %1067 = vmatprep.subr.bf16.mxu0 0
        %1068 = vmatpush1.bf16.xpose.msra.mxu0 0
        %1069 = vmatprep.subr.bf16.mxu0 0
        %1070 = vmatpush1.bf16.xpose.msra.mxu0 0
        %1071 = vmatprep.subr.bf16.mxu0 0
        %1072 = vmatpush1.bf16.xpose.msra.mxu0 0
        %1073 = vmatprep.subr.bf16.mxu0 0
        %1074 = vmatpush1.bf16.xpose.msra.mxu0 0
        %1075 = vmatprep.mubr.bf16.mxu0 0
        %1076 = vmatmul.mubr.bf16.gmra.mrb[0].mxu0 %v1038
        %v1077 = vpop.f32.mrb[0].mxu0
        %v1078 = vadd.f32 0.0, %v1077
        %v1079 = vpop.f32.mrb[0].mxu0
        %v1080 = vpop.f32.mrb[0].mxu0
        %v1081 = vpop.f32.mrb[0].mxu0
        %1082 = vdwg.mxu0
        %v1083 = vsel %vm898, %v940, -inf
        %1084 = vmax.xlane.f32.xlu0 %v1083
        %v1085 = vpop.xlane.xlu0 %1084
        %v1086 = vsel %vm898, %v986, -inf
        %1087 = vmax.xlane.f32.xlu0 %v1086
        %v1088 = vpop.xlane.xlu0 %1087
        %v1089 = vsel %vm898, %v1032, -inf
        %1090 = vmax.xlane.f32.xlu0 %v1089
        %v1091 = vpop.xlane.xlu0 %1090
        %v1092 = vsel %vm898, %v1078, -inf
        %1093 = vmax.xlane.f32.xlu0 %v1092
        %v1094 = vpop.xlane.xlu0 %1093
        %v1095 = vsub.f32 %v940, %v1085
        %v1096 = vsub.f32 %v986, %v1088
        %v1097 = vsub.f32 %v1032, %v1091
        %v1098 = vsub.f32 %v1078, %v1094
        %v1099 = vmul.f32 %v1095, 1.442695
        %v1100 = vpow.pop %v1099
        %v1101 = vmul.f32 %v1096, 1.442695
        %v1102 = vpow.pop %v1101
        %v1103 = vmul.f32 %v1097, 1.442695
        %v1104 = vpow.pop %v1103
        %v1105 = vmul.f32 %v1098, 1.442695
        %v1106 = vpow.pop %v1105
        %v1107 = vsel %vm898, %v1100, 0.0
        %1108 = vadd.xlane.f32.xlu0 %v1107
        %v1109 = vpop.xlane.xlu0 %1108
        %v1110 = vsel %vm898, %v1102, 0.0
        %1111 = vadd.xlane.f32.xlu0 %v1110
        %v1112 = vpop.xlane.xlu0 %1111
        %v1113 = vsel %vm898, %v1104, 0.0
        %1114 = vadd.xlane.f32.xlu0 %v1113
        %v1115 = vpop.xlane.xlu0 %1114
        %v1116 = vsel %vm898, %v1106, 0.0
        %1117 = vadd.xlane.f32.xlu0 %v1116
        %v1118 = vpop.xlane.xlu0 %1117
        %v1119 = vrcp.pop %v1109
        %v1120 = vrcp.pop %v1112
        %v1121 = vrcp.pop %v1115
        %v1122 = vrcp.pop %v1118
        %v1123 = vmul.f32 %v1100, %v1119
        %v1124 = vmul.f32 %v1102, %v1120
        %v1125 = vmul.f32 %v1104, %v1121
        %v1126 = vmul.f32 %v1106, %v1122
        %v1127 = vpack.c.bf16 %v1123, %v1123
        %v1128 = vpack.c.bf16 %v1124, %v1124
        %v1129 = vpack.c.bf16 %v1125, %v1125
        %v1130 = vpack.c.bf16 %v1126, %v1126
        %v1131 = vld [vmem:[#allocation3] sm:$0xf]
        %v1132 = vld [vmem:[#allocation3 + $0x4] sm:$0xf]
        %v1133 = vld [vmem:[#allocation3 + $0x8] sm:$0xf]
        %v1134 = vld [vmem:[#allocation3 + $0xc] sm:$0xf]
        %v1136 = vsel %vm898, %v1127, 0
        %vm1138 = vcmask 1043456
        %v1140 = vsel %vm1138, %v1131, 0
        %1142 = vmatprep.subr.bf16.mxu0 0
        %1143 = vmatpush1.bf16.msra.mxu0 %v1140
        %1144 = vmatprep.subr.bf16.mxu0 0
        %1145 = vmatpush1.bf16.msra.mxu0 0
        %1146 = vmatprep.subr.bf16.mxu0 0
        %1147 = vmatpush1.bf16.msra.mxu0 0
        %1148 = vmatprep.subr.bf16.mxu0 0
        %1149 = vmatpush1.bf16.msra.mxu0 0
        %1150 = vmatprep.subr.bf16.mxu0 0
        %1151 = vmatpush1.bf16.msra.mxu0 0
        %1152 = vmatprep.subr.bf16.mxu0 0
        %1153 = vmatpush1.bf16.msra.mxu0 0
        %1154 = vmatprep.subr.bf16.mxu0 0
        %1155 = vmatpush1.bf16.msra.mxu0 0
        %1156 = vmatprep.subr.bf16.mxu0 0
        %1157 = vmatpush1.bf16.msra.mxu0 0
        %1158 = vmatprep.subr.bf16.mxu0 0
        %1159 = vmatpush1.bf16.msra.mxu0 0
        %1160 = vmatprep.subr.bf16.mxu0 0
        %1161 = vmatpush1.bf16.msra.mxu0 0
        %1162 = vmatprep.subr.bf16.mxu0 0
        %1163 = vmatpush1.bf16.msra.mxu0 0
        %1164 = vmatprep.subr.bf16.mxu0 0
        %1165 = vmatpush1.bf16.msra.mxu0 0
        %1166 = vmatprep.subr.bf16.mxu0 0
        %1167 = vmatpush1.bf16.msra.mxu0 0
        %1168 = vmatprep.subr.bf16.mxu0 0
        %1169 = vmatpush1.bf16.msra.mxu0 0
        %1170 = vmatprep.subr.bf16.mxu0 0
        %1171 = vmatpush1.bf16.msra.mxu0 0
        %1172 = vmatprep.subr.bf16.mxu0 0
        %1173 = vmatpush1.bf16.msra.mxu0 0
        %1174 = vmatprep.mubr.bf16.mxu0 0
        %1175 = vmatmul.mubr.bf16.gmra.mrb[0].mxu0 %v1136
        %v1176 = vpop.f32.mrb[0].mxu0
        %v1177 = vadd.f32 0.0, %v1176
        %v1178 = vpop.f32.mrb[0].mxu0
        %v1179 = vpop.f32.mrb[0].mxu0
        %v1180 = vpop.f32.mrb[0].mxu0
        %1181 = vdwg.mxu0
        %v1183 = vsel %vm898, %v1128, 0
        %v1186 = vsel %vm1138, %v1132, 0
        %1188 = vmatprep.subr.bf16.mxu0 0
        %1189 = vmatpush1.bf16.msra.mxu0 %v1186
        %1190 = vmatprep.subr.bf16.mxu0 0
        %1191 = vmatpush1.bf16.msra.mxu0 0
        %1192 = vmatprep.subr.bf16.mxu0 0
        %1193 = vmatpush1.bf16.msra.mxu0 0
        %1194 = vmatprep.subr.bf16.mxu0 0
        %1195 = vmatpush1.bf16.msra.mxu0 0
        %1196 = vmatprep.subr.bf16.mxu0 0
        %1197 = vmatpush1.bf16.msra.mxu0 0
        %1198 = vmatprep.subr.bf16.mxu0 0
        %1199 = vmatpush1.bf16.msra.mxu0 0
        %1200 = vmatprep.subr.bf16.mxu0 0
        %1201 = vmatpush1.bf16.msra.mxu0 0
        %1202 = vmatprep.subr.bf16.mxu0 0
        %1203 = vmatpush1.bf16.msra.mxu0 0
        %1204 = vmatprep.subr.bf16.mxu0 0
        %1205 = vmatpush1.bf16.msra.mxu0 0
        %1206 = vmatprep.subr.bf16.mxu0 0
        %1207 = vmatpush1.bf16.msra.mxu0 0
        %1208 = vmatprep.subr.bf16.mxu0 0
        %1209 = vmatpush1.bf16.msra.mxu0 0
        %1210 = vmatprep.subr.bf16.mxu0 0
        %1211 = vmatpush1.bf16.msra.mxu0 0
        %1212 = vmatprep.subr.bf16.mxu0 0
        %1213 = vmatpush1.bf16.msra.mxu0 0
        %1214 = vmatprep.subr.bf16.mxu0 0
        %1215 = vmatpush1.bf16.msra.mxu0 0
        %1216 = vmatprep.subr.bf16.mxu0 0
        %1217 = vmatpush1.bf16.msra.mxu0 0
        %1218 = vmatprep.subr.bf16.mxu0 0
        %1219 = vmatpush1.bf16.msra.mxu0 0
        %1220 = vmatprep.mubr.bf16.mxu0 0
        %1221 = vmatmul.mubr.bf16.gmra.mrb[0].mxu0 %v1183
        %v1222 = vpop.f32.mrb[0].mxu0
        %v1223 = vadd.f32 0.0, %v1222
        %v1224 = vpop.f32.mrb[0].mxu0
        %v1225 = vpop.f32.mrb[0].mxu0
        %v1226 = vpop.f32.mrb[0].mxu0
        %1227 = vdwg.mxu0
        %v1229 = vsel %vm898, %v1129, 0
        %v1232 = vsel %vm1138, %v1133, 0
        %1234 = vmatprep.subr.bf16.mxu0 0
        %1235 = vmatpush1.bf16.msra.mxu0 %v1232
        %1236 = vmatprep.subr.bf16.mxu0 0
        %1237 = vmatpush1.bf16.msra.mxu0 0
        %1238 = vmatprep.subr.bf16.mxu0 0
        %1239 = vmatpush1.bf16.msra.mxu0 0
        %1240 = vmatprep.subr.bf16.mxu0 0
        %1241 = vmatpush1.bf16.msra.mxu0 0
        %1242 = vmatprep.subr.bf16.mxu0 0
        %1243 = vmatpush1.bf16.msra.mxu0 0
        %1244 = vmatprep.subr.bf16.mxu0 0
        %1245 = vmatpush1.bf16.msra.mxu0 0
        %1246 = vmatprep.subr.bf16.mxu0 0
        %1247 = vmatpush1.bf16.msra.mxu0 0
        %1248 = vmatprep.subr.bf16.mxu0 0
        %1249 = vmatpush1.bf16.msra.mxu0 0
        %1250 = vmatprep.subr.bf16.mxu0 0
        %1251 = vmatpush1.bf16.msra.mxu0 0
        %1252 = vmatprep.subr.bf16.mxu0 0
        %1253 = vmatpush1.bf16.msra.mxu0 0
        %1254 = vmatprep.subr.bf16.mxu0 0
        %1255 = vmatpush1.bf16.msra.mxu0 0
        %1256 = vmatprep.subr.bf16.mxu0 0
        %1257 = vmatpush1.bf16.msra.mxu0 0
        %1258 = vmatprep.subr.bf16.mxu0 0
        %1259 = vmatpush1.bf16.msra.mxu0 0
        %1260 = vmatprep.subr.bf16.mxu0 0
        %1261 = vmatpush1.bf16.msra.mxu0 0
        %1262 = vmatprep.subr.bf16.mxu0 0
        %1263 = vmatpush1.bf16.msra.mxu0 0
        %1264 = vmatprep.subr.bf16.mxu0 0
        %1265 = vmatpush1.bf16.msra.mxu0 0
        %1266 = vmatprep.mubr.bf16.mxu0 0
        %1267 = vmatmul.mubr.bf16.gmra.mrb[0].mxu0 %v1229
        %v1268 = vpop.f32.mrb[0].mxu0
        %v1269 = vadd.f32 0.0, %v1268
        %v1270 = vpop.f32.mrb[0].mxu0
        %v1271 = vpop.f32.mrb[0].mxu0
        %v1272 = vpop.f32.mrb[0].mxu0
        %1273 = vdwg.mxu0
        %v1275 = vsel %vm898, %v1130, 0
        %v1278 = vsel %vm1138, %v1134, 0
        %1280 = vmatprep.subr.bf16.mxu0 0
        %1281 = vmatpush1.bf16.msra.mxu0 %v1278
        %1282 = vmatprep.subr.bf16.mxu0 0
        %1283 = vmatpush1.bf16.msra.mxu0 0
        %1284 = vmatprep.subr.bf16.mxu0 0
        %1285 = vmatpush1.bf16.msra.mxu0 0
        %1286 = vmatprep.subr.bf16.mxu0 0
        %1287 = vmatpush1.bf16.msra.mxu0 0
        %1288 = vmatprep.subr.bf16.mxu0 0
        %1289 = vmatpush1.bf16.msra.mxu0 0
        %1290 = vmatprep.subr.bf16.mxu0 0
        %1291 = vmatpush1.bf16.msra.mxu0 0
        %1292 = vmatprep.subr.bf16.mxu0 0
        %1293 = vmatpush1.bf16.msra.mxu0 0
        %1294 = vmatprep.subr.bf16.mxu0 0
        %1295 = vmatpush1.bf16.msra.mxu0 0
        %1296 = vmatprep.subr.bf16.mxu0 0
        %1297 = vmatpush1.bf16.msra.mxu0 0
        %1298 = vmatprep.subr.bf16.mxu0 0
        %1299 = vmatpush1.bf16.msra.mxu0 0
        %1300 = vmatprep.subr.bf16.mxu0 0
        %1301 = vmatpush1.bf16.msra.mxu0 0
        %1302 = vmatprep.subr.bf16.mxu0 0
        %1303 = vmatpush1.bf16.msra.mxu0 0
        %1304 = vmatprep.subr.bf16.mxu0 0
        %1305 = vmatpush1.bf16.msra.mxu0 0
        %1306 = vmatprep.subr.bf16.mxu0 0
        %1307 = vmatpush1.bf16.msra.mxu0 0
        %1308 = vmatprep.subr.bf16.mxu0 0
        %1309 = vmatpush1.bf16.msra.mxu0 0
        %1310 = vmatprep.subr.bf16.mxu0 0
        %1311 = vmatpush1.bf16.msra.mxu0 0
        %1312 = vmatprep.mubr.bf16.mxu0 0
        %1313 = vmatmul.mubr.bf16.gmra.mrb[0].mxu0 %v1275
        %v1314 = vpop.f32.mrb[0].mxu0
        %v1315 = vadd.f32 0.0, %v1314
        %v1316 = vpop.f32.mrb[0].mxu0
        %v1317 = vpop.f32.mrb[0].mxu0
        %v1318 = vpop.f32.mrb[0].mxu0
        %1319 = vdwg.mxu0
        %v1320 = vpack.c.bf16 %v1177, %v1177
        %v1321 = vpack.c.bf16 %v1223, %v1223
        %v1322 = vpack.c.bf16 %v1269, %v1269
        %v1323 = vpack.c.bf16 %v1315, %v1315
        %1324 = vst.msk [vmem:[#allocation5] sm:$0xf] %vm870, %v1320
        %v1326 = vunpack.c.l.b16 %v1321
        %v1327 = vpack.c.b16 %v1326, %v1326
        %1328 = vrot.lane.b32.xlu0 %v1327, 8
        %v1329 = vpop.permute.xlu0 %1328
        %vm1331 = vcmask 126016
        %1332 = vst.msk [vmem:[#allocation5] sm:$0xf] %vm1331, %v1329
        %v1334 = vunpack.c.l.b16 %v1322
        %v1335 = vpack.c.b16 %v1334, %v1334
        %1336 = vrot.lane.b32.xlu0 %v1335, 16
        %v1337 = vpop.permute.xlu0 %1336
        %vm1339 = vcmask 191616
        %1340 = vst.msk [vmem:[#allocation5] sm:$0xf] %vm1339, %v1337
        %v1342 = vunpack.c.l.b16 %v1323
        %v1343 = vpack.c.b16 %v1342, %v1342
        %1344 = vrot.lane.b32.xlu0 %v1343, 24
        %v1345 = vpop.permute.xlu0 %1344
        %vm1347 = vcmask 257216
        %1348 = vst.msk [vmem:[#allocation5] sm:$0xf] %vm1347, %v1345
        %v1349 = vld [vmem:[#allocation5] sm:$0xf]
        %v1350 = vld [vmem:[%s9] sm:$0xf]
        %v1351 = vld [vmem:[%s9 + $0x4] sm:$0xf]
        %v1352 = vld [vmem:[%s9 + $0x8] sm:$0xf]
        %v1353 = vld [vmem:[%s9 + $0xc] sm:$0xf]
        %v1354 = vld [vmem:[%s10] sm:$0x1]
        %v1356 = vlaneseq
        %v1357 = vshrl.u32 %v1356, 7
        %v1358 = vsub.s32 0, %v1357
        %v1359 = vrot.slane %v1354, %v1358
        %v1365 = vunpack.c.l.b16 %v1350
        %v1366 = vunpack.c.l.b16 %v1351
        %v1367 = vunpack.c.l.b16 %v1352
        %v1368 = vunpack.c.l.b16 %v1353
        %v1369 = vpack.c.b16 %v1366, %v1365
        %v1370 = vpack.c.b16 %v1368, %v1367
        %v1374 = vsel %vm776, %v1349, 0
        %1376 = vmatprep.subr.bf16.mxu0 0
        %1377 = vmatpush1.bf16.msra.mxu0 %v1369
        %1378 = vmatprep.subr.bf16.mxu0 0
        %1379 = vmatpush1.bf16.msra.mxu0 %v1370
        %1380 = vmatprep.subr.bf16.mxu0 0
        %1381 = vmatpush1.bf16.msra.mxu0 0
        %1382 = vmatprep.subr.bf16.mxu0 0
        %1383 = vmatpush1.bf16.msra.mxu0 0
        %1384 = vmatprep.subr.bf16.mxu0 0
        %1385 = vmatpush1.bf16.msra.mxu0 0
        %1386 = vmatprep.subr.bf16.mxu0 0
        %1387 = vmatpush1.bf16.msra.mxu0 0
        %1388 = vmatprep.subr.bf16.mxu0 0
        %1389 = vmatpush1.bf16.msra.mxu0 0
        %1390 = vmatprep.subr.bf16.mxu0 0
        %1391 = vmatpush1.bf16.msra.mxu0 0
        %1392 = vmatprep.subr.bf16.mxu0 0
        %1393 = vmatpush1.bf16.msra.mxu0 0
        %1394 = vmatprep.subr.bf16.mxu0 0
        %1395 = vmatpush1.bf16.msra.mxu0 0
        %1396 = vmatprep.subr.bf16.mxu0 0
        %1397 = vmatpush1.bf16.msra.mxu0 0
        %1398 = vmatprep.subr.bf16.mxu0 0
        %1399 = vmatpush1.bf16.msra.mxu0 0
        %1400 = vmatprep.subr.bf16.mxu0 0
        %1401 = vmatpush1.bf16.msra.mxu0 0
        %1402 = vmatprep.subr.bf16.mxu0 0
        %1403 = vmatpush1.bf16.msra.mxu0 0
        %1404 = vmatprep.subr.bf16.mxu0 0
        %1405 = vmatpush1.bf16.msra.mxu0 0
        %1406 = vmatprep.subr.bf16.mxu0 0
        %1407 = vmatpush1.bf16.msra.mxu0 0
        %1408 = vmatprep.mubr.bf16.mxu0 0
        %1409 = vmatmul.mubr.bf16.gmra.mrb[0].mxu0 %v1374
        %v1410 = vpop.f32.mrb[0].mxu0
        %v1411 = vadd.f32 %v1359, %v1410
        %v1412 = vpop.f32.mrb[0].mxu0
        %v1413 = vpop.f32.mrb[0].mxu0
        %v1414 = vpop.f32.mrb[0].mxu0
        %1415 = vdwg.mxu0
        %v1416 = vlaneseq
        %v1417 = vshrl.u32 %v1416, 7
        %v1418 = vsub.s32 2, %v1417
        %v1419 = vrot.slane %v570, %v1418
        %v1420 = vmul.f32 %v1419, %v1411
        %v1421 = vadd.f32 %v775, %v1420
        %v1422 = vsel %vm776, %v1421, 0.0
        %1423 = vadd.xlane.f32.xlu0 %v1422
        %v1424 = vpop.xlane.xlu0 %1423
        %v1425 = vmul.f32 %v1424, %v780
        %v1426 = vsub.f32 %v1421, %v1425
        %v1427 = vmul.f32 %v1426, %v1426
        %v1428 = vsel %vm776, %v1427, 0.0
        %1429 = vadd.xlane.f32.xlu0 %v1428
        %v1430 = vpop.xlane.xlu0 %1429
        %v1431 = vmul.f32 %v1430, %v780
        %v1432 = vadd.f32 %v1431, 1e-06
        %v1433 = vrsqrt.pop %v1432
        %v1434 = vmul.f32 %v1426, %v1433
        %v1435 = vlaneseq
        %v1436 = vshrl.u32 %v1435, 7
        %v1437 = vsub.s32 4, %v1436
        %v1438 = vrot.slane %v791, %v1437
        %v1439 = vmul.f32 %v1434, %v1438
        %v1440 = vlaneseq
        %v1441 = vshrl.u32 %v1440, 7
        %v1442 = vsub.s32 3, %v1441
        %v1443 = vrot.slane %v570, %v1442
        %v1444 = vadd.f32 %v1439, %v1443
        %v1445 = vpack.c.bf16 %v1444, %v1444
        %v1446 = vld [vmem:[%s11] sm:$0xf]
        %v1447 = vld [vmem:[%s11 + $0x4] sm:$0xf]
        %v1448 = vld [vmem:[%s11 + $0x8] sm:$0xf]
        %v1449 = vld [vmem:[%s11 + $0xc] sm:$0xf]
        %v1450 = vld [vmem:[%s12] sm:$0x1]
        %v1452 = vlaneseq
        %v1453 = vshrl.u32 %v1452, 7
        %v1454 = vsub.s32 0, %v1453
        %v1455 = vrot.slane %v1450, %v1454
        %v1461 = vunpack.c.l.b16 %v1446
        %v1462 = vunpack.c.l.b16 %v1447
        %v1463 = vunpack.c.l.b16 %v1448
        %v1464 = vunpack.c.l.b16 %v1449
        %v1465 = vpack.c.b16 %v1462, %v1461
        %v1466 = vpack.c.b16 %v1464, %v1463
        %v1470 = vsel %vm776, %v1445, 0
        %1472 = vmatprep.subr.bf16.mxu0 0
        %1473 = vmatpush1.bf16.msra.mxu0 %v1465
        %1474 = vmatprep.subr.bf16.mxu0 0
        %1475 = vmatpush1.bf16.msra.mxu0 %v1466
        %1476 = vmatprep.subr.bf16.mxu0 0
        %1477 = vmatpush1.bf16.msra.mxu0 0
        %1478 = vmatprep.subr.bf16.mxu0 0
        %1479 = vmatpush1.bf16.msra.mxu0 0
        %1480 = vmatprep.subr.bf16.mxu0 0
        %1481 = vmatpush1.bf16.msra.mxu0 0
        %1482 = vmatprep.subr.bf16.mxu0 0
        %1483 = vmatpush1.bf16.msra.mxu0 0
        %1484 = vmatprep.subr.bf16.mxu0 0
        %1485 = vmatpush1.bf16.msra.mxu0 0
        %1486 = vmatprep.subr.bf16.mxu0 0
        %1487 = vmatpush1.bf16.msra.mxu0 0
        %1488 = vmatprep.subr.bf16.mxu0 0
        %1489 = vmatpush1.bf16.msra.mxu0 0
        %1490 = vmatprep.subr.bf16.mxu0 0
        %1491 = vmatpush1.bf16.msra.mxu0 0
        %1492 = vmatprep.subr.bf16.mxu0 0
        %1493 = vmatpush1.bf16.msra.mxu0 0
        %1494 = vmatprep.subr.bf16.mxu0 0
        %1495 = vmatpush1.bf16.msra.mxu0 0
        %1496 = vmatprep.subr.bf16.mxu0 0
        %1497 = vmatpush1.bf16.msra.mxu0 0
        %1498 = vmatprep.subr.bf16.mxu0 0
        %1499 = vmatpush1.bf16.msra.mxu0 0
        %1500 = vmatprep.subr.bf16.mxu0 0
        %1501 = vmatpush1.bf16.msra.mxu0 0
        %1502 = vmatprep.subr.bf16.mxu0 0
        %1503 = vmatpush1.bf16.msra.mxu0 0
        %1504 = vmatprep.mubr.bf16.mxu0 0
        %1505 = vmatmul.mubr.bf16.gmra.mrb[0].mxu0 %v1470
        %v1506 = vpop.f32.mrb[0].mxu0
        %v1507 = vadd.f32 %v1455, %v1506
        %v1508 = vpop.f32.mrb[0].mxu0
        %v1509 = vpop.f32.mrb[0].mxu0
        %v1510 = vpop.f32.mrb[0].mxu0
        %1511 = vdwg.mxu0
        %v1512 = vmul.f32 %v1507, 0.5
        %v1513 = vmul.f32 %v1507, 0.044715
        %v1514 = vmul.f32 %v1513, %v1507
        %v1515 = vmul.f32 %v1514, %v1507
        %v1516 = vadd.f32 %v1507, %v1515
        %v1517 = vmul.f32 %v1516, 0.7978846
        %v1518 = vtanh.pop %v1517
        %v1519 = vadd.f32 %v1518, 1.0
        %v1520 = vmul.f32 %v1512, %v1519
        %v1521 = vpack.c.bf16 %v1520, %v1520
        %v1522 = vld [vmem:[%s13] sm:$0xf]
        %v1523 = vld [vmem:[%s13 + $0x4] sm:$0xf]
        %v1524 = vld [vmem:[%s13 + $0x8] sm:$0xf]
        %v1525 = vld [vmem:[%s13 + $0xc] sm:$0xf]
        %v1526 = vld [vmem:[%s13 + $0x10] sm:$0xf]
        %v1527 = vld [vmem:[%s13 + $0x14] sm:$0xf]
        %v1528 = vld [vmem:[%s13 + $0x18] sm:$0xf]
        %v1529 = vld [vmem:[%s13 + $0x1c] sm:$0xf]
        %v1530 = vld [vmem:[%s13 + $0x20] sm:$0xf]
        %v1531 = vld [vmem:[%s13 + $0x24] sm:$0xf]
        %v1532 = vld [vmem:[%s13 + $0x28] sm:$0xf]
        %v1533 = vld [vmem:[%s13 + $0x2c] sm:$0xf]
        %v1534 = vld [vmem:[%s13 + $0x30] sm:$0xf]
        %v1535 = vld [vmem:[%s13 + $0x34] sm:$0xf]
        %v1536 = vld [vmem:[%s13 + $0x38] sm:$0xf]
        %v1537 = vld [vmem:[%s13 + $0x3c] sm:$0xf]
        %v1538 = vld [vmem:[%s14] sm:$0x1]
        %v1540 = vlaneseq
        %v1541 = vshrl.u32 %v1540, 7
        %v1542 = vsub.s32 0, %v1541
        %v1543 = vrot.slane %v1538, %v1542
        %v1561 = vunpack.c.l.b16 %v1522
        %v1562 = vunpack.c.l.b16 %v1523
        %v1563 = vunpack.c.l.b16 %v1524
        %v1564 = vunpack.c.l.b16 %v1525
        %v1565 = vunpack.c.l.b16 %v1526
        %v1566 = vunpack.c.l.b16 %v1527
        %v1567 = vunpack.c.l.b16 %v1528
        %v1568 = vunpack.c.l.b16 %v1529
        %v1569 = vunpack.c.l.b16 %v1530
        %v1570 = vunpack.c.l.b16 %v1531
        %v1571 = vunpack.c.l.b16 %v1532
        %v1572 = vunpack.c.l.b16 %v1533
        %v1573 = vunpack.c.l.b16 %v1534
        %v1574 = vunpack.c.l.b16 %v1535
        %v1575 = vunpack.c.l.b16 %v1536
        %v1576 = vunpack.c.l.b16 %v1537
        %v1577 = vpack.c.b16 %v1562, %v1561
        %v1578 = vpack.c.b16 %v1564, %v1563
        %v1579 = vpack.c.b16 %v1566, %v1565
        %v1580 = vpack.c.b16 %v1568, %v1567
        %v1581 = vpack.c.b16 %v1570, %v1569
        %v1582 = vpack.c.b16 %v1572, %v1571
        %v1583 = vpack.c.b16 %v1574, %v1573
        %v1584 = vpack.c.b16 %v1576, %v1575
        %1593 = vmatprep.subr.bf16.mxu0 0
        %1594 = vmatpush1.bf16.msra.mxu0 %v1577
        %1595 = vmatprep.subr.bf16.mxu0 0
        %1596 = vmatpush1.bf16.msra.mxu0 %v1578
        %1597 = vmatprep.subr.bf16.mxu0 0
        %1598 = vmatpush1.bf16.msra.mxu0 %v1579
        %1599 = vmatprep.subr.bf16.mxu0 0
        %1600 = vmatpush1.bf16.msra.mxu0 %v1580
        %1601 = vmatprep.subr.bf16.mxu0 0
        %1602 = vmatpush1.bf16.msra.mxu0 %v1581
        %1603 = vmatprep.subr.bf16.mxu0 0
        %1604 = vmatpush1.bf16.msra.mxu0 %v1582
        %1605 = vmatprep.subr.bf16.mxu0 0
        %1606 = vmatpush1.bf16.msra.mxu0 %v1583
        %1607 = vmatprep.subr.bf16.mxu0 0
        %1608 = vmatpush1.bf16.msra.mxu0 %v1584
        %1609 = vmatprep.subr.bf16.mxu0 0
        %1610 = vmatpush1.bf16.msra.mxu0 0
        %1611 = vmatprep.subr.bf16.mxu0 0
        %1612 = vmatpush1.bf16.msra.mxu0 0
        %1613 = vmatprep.subr.bf16.mxu0 0
        %1614 = vmatpush1.bf16.msra.mxu0 0
        %1615 = vmatprep.subr.bf16.mxu0 0
        %1616 = vmatpush1.bf16.msra.mxu0 0
        %1617 = vmatprep.subr.bf16.mxu0 0
        %1618 = vmatpush1.bf16.msra.mxu0 0
        %1619 = vmatprep.subr.bf16.mxu0 0
        %1620 = vmatpush1.bf16.msra.mxu0 0
        %1621 = vmatprep.subr.bf16.mxu0 0
        %1622 = vmatpush1.bf16.msra.mxu0 0
        %1623 = vmatprep.subr.bf16.mxu0 0
        %1624 = vmatpush1.bf16.msra.mxu0 0
        %1625 = vmatprep.mubr.bf16.mxu0 0
        %1626 = vmatmul.mubr.bf16.gmra.mrb[0].mxu0 %v1521
        %v1627 = vpop.f32.mrb[0].mxu0
        %v1628 = vadd.f32 %v1543, %v1627
        %v1629 = vpop.f32.mrb[0].mxu0
        %v1630 = vpop.f32.mrb[0].mxu0
        %v1631 = vpop.f32.mrb[0].mxu0
        %1632 = vdwg.mxu0
        %v1633 = vlaneseq
        %v1634 = vshrl.u32 %v1633, 7
        %v1635 = vsub.s32 5, %v1634
        %v1636 = vrot.slane %v570, %v1635
        %v1637 = vmul.f32 %v1636, %v1628
        %v1638 = vadd.f32 %v1421, %v1637
        %v1639 = vpack.c.bf16 %v1638, %v1638
        %vm1640 = vcmask 257024
        %1641 = vst.msk [vmem:[%s557] sm:$0xf] %vm1640, %v1639
        %s1642 = sand.u32 %s386, 1
        %s1643 = scalar_lea.sflag [#allocation8], %s1642
        %s1644 = sand.u32 %s386, 1
        %s1645 = smul.addr %s1644, 4
        %s1646 = scalar_lea.vmem [#allocation9], %s1645
        // Predicated region
        $region89: #{tpu_custom_call.1} parent=79 // pred_check
          %p1647 = pneg %p396
        $region90: #{tpu_custom_call.1} parent=79 // pred_check_branch
          %1649 = sbr.rel (%p1647) target = $region92
        $region91: #{tpu_custom_call.1} parent=79 // pred_region
          %s1651 = ssub.s32 64, 64
          %1652 = vsyncadd %s1643, %s1651
          %s1653 = sadd.s32 %s37, %s36
          %s1654 = smul.addr %s1653, 64
          %s1655 = scalar_lea.hbm %s15, %s1654
          %s1657 = sshll.u32 %s1646, 4
          %s1658 = int_to_ptr.vmem [resolvable:$true] %s1657
          %1660 = dma.vmem_to_hbm [thread:$0]  %s1658, 64, %s1655, %s1643
        $region92: #{tpu_custom_call.1} parent=79 // pred_fallthru
          _
      $region80: #{tpu_custom_call.1} parent=5 // pred_fallthru
        _
      %p1661 = scmp.le.s32.totalorder 2, %s27
      // Predicated region
      $region93: #{tpu_custom_call.1} parent=5 // pred_check
        %p1662 = pneg %p1661
      $region94: #{tpu_custom_call.1} parent=5 // pred_check_branch
        %1664 = sbr.rel (%p1662) target = $region96
      $region95: #{tpu_custom_call.1} parent=5 // pred_region
        %s1665 = ssub.s32 %s27, 2
        // Predicated region
        $region97: #{tpu_custom_call.1} parent=95 // pred_check
          %p1666 = pneg %p402
        $region98: #{tpu_custom_call.1} parent=95 // pred_check_branch
          %1668 = sbr.rel (%p1666) target = $region100
        $region99: #{tpu_custom_call.1} parent=95 // pred_region
          %s1669 = sand.u32 %s387, 1
          %s1670 = scalar_lea.sflag [#allocation8], %s1669
          %s1671 = sand.u32 %s387, 1
          %s1672 = smul.addr %s1671, 4
          %s1673 = scalar_lea.vmem [#allocation9], %s1672
          %1674 = dma.done %s1670, 64
        $region100: #{tpu_custom_call.1} parent=95 // pred_fallthru
          _
      $region96: #{tpu_custom_call.1} parent=5 // pred_fallthru
        _
    $region6: #{tpu_custom_call.1} parent=1 // loop_footer
      %s31 = sadd.s32 1, %s27
    $region7: #{tpu_custom_call.1} parent=1 // loop_footer_branch
      %26 = sbr.rel target = $region3
    $region8: #{tpu_custom_call.1} parent=1 // loop_exit
      _
    %1675 = vsyncpa [#allocation7], 1
    %s1676 = scalar_lea.sflag [#allocation7], 1
    %1677 = vsyncpa %s1676, 1
    %1678 = vsyncpa [#allocation8], 1
    %s1679 = scalar_lea.sflag [#allocation8], 1
    %1680 = vsyncpa %s1679, 1

</llo_original>
